<compile_context>
chip_gen: v6e
topology: v6e:2x2x1
jax: 0.10.0
libtpu: 0.0.40
codegen_flags: <defaults>
</compile_context>

<pallas_src>
from functools import partial

import numpy as np
import jax
import jax.numpy as jnp
from jax.experimental import pallas as pl
from jax.experimental.pallas import tpu as pltpu


def _cyclenet_kernel(W,
                     x_ref, m_ref, w1_ref, b1_ref, w2_ref, b2_ref,
                     w3_ref, b3_ref, w4_ref, b4_ref,
                     o4_ref, o3_ref, o2_ref, o1_ref,
                     patch_ref):
    """Fused 4-layer forward for ONE batch-chunk (batch folded into the lane axis).

    x_ref    : (1, 1, LANES)       input chunk, LANES = B_chunk*H*W (flattened NCHW)
    m_ref    : (9, LANES)          precomputed border masks, one row per 3x3 tap
    w1_ref   : (9, C1, 1)          layer-1 weights, one (C1, 1) column per tap (f32)
    wK_ref   : (CoutK, 9*CinK)     layers 2-4 weights, im2col-flattened (bf16)
    bK_ref   : (CoutK, 1)          bias columns (f32)
    oK_ref   : (1, CoutK, LANES)   layer outputs
    patch_ref: (144, LANES) bf16   persistent VMEM scratch for the im2col patch slab
    """
    lanes = x_ref.shape[-1]
    f32 = jnp.float32
    taps = [(dy, dx) for dy in (-1, 0, 1) for dx in (-1, 0, 1)]   # t = ky*3 + kx

    def tap_slab(x, t):
        # x: (Cin, LANES) -> tap (dy, dx) of the zero-padded 3x3 window, same shape.
        dy, dx = taps[t]
        delta = dy * W + dx
        if delta == 0:
            return x
        shifted = pltpu.roll(x, shift=(-delta) % lanes, axis=1)    # shifted[p] = x[p+delta]
        return shifted * m_ref[pl.ds(t, 1), :]                     # zero out-of-image taps

    x0 = x_ref[0]                                                  # (1, LANES)

    # ---- layer 1 (Cin = 1): per-tap broadcast MAC on the VPU (f32) --------------
    c1 = w1_ref.shape[1]
    acc = jnp.zeros((c1, lanes), f32)
    for t in range(9):
        acc = acc + w1_ref[t] * tap_slab(x0, t)                    # (C1,1)*(1,L) -> (C1,L)
    x1 = jnp.maximum(acc + b1_ref[...], 0.0)                       # (C1, LANES)

    # ---- layers 2-4: patch slab built in bf16 scratch, one MXU matmul per layer --
    def conv_mxu(x, w_ref, b_ref):
        cin = x.shape[0]
        for t in range(9):
            patch_ref[pl.ds(cin * t, cin), :] = tap_slab(x, t).astype(patch_ref.dtype)
        y = jnp.dot(w_ref[...], patch_ref[pl.ds(0, 9 * cin), :],
                    preferred_element_type=f32)                    # (Cout, LANES) f32 acc
        return jnp.maximum(y + b_ref[...], 0.0)

    x2 = conv_mxu(x1, w2_ref, b2_ref)
    x3 = conv_mxu(x2, w3_ref, b3_ref)
    x4 = conv_mxu(x3, w4_ref, b4_ref)

    # Lane-dense (C, LANES) stores -- already flattened layout, no transposes needed.
    o1_ref[0] = x1
    o2_ref[0] = x2
    o3_ref[0] = x3
    o4_ref[0] = x4


def _prep_params(params):
    """PyTorch OIHW conv weights -> kernel layouts (done once in the wrapper)."""
    (w1, b1), (w2, b2), (w3, b3), (w4, b4) = params
    c1 = w1.shape[0]
    # layer 1 (Cin=1): (Cout,1,3,3) -> (9, Cout, 1), tap order t = ky*3 + kx.
    w1p = jnp.transpose(w1, (2, 3, 0, 1)).reshape(9, c1, 1).astype(jnp.float32)

    def im2col_w(w):
        # (Cout, Cin, 3, 3) -> (Cout, 9*Cin), row index = (ky*3+kx)*Cin + ci.
        # Pre-cast to bf16: resident in VMEM at half size, MXU operand dtype.
        cout, cin, kh, kw = w.shape
        return jnp.transpose(w, (0, 2, 3, 1)).reshape(cout, kh * kw * cin).astype(jnp.bfloat16)

    colv = lambda b: b.reshape(-1, 1).astype(jnp.float32)
    return (w1p, colv(b1), im2col_w(w2), colv(b2),
            im2col_w(w3), colv(b3), im2col_w(w4), colv(b4))


def cyclenet_pallas(x_nchw, params):
    """x_nchw: (N, 1, H, W). Returns (x4, x3, x2, x1), all NCHW (matches CycleNet.forward)."""
    N, cin0, H, W = x_nchw.shape
    HW = H * W

    # Batch-in-lanes: one chunk per TensorCore (2 on v7x, 1 on v5e/v6e).  On single-TC
    # parts the whole batch runs in ONE grid step; on v7x the 2 chunks shard across
    # the two cores via the "parallel" grid axis.
    try:
        kind = jax.devices()[0].device_kind.lower()
    except Exception:  # pragma: no cover
        kind = ""
    n_cores = 2 if "v7" in kind else 1
    num_chunks = n_cores if (n_cores <= N and N % n_cores == 0) else 1
    bchunk = N // num_chunks
    lanes = bchunk * HW

    # (N,1,H,W) -> (num_chunks, 1, bchunk*HW): batch is the slow factor of the lane axis.
    x_flat = (x_nchw.astype(jnp.float32)
              .reshape(num_chunks, bchunk, cin0, HW)
              .transpose(0, 2, 1, 3)
              .reshape(num_chunks, cin0, lanes))

    # Host-precomputed border masks: one (LANES,) row per 3x3 tap, resident in VMEM.
    taps = [(dy, dx) for dy in (-1, 0, 1) for dx in (-1, 0, 1)]
    pos = np.arange(lanes) % HW
    row, col = pos // W, pos % W
    masks = jnp.asarray(np.stack(
        [((row + dy >= 0) & (row + dy < H) & (col + dx >= 0) & (col + dx < W))
         .astype(np.float32) for dy, dx in taps]))                 # (9, LANES)

    w1p, b1c, w2r, b2c, w3r, b3c, w4r, b4c = _prep_params(params)
    c1, c2, c3, c4 = w1p.shape[1], w2r.shape[0], w3r.shape[0], w4r.shape[0]
    patch_rows = 9 * max(c1, c2, c3)                               # 144 here

    full = lambda a: pl.BlockSpec(a.shape, lambda n: (0,) * a.ndim)       # resident across grid
    img = lambda c: pl.BlockSpec((1, c, lanes), lambda n: (n, 0, 0))      # one chunk per step

    out_shapes = (
        jax.ShapeDtypeStruct((num_chunks, c4, lanes), jnp.float32),   # x4
        jax.ShapeDtypeStruct((num_chunks, c3, lanes), jnp.float32),   # x3
        jax.ShapeDtypeStruct((num_chunks, c2, lanes), jnp.float32),   # x2
        jax.ShapeDtypeStruct((num_chunks, c1, lanes), jnp.float32),   # x1
    )

    x4, x3, x2, x1 = pl.pallas_call(
        partial(_cyclenet_kernel, W),
        out_shape=out_shapes,
        grid_spec=pltpu.PrefetchScalarGridSpec(
            num_scalar_prefetch=0,
            grid=(num_chunks,),
            in_specs=[img(cin0), full(masks),
                      full(w1p), full(b1c), full(w2r), full(b2c),
                      full(w3r), full(b3c), full(w4r), full(b4c)],
            out_specs=[img(c4), img(c3), img(c2), img(c1)],
            scratch_shapes=[pltpu.VMEM((patch_rows, lanes), jnp.bfloat16)],
        ),
        compiler_params=pltpu.CompilerParams(
            # chunks shard across v7x's 2 TensorCores; a single step on v5e/v6e.
            dimension_semantics=("parallel",)),
    )(x_flat, masks, w1p, b1c, w2r, b2c, w3r, b3c, w4r, b4c)

    def to_nchw(t):
        c = t.shape[1]
        return (t.reshape(num_chunks, c, bchunk, HW)
                 .transpose(0, 2, 1, 3)
                 .reshape(N, c, H, W))

    return to_nchw(x4), to_nchw(x3), to_nchw(x2), to_nchw(x1)


cyclenet_forward = jax.jit(cyclenet_pallas)


def init_params(key):
    """Deterministic weights in PyTorch OIHW layout: 1->16->16->16->1, 3x3."""
    chans = [(1, 16), (16, 16), (16, 16), (16, 1)]
    params = []
    for i, (cin, cout) in enumerate(chans):
        kw, kb = jax.random.split(jax.random.fold_in(key, i))
        w = (jax.random.normal(kw, (cout, cin, 3, 3), jnp.float32)
             * (1.0 / jnp.sqrt(9.0 * cin)))
        b = jax.random.normal(kb, (cout,), jnp.float32) * 0.01
        params.append((w, b))
    return params


def ref_forward(x, params):
    """Pure-JAX reference (XLA conv), for numerical verification."""
    def conv_block(x, w, b):
        y = jax.lax.conv_general_dilated(
            x, w, window_strides=(1, 1), padding=((1, 1), (1, 1)),
            dimension_numbers=("NCHW", "OIHW", "NCHW"),
            precision=jax.lax.Precision.HIGHEST)
        return jnp.maximum(y + b.reshape(1, -1, 1, 1), 0.0)
    (w1, b1), (w2, b2), (w3, b3), (w4, b4) = params
    x1 = conv_block(x, w1, b1)
    x2 = conv_block(x1, w2, b2)
    x3 = conv_block(x2, w3, b3)
    x4 = conv_block(x3, w4, b4)
    return x4, x3, x2, x1


if __name__ == "__main__":
    key = jax.random.PRNGKey(0)
    kx, kp = jax.random.split(key)
    # CycleNet's first conv expects 1 input channel.
    x = jax.random.normal(kx, (2, 1, 16, 16), jnp.float32)     # NCHW
    params = init_params(kp)

    outs = jax.block_until_ready(cyclenet_forward(x, params))
    t1, t2, t3, t4 = outs                                      # (x4, x3, x2, x1)
    assert t1.shape == (2, 1, 16, 16)
    assert t2.shape == (2, 16, 16, 16)
    assert t3.shape == (2, 16, 16, 16)
    assert t4.shape == (2, 16, 16, 16)

    refs = ref_forward(x, params)
    for got, want in zip(outs, refs):
        err = float(jnp.max(jnp.abs(got - want)))
        assert err < 5e-2, f"max abs err {err}"

    print("KERNEL_OK")
</pallas_src>

<mosaic_0001>
module attributes {stable_mosaic.version = 11 : i64} {
  func.func @_cyclenet_kernel(%arg0: i32, %arg1: memref<1x1x512xf32, #tpu.memory_space<vmem>>, %arg2: memref<9x512xf32, #tpu.memory_space<vmem>>, %arg3: memref<9x16x1xf32, #tpu.memory_space<vmem>>, %arg4: memref<16x1xf32, #tpu.memory_space<vmem>>, %arg5: memref<16x144xbf16, #tpu.memory_space<vmem>>, %arg6: memref<16x1xf32, #tpu.memory_space<vmem>>, %arg7: memref<16x144xbf16, #tpu.memory_space<vmem>>, %arg8: memref<16x1xf32, #tpu.memory_space<vmem>>, %arg9: memref<1x144xbf16, #tpu.memory_space<vmem>>, %arg10: memref<1x1xf32, #tpu.memory_space<vmem>>, %arg11: memref<1x1x512xf32, #tpu.memory_space<vmem>>, %arg12: memref<1x16x512xf32, #tpu.memory_space<vmem>>, %arg13: memref<1x16x512xf32, #tpu.memory_space<vmem>>, %arg14: memref<1x16x512xf32, #tpu.memory_space<vmem>>, %arg15: memref<144x512xbf16, #tpu.memory_space<vmem>>) attributes {dimension_semantics = [#tpu.dimension_semantics<parallel>], iteration_bounds = array<i64: 1>, scalar_prefetch = 0 : i64, scratch_operands = 1 : i64, tpu.core_type = #tpu.core_type<tc>, window_params = [{transform_indices = @transform_0, window_bounds = array<i64: 1, 1, 512>}, {pipeline_mode = #tpu.pipeline_mode<synchronous>, transform_indices = @transform_1, window_bounds = array<i64: 9, 512>}, {pipeline_mode = #tpu.pipeline_mode<synchronous>, transform_indices = @transform_2, window_bounds = array<i64: 9, 16, 1>}, {pipeline_mode = #tpu.pipeline_mode<synchronous>, transform_indices = @transform_3, window_bounds = array<i64: 16, 1>}, {pipeline_mode = #tpu.pipeline_mode<synchronous>, transform_indices = @transform_4, window_bounds = array<i64: 16, 144>}, {pipeline_mode = #tpu.pipeline_mode<synchronous>, transform_indices = @transform_5, window_bounds = array<i64: 16, 1>}, {pipeline_mode = #tpu.pipeline_mode<synchronous>, transform_indices = @transform_6, window_bounds = array<i64: 16, 144>}, {pipeline_mode = #tpu.pipeline_mode<synchronous>, transform_indices = @transform_7, window_bounds = array<i64: 16, 1>}, {pipeline_mode = #tpu.pipeline_mode<synchronous>, transform_indices = @transform_8, window_bounds = array<i64: 1, 144>}, {pipeline_mode = #tpu.pipeline_mode<synchronous>, transform_indices = @transform_9, window_bounds = array<i64: 1, 1>}, {transform_indices = @transform_10, window_bounds = array<i64: 1, 1, 512>}, {transform_indices = @transform_11, window_bounds = array<i64: 1, 16, 512>}, {transform_indices = @transform_12, window_bounds = array<i64: 1, 16, 512>}, {transform_indices = @transform_13, window_bounds = array<i64: 1, 16, 512>}]} {
    %c0 = arith.constant 0 : index
    %c0_0 = arith.constant 0 : index
    %c0_1 = arith.constant 0 : index
    %0 = vector.load %arg1[%c0, %c0_0, %c0_1] : memref<1x1x512xf32, #tpu.memory_space<vmem>>, vector<1x1x512xf32>
    %1 = vector.shape_cast %0 : vector<1x1x512xf32> to vector<1x512xf32>
    %cst = arith.constant 0.000000e+00 : f32
    %2 = vector.broadcast %cst : f32 to vector<16x512xf32>
    %c0_2 = arith.constant 0 : index
    %c0_3 = arith.constant 0 : index
    %c0_4 = arith.constant 0 : index
    %3 = vector.load %arg3[%c0_2, %c0_3, %c0_4] : memref<9x16x1xf32, #tpu.memory_space<vmem>>, vector<1x16x1xf32>
    %4 = vector.shape_cast %3 : vector<1x16x1xf32> to vector<16x1xf32>
    %c17_i32 = arith.constant 17 : i32
    %5 = tpu.dynamic_rotate %1 by %c17_i32 dim 1 : vector<1x512xf32>, i32 -> vector<1x512xf32>
    %c0_5 = arith.constant 0 : index
    %c0_6 = arith.constant 0 : index
    %6 = vector.load %arg2[%c0_5, %c0_6] : memref<9x512xf32, #tpu.memory_space<vmem>>, vector<1x512xf32>
    %7 = arith.mulf %5, %6 : vector<1x512xf32>
    %8 = vector.broadcast %4 : vector<16x1xf32> to vector<16x512xf32>
    %9 = vector.broadcast %7 : vector<1x512xf32> to vector<16x512xf32>
    %10 = arith.mulf %8, %9 : vector<16x512xf32>
    %11 = arith.addf %2, %10 : vector<16x512xf32>
    %c1 = arith.constant 1 : index
    %c0_7 = arith.constant 0 : index
    %c0_8 = arith.constant 0 : index
    %12 = vector.load %arg3[%c1, %c0_7, %c0_8] : memref<9x16x1xf32, #tpu.memory_space<vmem>>, vector<1x16x1xf32>
    %13 = vector.shape_cast %12 : vector<1x16x1xf32> to vector<16x1xf32>
    %c16_i32 = arith.constant 16 : i32
    %14 = tpu.dynamic_rotate %1 by %c16_i32 dim 1 : vector<1x512xf32>, i32 -> vector<1x512xf32>
    %c1_9 = arith.constant 1 : index
    %c0_10 = arith.constant 0 : index
    %15 = vector.load %arg2[%c1_9, %c0_10] : memref<9x512xf32, #tpu.memory_space<vmem>>, vector<1x512xf32>
    %16 = arith.mulf %14, %15 : vector<1x512xf32>
    %17 = vector.broadcast %13 : vector<16x1xf32> to vector<16x512xf32>
    %18 = vector.broadcast %16 : vector<1x512xf32> to vector<16x512xf32>
    %19 = arith.mulf %17, %18 : vector<16x512xf32>
    %20 = arith.addf %11, %19 : vector<16x512xf32>
    %c2 = arith.constant 2 : index
    %c0_11 = arith.constant 0 : index
    %c0_12 = arith.constant 0 : index
    %21 = vector.load %arg3[%c2, %c0_11, %c0_12] : memref<9x16x1xf32, #tpu.memory_space<vmem>>, vector<1x16x1xf32>
    %22 = vector.shape_cast %21 : vector<1x16x1xf32> to vector<16x1xf32>
    %c15_i32 = arith.constant 15 : i32
    %23 = tpu.dynamic_rotate %1 by %c15_i32 dim 1 : vector<1x512xf32>, i32 -> vector<1x512xf32>
    %c2_13 = arith.constant 2 : index
    %c0_14 = arith.constant 0 : index
    %24 = vector.load %arg2[%c2_13, %c0_14] : memref<9x512xf32, #tpu.memory_space<vmem>>, vector<1x512xf32>
    %25 = arith.mulf %23, %24 : vector<1x512xf32>
    %26 = vector.broadcast %22 : vector<16x1xf32> to vector<16x512xf32>
    %27 = vector.broadcast %25 : vector<1x512xf32> to vector<16x512xf32>
    %28 = arith.mulf %26, %27 : vector<16x512xf32>
    %29 = arith.addf %20, %28 : vector<16x512xf32>
    %c3 = arith.constant 3 : index
    %c0_15 = arith.constant 0 : index
    %c0_16 = arith.constant 0 : index
    %30 = vector.load %arg3[%c3, %c0_15, %c0_16] : memref<9x16x1xf32, #tpu.memory_space<vmem>>, vector<1x16x1xf32>
    %31 = vector.shape_cast %30 : vector<1x16x1xf32> to vector<16x1xf32>
    %c1_i32 = arith.constant 1 : i32
    %32 = tpu.dynamic_rotate %1 by %c1_i32 dim 1 : vector<1x512xf32>, i32 -> vector<1x512xf32>
    %c3_17 = arith.constant 3 : index
    %c0_18 = arith.constant 0 : index
    %33 = vector.load %arg2[%c3_17, %c0_18] : memref<9x512xf32, #tpu.memory_space<vmem>>, vector<1x512xf32>
    %34 = arith.mulf %32, %33 : vector<1x512xf32>
    %35 = vector.broadcast %31 : vector<16x1xf32> to vector<16x512xf32>
    %36 = vector.broadcast %34 : vector<1x512xf32> to vector<16x512xf32>
    %37 = arith.mulf %35, %36 : vector<16x512xf32>
    %38 = arith.addf %29, %37 : vector<16x512xf32>
    %c4 = arith.constant 4 : index
    %c0_19 = arith.constant 0 : index
    %c0_20 = arith.constant 0 : index
    %39 = vector.load %arg3[%c4, %c0_19, %c0_20] : memref<9x16x1xf32, #tpu.memory_space<vmem>>, vector<1x16x1xf32>
    %40 = vector.shape_cast %39 : vector<1x16x1xf32> to vector<16x1xf32>
    %41 = vector.broadcast %40 : vector<16x1xf32> to vector<16x512xf32>
    %42 = vector.broadcast %1 : vector<1x512xf32> to vector<16x512xf32>
    %43 = arith.mulf %41, %42 : vector<16x512xf32>
    %44 = arith.addf %38, %43 : vector<16x512xf32>
    %c5 = arith.constant 5 : index
    %c0_21 = arith.constant 0 : index
    %c0_22 = arith.constant 0 : index
    %45 = vector.load %arg3[%c5, %c0_21, %c0_22] : memref<9x16x1xf32, #tpu.memory_space<vmem>>, vector<1x16x1xf32>
    %46 = vector.shape_cast %45 : vector<1x16x1xf32> to vector<16x1xf32>
    %c511_i32 = arith.constant 511 : i32
    %47 = tpu.dynamic_rotate %1 by %c511_i32 dim 1 : vector<1x512xf32>, i32 -> vector<1x512xf32>
    %c5_23 = arith.constant 5 : index
    %c0_24 = arith.constant 0 : index
    %48 = vector.load %arg2[%c5_23, %c0_24] : memref<9x512xf32, #tpu.memory_space<vmem>>, vector<1x512xf32>
    %49 = arith.mulf %47, %48 : vector<1x512xf32>
    %50 = vector.broadcast %46 : vector<16x1xf32> to vector<16x512xf32>
    %51 = vector.broadcast %49 : vector<1x512xf32> to vector<16x512xf32>
    %52 = arith.mulf %50, %51 : vector<16x512xf32>
    %53 = arith.addf %44, %52 : vector<16x512xf32>
    %c6 = arith.constant 6 : index
    %c0_25 = arith.constant 0 : index
    %c0_26 = arith.constant 0 : index
    %54 = vector.load %arg3[%c6, %c0_25, %c0_26] : memref<9x16x1xf32, #tpu.memory_space<vmem>>, vector<1x16x1xf32>
    %55 = vector.shape_cast %54 : vector<1x16x1xf32> to vector<16x1xf32>
    %c497_i32 = arith.constant 497 : i32
    %56 = tpu.dynamic_rotate %1 by %c497_i32 dim 1 : vector<1x512xf32>, i32 -> vector<1x512xf32>
    %c6_27 = arith.constant 6 : index
    %c0_28 = arith.constant 0 : index
    %57 = vector.load %arg2[%c6_27, %c0_28] : memref<9x512xf32, #tpu.memory_space<vmem>>, vector<1x512xf32>
    %58 = arith.mulf %56, %57 : vector<1x512xf32>
    %59 = vector.broadcast %55 : vector<16x1xf32> to vector<16x512xf32>
    %60 = vector.broadcast %58 : vector<1x512xf32> to vector<16x512xf32>
    %61 = arith.mulf %59, %60 : vector<16x512xf32>
    %62 = arith.addf %53, %61 : vector<16x512xf32>
    %c7 = arith.constant 7 : index
    %c0_29 = arith.constant 0 : index
    %c0_30 = arith.constant 0 : index
    %63 = vector.load %arg3[%c7, %c0_29, %c0_30] : memref<9x16x1xf32, #tpu.memory_space<vmem>>, vector<1x16x1xf32>
    %64 = vector.shape_cast %63 : vector<1x16x1xf32> to vector<16x1xf32>
    %c496_i32 = arith.constant 496 : i32
    %65 = tpu.dynamic_rotate %1 by %c496_i32 dim 1 : vector<1x512xf32>, i32 -> vector<1x512xf32>
    %c7_31 = arith.constant 7 : index
    %c0_32 = arith.constant 0 : index
    %66 = vector.load %arg2[%c7_31, %c0_32] : memref<9x512xf32, #tpu.memory_space<vmem>>, vector<1x512xf32>
    %67 = arith.mulf %65, %66 : vector<1x512xf32>
    %68 = vector.broadcast %64 : vector<16x1xf32> to vector<16x512xf32>
    %69 = vector.broadcast %67 : vector<1x512xf32> to vector<16x512xf32>
    %70 = arith.mulf %68, %69 : vector<16x512xf32>
    %71 = arith.addf %62, %70 : vector<16x512xf32>
    %c8 = arith.constant 8 : index
    %c0_33 = arith.constant 0 : index
    %c0_34 = arith.constant 0 : index
    %72 = vector.load %arg3[%c8, %c0_33, %c0_34] : memref<9x16x1xf32, #tpu.memory_space<vmem>>, vector<1x16x1xf32>
    %73 = vector.shape_cast %72 : vector<1x16x1xf32> to vector<16x1xf32>
    %c495_i32 = arith.constant 495 : i32
    %74 = tpu.dynamic_rotate %1 by %c495_i32 dim 1 : vector<1x512xf32>, i32 -> vector<1x512xf32>
    %c8_35 = arith.constant 8 : index
    %c0_36 = arith.constant 0 : index
    %75 = vector.load %arg2[%c8_35, %c0_36] : memref<9x512xf32, #tpu.memory_space<vmem>>, vector<1x512xf32>
    %76 = arith.mulf %74, %75 : vector<1x512xf32>
    %77 = vector.broadcast %73 : vector<16x1xf32> to vector<16x512xf32>
    %78 = vector.broadcast %76 : vector<1x512xf32> to vector<16x512xf32>
    %79 = arith.mulf %77, %78 : vector<16x512xf32>
    %80 = arith.addf %71, %79 : vector<16x512xf32>
    %c0_37 = arith.constant 0 : index
    %c0_38 = arith.constant 0 : index
    %81 = vector.load %arg4[%c0_37, %c0_38] : memref<16x1xf32, #tpu.memory_space<vmem>>, vector<16x1xf32>
    %82 = vector.broadcast %81 : vector<16x1xf32> to vector<16x512xf32>
    %83 = arith.addf %80, %82 : vector<16x512xf32>
    %cst_39 = arith.constant 0.000000e+00 : f32
    %84 = vector.broadcast %cst_39 : f32 to vector<16x512xf32>
    %85 = arith.maximumf %83, %84 : vector<16x512xf32>
    %c17_i32_40 = arith.constant 17 : i32
    %86 = tpu.dynamic_rotate %85 by %c17_i32_40 dim 1 : vector<16x512xf32>, i32 -> vector<16x512xf32>
    %c0_41 = arith.constant 0 : index
    %c0_42 = arith.constant 0 : index
    %87 = vector.load %arg2[%c0_41, %c0_42] : memref<9x512xf32, #tpu.memory_space<vmem>>, vector<1x512xf32>
    %88 = vector.broadcast %87 : vector<1x512xf32> to vector<16x512xf32>
    %89 = arith.mulf %86, %88 : vector<16x512xf32>
    %90 = arith.truncf %89 : vector<16x512xf32> to vector<16x512xbf16>
    %c0_43 = arith.constant 0 : index
    %c0_44 = arith.constant 0 : index
    %91 = vector.load %arg15[%c0_43, %c0_44] : memref<144x512xbf16, #tpu.memory_space<vmem>>, vector<16x512xbf16>
    tpu.vector_store %arg15[%c0_43, %c0_44], %90 {strides = array<i32>} : memref<144x512xbf16, #tpu.memory_space<vmem>>, vector<16x512xbf16>,
    %c16_i32_45 = arith.constant 16 : i32
    %92 = tpu.dynamic_rotate %85 by %c16_i32_45 dim 1 : vector<16x512xf32>, i32 -> vector<16x512xf32>
    %c1_46 = arith.constant 1 : index
    %c0_47 = arith.constant 0 : index
    %93 = vector.load %arg2[%c1_46, %c0_47] : memref<9x512xf32, #tpu.memory_space<vmem>>, vector<1x512xf32>
    %94 = vector.broadcast %93 : vector<1x512xf32> to vector<16x512xf32>
    %95 = arith.mulf %92, %94 : vector<16x512xf32>
    %96 = arith.truncf %95 : vector<16x512xf32> to vector<16x512xbf16>
    %c16 = arith.constant 16 : index
    %c0_48 = arith.constant 0 : index
    %97 = vector.load %arg15[%c16, %c0_48] : memref<144x512xbf16, #tpu.memory_space<vmem>>, vector<16x512xbf16>
    tpu.vector_store %arg15[%c16, %c0_48], %96 {strides = array<i32>} : memref<144x512xbf16, #tpu.memory_space<vmem>>, vector<16x512xbf16>,
    %c15_i32_49 = arith.constant 15 : i32
    %98 = tpu.dynamic_rotate %85 by %c15_i32_49 dim 1 : vector<16x512xf32>, i32 -> vector<16x512xf32>
    %c2_50 = arith.constant 2 : index
    %c0_51 = arith.constant 0 : index
    %99 = vector.load %arg2[%c2_50, %c0_51] : memref<9x512xf32, #tpu.memory_space<vmem>>, vector<1x512xf32>
    %100 = vector.broadcast %99 : vector<1x512xf32> to vector<16x512xf32>
    %101 = arith.mulf %98, %100 : vector<16x512xf32>
    %102 = arith.truncf %101 : vector<16x512xf32> to vector<16x512xbf16>
    %c32 = arith.constant 32 : index
    %c0_52 = arith.constant 0 : index
    %103 = vector.load %arg15[%c32, %c0_52] : memref<144x512xbf16, #tpu.memory_space<vmem>>, vector<16x512xbf16>
    tpu.vector_store %arg15[%c32, %c0_52], %102 {strides = array<i32>} : memref<144x512xbf16, #tpu.memory_space<vmem>>, vector<16x512xbf16>,
    %c1_i32_53 = arith.constant 1 : i32
    %104 = tpu.dynamic_rotate %85 by %c1_i32_53 dim 1 : vector<16x512xf32>, i32 -> vector<16x512xf32>
    %c3_54 = arith.constant 3 : index
    %c0_55 = arith.constant 0 : index
    %105 = vector.load %arg2[%c3_54, %c0_55] : memref<9x512xf32, #tpu.memory_space<vmem>>, vector<1x512xf32>
    %106 = vector.broadcast %105 : vector<1x512xf32> to vector<16x512xf32>
    %107 = arith.mulf %104, %106 : vector<16x512xf32>
    %108 = arith.truncf %107 : vector<16x512xf32> to vector<16x512xbf16>
    %c48 = arith.constant 48 : index
    %c0_56 = arith.constant 0 : index
    %109 = vector.load %arg15[%c48, %c0_56] : memref<144x512xbf16, #tpu.memory_space<vmem>>, vector<16x512xbf16>
    tpu.vector_store %arg15[%c48, %c0_56], %108 {strides = array<i32>} : memref<144x512xbf16, #tpu.memory_space<vmem>>, vector<16x512xbf16>,
    %110 = arith.truncf %85 : vector<16x512xf32> to vector<16x512xbf16>
    %c64 = arith.constant 64 : index
    %c0_57 = arith.constant 0 : index
    %111 = vector.load %arg15[%c64, %c0_57] : memref<144x512xbf16, #tpu.memory_space<vmem>>, vector<16x512xbf16>
    tpu.vector_store %arg15[%c64, %c0_57], %110 {strides = array<i32>} : memref<144x512xbf16, #tpu.memory_space<vmem>>, vector<16x512xbf16>,
    %c511_i32_58 = arith.constant 511 : i32
    %112 = tpu.dynamic_rotate %85 by %c511_i32_58 dim 1 : vector<16x512xf32>, i32 -> vector<16x512xf32>
    %c5_59 = arith.constant 5 : index
    %c0_60 = arith.constant 0 : index
    %113 = vector.load %arg2[%c5_59, %c0_60] : memref<9x512xf32, #tpu.memory_space<vmem>>, vector<1x512xf32>
    %114 = vector.broadcast %113 : vector<1x512xf32> to vector<16x512xf32>
    %115 = arith.mulf %112, %114 : vector<16x512xf32>
    %116 = arith.truncf %115 : vector<16x512xf32> to vector<16x512xbf16>
    %c80 = arith.constant 80 : index
    %c0_61 = arith.constant 0 : index
    %117 = vector.load %arg15[%c80, %c0_61] : memref<144x512xbf16, #tpu.memory_space<vmem>>, vector<16x512xbf16>
    tpu.vector_store %arg15[%c80, %c0_61], %116 {strides = array<i32>} : memref<144x512xbf16, #tpu.memory_space<vmem>>, vector<16x512xbf16>,
    %c497_i32_62 = arith.constant 497 : i32
    %118 = tpu.dynamic_rotate %85 by %c497_i32_62 dim 1 : vector<16x512xf32>, i32 -> vector<16x512xf32>
    %c6_63 = arith.constant 6 : index
    %c0_64 = arith.constant 0 : index
    %119 = vector.load %arg2[%c6_63, %c0_64] : memref<9x512xf32, #tpu.memory_space<vmem>>, vector<1x512xf32>
    %120 = vector.broadcast %119 : vector<1x512xf32> to vector<16x512xf32>
    %121 = arith.mulf %118, %120 : vector<16x512xf32>
    %122 = arith.truncf %121 : vector<16x512xf32> to vector<16x512xbf16>
    %c96 = arith.constant 96 : index
    %c0_65 = arith.constant 0 : index
    %123 = vector.load %arg15[%c96, %c0_65] : memref<144x512xbf16, #tpu.memory_space<vmem>>, vector<16x512xbf16>
    tpu.vector_store %arg15[%c96, %c0_65], %122 {strides = array<i32>} : memref<144x512xbf16, #tpu.memory_space<vmem>>, vector<16x512xbf16>,
    %c496_i32_66 = arith.constant 496 : i32
    %124 = tpu.dynamic_rotate %85 by %c496_i32_66 dim 1 : vector<16x512xf32>, i32 -> vector<16x512xf32>
    %c7_67 = arith.constant 7 : index
    %c0_68 = arith.constant 0 : index
    %125 = vector.load %arg2[%c7_67, %c0_68] : memref<9x512xf32, #tpu.memory_space<vmem>>, vector<1x512xf32>
    %126 = vector.broadcast %125 : vector<1x512xf32> to vector<16x512xf32>
    %127 = arith.mulf %124, %126 : vector<16x512xf32>
    %128 = arith.truncf %127 : vector<16x512xf32> to vector<16x512xbf16>
    %c112 = arith.constant 112 : index
    %c0_69 = arith.constant 0 : index
    %129 = vector.load %arg15[%c112, %c0_69] : memref<144x512xbf16, #tpu.memory_space<vmem>>, vector<16x512xbf16>
    tpu.vector_store %arg15[%c112, %c0_69], %128 {strides = array<i32>} : memref<144x512xbf16, #tpu.memory_space<vmem>>, vector<16x512xbf16>,
    %c495_i32_70 = arith.constant 495 : i32
    %130 = tpu.dynamic_rotate %85 by %c495_i32_70 dim 1 : vector<16x512xf32>, i32 -> vector<16x512xf32>
    %c8_71 = arith.constant 8 : index
    %c0_72 = arith.constant 0 : index
    %131 = vector.load %arg2[%c8_71, %c0_72] : memref<9x512xf32, #tpu.memory_space<vmem>>, vector<1x512xf32>
    %132 = vector.broadcast %131 : vector<1x512xf32> to vector<16x512xf32>
    %133 = arith.mulf %130, %132 : vector<16x512xf32>
    %134 = arith.truncf %133 : vector<16x512xf32> to vector<16x512xbf16>
    %c128 = arith.constant 128 : index
    %c0_73 = arith.constant 0 : index
    %135 = vector.load %arg15[%c128, %c0_73] : memref<144x512xbf16, #tpu.memory_space<vmem>>, vector<16x512xbf16>
    tpu.vector_store %arg15[%c128, %c0_73], %134 {strides = array<i32>} : memref<144x512xbf16, #tpu.memory_space<vmem>>, vector<16x512xbf16>,
    %c0_74 = arith.constant 0 : index
    %c0_75 = arith.constant 0 : index
    %136 = vector.load %arg5[%c0_74, %c0_75] : memref<16x144xbf16, #tpu.memory_space<vmem>>, vector<16x144xbf16>
    %c0_76 = arith.constant 0 : index
    %c0_77 = arith.constant 0 : index
    %137 = vector.load %arg15[%c0_76, %c0_77] : memref<144x512xbf16, #tpu.memory_space<vmem>>, vector<144x512xbf16>
    %cst_78 = arith.constant dense<0.000000e+00> : vector<16x512xf32>
    %138 = tpu.matmul %136, %137, %cst_78 {dimension_numbers = #tpu.dot_dimension_numbers<[1], [0], [0], [1], [0, 0, 1, 1], [], []>} : vector<16x144xbf16>, vector<144x512xbf16>, vector<16x512xf32> -> vector<16x512xf32>
    %c0_79 = arith.constant 0 : index
    %c0_80 = arith.constant 0 : index
    %139 = vector.load %arg6[%c0_79, %c0_80] : memref<16x1xf32, #tpu.memory_space<vmem>>, vector<16x1xf32>
    %140 = vector.broadcast %139 : vector<16x1xf32> to vector<16x512xf32>
    %141 = arith.addf %138, %140 : vector<16x512xf32>
    %cst_81 = arith.constant 0.000000e+00 : f32
    %142 = vector.broadcast %cst_81 : f32 to vector<16x512xf32>
    %143 = arith.maximumf %141, %142 : vector<16x512xf32>
    %c17_i32_82 = arith.constant 17 : i32
    %144 = tpu.dynamic_rotate %143 by %c17_i32_82 dim 1 : vector<16x512xf32>, i32 -> vector<16x512xf32>
    %c0_83 = arith.constant 0 : index
    %c0_84 = arith.constant 0 : index
    %145 = vector.load %arg2[%c0_83, %c0_84] : memref<9x512xf32, #tpu.memory_space<vmem>>, vector<1x512xf32>
    %146 = vector.broadcast %145 : vector<1x512xf32> to vector<16x512xf32>
    %147 = arith.mulf %144, %146 : vector<16x512xf32>
    %148 = arith.truncf %147 : vector<16x512xf32> to vector<16x512xbf16>
    %c0_85 = arith.constant 0 : index
    %c0_86 = arith.constant 0 : index
    %149 = vector.load %arg15[%c0_85, %c0_86] : memref<144x512xbf16, #tpu.memory_space<vmem>>, vector<16x512xbf16>
    tpu.vector_store %arg15[%c0_85, %c0_86], %148 {strides = array<i32>} : memref<144x512xbf16, #tpu.memory_space<vmem>>, vector<16x512xbf16>,
    %c16_i32_87 = arith.constant 16 : i32
    %150 = tpu.dynamic_rotate %143 by %c16_i32_87 dim 1 : vector<16x512xf32>, i32 -> vector<16x512xf32>
    %c1_88 = arith.constant 1 : index
    %c0_89 = arith.constant 0 : index
    %151 = vector.load %arg2[%c1_88, %c0_89] : memref<9x512xf32, #tpu.memory_space<vmem>>, vector<1x512xf32>
    %152 = vector.broadcast %151 : vector<1x512xf32> to vector<16x512xf32>
    %153 = arith.mulf %150, %152 : vector<16x512xf32>
    %154 = arith.truncf %153 : vector<16x512xf32> to vector<16x512xbf16>
    %c16_90 = arith.constant 16 : index
    %c0_91 = arith.constant 0 : index
    %155 = vector.load %arg15[%c16_90, %c0_91] : memref<144x512xbf16, #tpu.memory_space<vmem>>, vector<16x512xbf16>
    tpu.vector_store %arg15[%c16_90, %c0_91], %154 {strides = array<i32>} : memref<144x512xbf16, #tpu.memory_space<vmem>>, vector<16x512xbf16>,
    %c15_i32_92 = arith.constant 15 : i32
    %156 = tpu.dynamic_rotate %143 by %c15_i32_92 dim 1 : vector<16x512xf32>, i32 -> vector<16x512xf32>
    %c2_93 = arith.constant 2 : index
    %c0_94 = arith.constant 0 : index
    %157 = vector.load %arg2[%c2_93, %c0_94] : memref<9x512xf32, #tpu.memory_space<vmem>>, vector<1x512xf32>
    %158 = vector.broadcast %157 : vector<1x512xf32> to vector<16x512xf32>
    %159 = arith.mulf %156, %158 : vector<16x512xf32>
    %160 = arith.truncf %159 : vector<16x512xf32> to vector<16x512xbf16>
    %c32_95 = arith.constant 32 : index
    %c0_96 = arith.constant 0 : index
    %161 = vector.load %arg15[%c32_95, %c0_96] : memref<144x512xbf16, #tpu.memory_space<vmem>>, vector<16x512xbf16>
    tpu.vector_store %arg15[%c32_95, %c0_96], %160 {strides = array<i32>} : memref<144x512xbf16, #tpu.memory_space<vmem>>, vector<16x512xbf16>,
    %c1_i32_97 = arith.constant 1 : i32
    %162 = tpu.dynamic_rotate %143 by %c1_i32_97 dim 1 : vector<16x512xf32>, i32 -> vector<16x512xf32>
    %c3_98 = arith.constant 3 : index
    %c0_99 = arith.constant 0 : index
    %163 = vector.load %arg2[%c3_98, %c0_99] : memref<9x512xf32, #tpu.memory_space<vmem>>, vector<1x512xf32>
    %164 = vector.broadcast %163 : vector<1x512xf32> to vector<16x512xf32>
    %165 = arith.mulf %162, %164 : vector<16x512xf32>
    %166 = arith.truncf %165 : vector<16x512xf32> to vector<16x512xbf16>
    %c48_100 = arith.constant 48 : index
    %c0_101 = arith.constant 0 : index
    %167 = vector.load %arg15[%c48_100, %c0_101] : memref<144x512xbf16, #tpu.memory_space<vmem>>, vector<16x512xbf16>
    tpu.vector_store %arg15[%c48_100, %c0_101], %166 {strides = array<i32>} : memref<144x512xbf16, #tpu.memory_space<vmem>>, vector<16x512xbf16>,
    %168 = arith.truncf %143 : vector<16x512xf32> to vector<16x512xbf16>
    %c64_102 = arith.constant 64 : index
    %c0_103 = arith.constant 0 : index
    %169 = vector.load %arg15[%c64_102, %c0_103] : memref<144x512xbf16, #tpu.memory_space<vmem>>, vector<16x512xbf16>
    tpu.vector_store %arg15[%c64_102, %c0_103], %168 {strides = array<i32>} : memref<144x512xbf16, #tpu.memory_space<vmem>>, vector<16x512xbf16>,
    %c511_i32_104 = arith.constant 511 : i32
    %170 = tpu.dynamic_rotate %143 by %c511_i32_104 dim 1 : vector<16x512xf32>, i32 -> vector<16x512xf32>
    %c5_105 = arith.constant 5 : index
    %c0_106 = arith.constant 0 : index
    %171 = vector.load %arg2[%c5_105, %c0_106] : memref<9x512xf32, #tpu.memory_space<vmem>>, vector<1x512xf32>
    %172 = vector.broadcast %171 : vector<1x512xf32> to vector<16x512xf32>
    %173 = arith.mulf %170, %172 : vector<16x512xf32>
    %174 = arith.truncf %173 : vector<16x512xf32> to vector<16x512xbf16>
    %c80_107 = arith.constant 80 : index
    %c0_108 = arith.constant 0 : index
    %175 = vector.load %arg15[%c80_107, %c0_108] : memref<144x512xbf16, #tpu.memory_space<vmem>>, vector<16x512xbf16>
    tpu.vector_store %arg15[%c80_107, %c0_108], %174 {strides = array<i32>} : memref<144x512xbf16, #tpu.memory_space<vmem>>, vector<16x512xbf16>,
    %c497_i32_109 = arith.constant 497 : i32
    %176 = tpu.dynamic_rotate %143 by %c497_i32_109 dim 1 : vector<16x512xf32>, i32 -> vector<16x512xf32>
    %c6_110 = arith.constant 6 : index
    %c0_111 = arith.constant 0 : index
    %177 = vector.load %arg2[%c6_110, %c0_111] : memref<9x512xf32, #tpu.memory_space<vmem>>, vector<1x512xf32>
    %178 = vector.broadcast %177 : vector<1x512xf32> to vector<16x512xf32>
    %179 = arith.mulf %176, %178 : vector<16x512xf32>
    %180 = arith.truncf %179 : vector<16x512xf32> to vector<16x512xbf16>
    %c96_112 = arith.constant 96 : index
    %c0_113 = arith.constant 0 : index
    %181 = vector.load %arg15[%c96_112, %c0_113] : memref<144x512xbf16, #tpu.memory_space<vmem>>, vector<16x512xbf16>
    tpu.vector_store %arg15[%c96_112, %c0_113], %180 {strides = array<i32>} : memref<144x512xbf16, #tpu.memory_space<vmem>>, vector<16x512xbf16>,
    %c496_i32_114 = arith.constant 496 : i32
    %182 = tpu.dynamic_rotate %143 by %c496_i32_114 dim 1 : vector<16x512xf32>, i32 -> vector<16x512xf32>
    %c7_115 = arith.constant 7 : index
    %c0_116 = arith.constant 0 : index
    %183 = vector.load %arg2[%c7_115, %c0_116] : memref<9x512xf32, #tpu.memory_space<vmem>>, vector<1x512xf32>
    %184 = vector.broadcast %183 : vector<1x512xf32> to vector<16x512xf32>
    %185 = arith.mulf %182, %184 : vector<16x512xf32>
    %186 = arith.truncf %185 : vector<16x512xf32> to vector<16x512xbf16>
    %c112_117 = arith.constant 112 : index
    %c0_118 = arith.constant 0 : index
    %187 = vector.load %arg15[%c112_117, %c0_118] : memref<144x512xbf16, #tpu.memory_space<vmem>>, vector<16x512xbf16>
    tpu.vector_store %arg15[%c112_117, %c0_118], %186 {strides = array<i32>} : memref<144x512xbf16, #tpu.memory_space<vmem>>, vector<16x512xbf16>,
    %c495_i32_119 = arith.constant 495 : i32
    %188 = tpu.dynamic_rotate %143 by %c495_i32_119 dim 1 : vector<16x512xf32>, i32 -> vector<16x512xf32>
    %c8_120 = arith.constant 8 : index
    %c0_121 = arith.constant 0 : index
    %189 = vector.load %arg2[%c8_120, %c0_121] : memref<9x512xf32, #tpu.memory_space<vmem>>, vector<1x512xf32>
    %190 = vector.broadcast %189 : vector<1x512xf32> to vector<16x512xf32>
    %191 = arith.mulf %188, %190 : vector<16x512xf32>
    %192 = arith.truncf %191 : vector<16x512xf32> to vector<16x512xbf16>
    %c128_122 = arith.constant 128 : index
    %c0_123 = arith.constant 0 : index
    %193 = vector.load %arg15[%c128_122, %c0_123] : memref<144x512xbf16, #tpu.memory_space<vmem>>, vector<16x512xbf16>
    tpu.vector_store %arg15[%c128_122, %c0_123], %192 {strides = array<i32>} : memref<144x512xbf16, #tpu.memory_space<vmem>>, vector<16x512xbf16>,
    %c0_124 = arith.constant 0 : index
    %c0_125 = arith.constant 0 : index
    %194 = vector.load %arg7[%c0_124, %c0_125] : memref<16x144xbf16, #tpu.memory_space<vmem>>, vector<16x144xbf16>
    %c0_126 = arith.constant 0 : index
    %c0_127 = arith.constant 0 : index
    %195 = vector.load %arg15[%c0_126, %c0_127] : memref<144x512xbf16, #tpu.memory_space<vmem>>, vector<144x512xbf16>
    %cst_128 = arith.constant dense<0.000000e+00> : vector<16x512xf32>
    %196 = tpu.matmul %194, %195, %cst_128 {dimension_numbers = #tpu.dot_dimension_numbers<[1], [0], [0], [1], [0, 0, 1, 1], [], []>} : vector<16x144xbf16>, vector<144x512xbf16>, vector<16x512xf32> -> vector<16x512xf32>
    %c0_129 = arith.constant 0 : index
    %c0_130 = arith.constant 0 : index
    %197 = vector.load %arg8[%c0_129, %c0_130] : memref<16x1xf32, #tpu.memory_space<vmem>>, vector<16x1xf32>
    %198 = vector.broadcast %197 : vector<16x1xf32> to vector<16x512xf32>
    %199 = arith.addf %196, %198 : vector<16x512xf32>
    %cst_131 = arith.constant 0.000000e+00 : f32
    %200 = vector.broadcast %cst_131 : f32 to vector<16x512xf32>
    %201 = arith.maximumf %199, %200 : vector<16x512xf32>
    %c17_i32_132 = arith.constant 17 : i32
    %202 = tpu.dynamic_rotate %201 by %c17_i32_132 dim 1 : vector<16x512xf32>, i32 -> vector<16x512xf32>
    %c0_133 = arith.constant 0 : index
    %c0_134 = arith.constant 0 : index
    %203 = vector.load %arg2[%c0_133, %c0_134] : memref<9x512xf32, #tpu.memory_space<vmem>>, vector<1x512xf32>
    %204 = vector.broadcast %203 : vector<1x512xf32> to vector<16x512xf32>
    %205 = arith.mulf %202, %204 : vector<16x512xf32>
    %206 = arith.truncf %205 : vector<16x512xf32> to vector<16x512xbf16>
    %c0_135 = arith.constant 0 : index
    %c0_136 = arith.constant 0 : index
    %207 = vector.load %arg15[%c0_135, %c0_136] : memref<144x512xbf16, #tpu.memory_space<vmem>>, vector<16x512xbf16>
    tpu.vector_store %arg15[%c0_135, %c0_136], %206 {strides = array<i32>} : memref<144x512xbf16, #tpu.memory_space<vmem>>, vector<16x512xbf16>,
    %c16_i32_137 = arith.constant 16 : i32
    %208 = tpu.dynamic_rotate %201 by %c16_i32_137 dim 1 : vector<16x512xf32>, i32 -> vector<16x512xf32>
    %c1_138 = arith.constant 1 : index
    %c0_139 = arith.constant 0 : index
    %209 = vector.load %arg2[%c1_138, %c0_139] : memref<9x512xf32, #tpu.memory_space<vmem>>, vector<1x512xf32>
    %210 = vector.broadcast %209 : vector<1x512xf32> to vector<16x512xf32>
    %211 = arith.mulf %208, %210 : vector<16x512xf32>
    %212 = arith.truncf %211 : vector<16x512xf32> to vector<16x512xbf16>
    %c16_140 = arith.constant 16 : index
    %c0_141 = arith.constant 0 : index
    %213 = vector.load %arg15[%c16_140, %c0_141] : memref<144x512xbf16, #tpu.memory_space<vmem>>, vector<16x512xbf16>
    tpu.vector_store %arg15[%c16_140, %c0_141], %212 {strides = array<i32>} : memref<144x512xbf16, #tpu.memory_space<vmem>>, vector<16x512xbf16>,
    %c15_i32_142 = arith.constant 15 : i32
    %214 = tpu.dynamic_rotate %201 by %c15_i32_142 dim 1 : vector<16x512xf32>, i32 -> vector<16x512xf32>
    %c2_143 = arith.constant 2 : index
    %c0_144 = arith.constant 0 : index
    %215 = vector.load %arg2[%c2_143, %c0_144] : memref<9x512xf32, #tpu.memory_space<vmem>>, vector<1x512xf32>
    %216 = vector.broadcast %215 : vector<1x512xf32> to vector<16x512xf32>
    %217 = arith.mulf %214, %216 : vector<16x512xf32>
    %218 = arith.truncf %217 : vector<16x512xf32> to vector<16x512xbf16>
    %c32_145 = arith.constant 32 : index
    %c0_146 = arith.constant 0 : index
    %219 = vector.load %arg15[%c32_145, %c0_146] : memref<144x512xbf16, #tpu.memory_space<vmem>>, vector<16x512xbf16>
    tpu.vector_store %arg15[%c32_145, %c0_146], %218 {strides = array<i32>} : memref<144x512xbf16, #tpu.memory_space<vmem>>, vector<16x512xbf16>,
    %c1_i32_147 = arith.constant 1 : i32
    %220 = tpu.dynamic_rotate %201 by %c1_i32_147 dim 1 : vector<16x512xf32>, i32 -> vector<16x512xf32>
    %c3_148 = arith.constant 3 : index
    %c0_149 = arith.constant 0 : index
    %221 = vector.load %arg2[%c3_148, %c0_149] : memref<9x512xf32, #tpu.memory_space<vmem>>, vector<1x512xf32>
    %222 = vector.broadcast %221 : vector<1x512xf32> to vector<16x512xf32>
    %223 = arith.mulf %220, %222 : vector<16x512xf32>
    %224 = arith.truncf %223 : vector<16x512xf32> to vector<16x512xbf16>
    %c48_150 = arith.constant 48 : index
    %c0_151 = arith.constant 0 : index
    %225 = vector.load %arg15[%c48_150, %c0_151] : memref<144x512xbf16, #tpu.memory_space<vmem>>, vector<16x512xbf16>
    tpu.vector_store %arg15[%c48_150, %c0_151], %224 {strides = array<i32>} : memref<144x512xbf16, #tpu.memory_space<vmem>>, vector<16x512xbf16>,
    %226 = arith.truncf %201 : vector<16x512xf32> to vector<16x512xbf16>
    %c64_152 = arith.constant 64 : index
    %c0_153 = arith.constant 0 : index
    %227 = vector.load %arg15[%c64_152, %c0_153] : memref<144x512xbf16, #tpu.memory_space<vmem>>, vector<16x512xbf16>
    tpu.vector_store %arg15[%c64_152, %c0_153], %226 {strides = array<i32>} : memref<144x512xbf16, #tpu.memory_space<vmem>>, vector<16x512xbf16>,
    %c511_i32_154 = arith.constant 511 : i32
    %228 = tpu.dynamic_rotate %201 by %c511_i32_154 dim 1 : vector<16x512xf32>, i32 -> vector<16x512xf32>
    %c5_155 = arith.constant 5 : index
    %c0_156 = arith.constant 0 : index
    %229 = vector.load %arg2[%c5_155, %c0_156] : memref<9x512xf32, #tpu.memory_space<vmem>>, vector<1x512xf32>
    %230 = vector.broadcast %229 : vector<1x512xf32> to vector<16x512xf32>
    %231 = arith.mulf %228, %230 : vector<16x512xf32>
    %232 = arith.truncf %231 : vector<16x512xf32> to vector<16x512xbf16>
    %c80_157 = arith.constant 80 : index
    %c0_158 = arith.constant 0 : index
    %233 = vector.load %arg15[%c80_157, %c0_158] : memref<144x512xbf16, #tpu.memory_space<vmem>>, vector<16x512xbf16>
    tpu.vector_store %arg15[%c80_157, %c0_158], %232 {strides = array<i32>} : memref<144x512xbf16, #tpu.memory_space<vmem>>, vector<16x512xbf16>,
    %c497_i32_159 = arith.constant 497 : i32
    %234 = tpu.dynamic_rotate %201 by %c497_i32_159 dim 1 : vector<16x512xf32>, i32 -> vector<16x512xf32>
    %c6_160 = arith.constant 6 : index
    %c0_161 = arith.constant 0 : index
    %235 = vector.load %arg2[%c6_160, %c0_161] : memref<9x512xf32, #tpu.memory_space<vmem>>, vector<1x512xf32>
    %236 = vector.broadcast %235 : vector<1x512xf32> to vector<16x512xf32>
    %237 = arith.mulf %234, %236 : vector<16x512xf32>
    %238 = arith.truncf %237 : vector<16x512xf32> to vector<16x512xbf16>
    %c96_162 = arith.constant 96 : index
    %c0_163 = arith.constant 0 : index
    %239 = vector.load %arg15[%c96_162, %c0_163] : memref<144x512xbf16, #tpu.memory_space<vmem>>, vector<16x512xbf16>
    tpu.vector_store %arg15[%c96_162, %c0_163], %238 {strides = array<i32>} : memref<144x512xbf16, #tpu.memory_space<vmem>>, vector<16x512xbf16>,
    %c496_i32_164 = arith.constant 496 : i32
    %240 = tpu.dynamic_rotate %201 by %c496_i32_164 dim 1 : vector<16x512xf32>, i32 -> vector<16x512xf32>
    %c7_165 = arith.constant 7 : index
    %c0_166 = arith.constant 0 : index
    %241 = vector.load %arg2[%c7_165, %c0_166] : memref<9x512xf32, #tpu.memory_space<vmem>>, vector<1x512xf32>
    %242 = vector.broadcast %241 : vector<1x512xf32> to vector<16x512xf32>
    %243 = arith.mulf %240, %242 : vector<16x512xf32>
    %244 = arith.truncf %243 : vector<16x512xf32> to vector<16x512xbf16>
    %c112_167 = arith.constant 112 : index
    %c0_168 = arith.constant 0 : index
    %245 = vector.load %arg15[%c112_167, %c0_168] : memref<144x512xbf16, #tpu.memory_space<vmem>>, vector<16x512xbf16>
    tpu.vector_store %arg15[%c112_167, %c0_168], %244 {strides = array<i32>} : memref<144x512xbf16, #tpu.memory_space<vmem>>, vector<16x512xbf16>,
    %c495_i32_169 = arith.constant 495 : i32
    %246 = tpu.dynamic_rotate %201 by %c495_i32_169 dim 1 : vector<16x512xf32>, i32 -> vector<16x512xf32>
    %c8_170 = arith.constant 8 : index
    %c0_171 = arith.constant 0 : index
    %247 = vector.load %arg2[%c8_170, %c0_171] : memref<9x512xf32, #tpu.memory_space<vmem>>, vector<1x512xf32>
    %248 = vector.broadcast %247 : vector<1x512xf32> to vector<16x512xf32>
    %249 = arith.mulf %246, %248 : vector<16x512xf32>
    %250 = arith.truncf %249 : vector<16x512xf32> to vector<16x512xbf16>
    %c128_172 = arith.constant 128 : index
    %c0_173 = arith.constant 0 : index
    %251 = vector.load %arg15[%c128_172, %c0_173] : memref<144x512xbf16, #tpu.memory_space<vmem>>, vector<16x512xbf16>
    tpu.vector_store %arg15[%c128_172, %c0_173], %250 {strides = array<i32>} : memref<144x512xbf16, #tpu.memory_space<vmem>>, vector<16x512xbf16>,
    %c0_174 = arith.constant 0 : index
    %c0_175 = arith.constant 0 : index
    %252 = vector.load %arg9[%c0_174, %c0_175] : memref<1x144xbf16, #tpu.memory_space<vmem>>, vector<1x144xbf16>
    %c0_176 = arith.constant 0 : index
    %c0_177 = arith.constant 0 : index
    %253 = vector.load %arg15[%c0_176, %c0_177] : memref<144x512xbf16, #tpu.memory_space<vmem>>, vector<144x512xbf16>
    %cst_178 = arith.constant dense<0.000000e+00> : vector<1x512xf32>
    %254 = tpu.matmul %252, %253, %cst_178 {dimension_numbers = #tpu.dot_dimension_numbers<[1], [0], [0], [1], [0, 0, 1, 1], [], []>} : vector<1x144xbf16>, vector<144x512xbf16>, vector<1x512xf32> -> vector<1x512xf32>
    %c0_179 = arith.constant 0 : index
    %c0_180 = arith.constant 0 : index
    %255 = vector.load %arg10[%c0_179, %c0_180] : memref<1x1xf32, #tpu.memory_space<vmem>>, vector<1x1xf32>
    %256 = vector.broadcast %255 : vector<1x1xf32> to vector<1x512xf32>
    %257 = arith.addf %254, %256 : vector<1x512xf32>
    %cst_181 = arith.constant 0.000000e+00 : f32
    %258 = vector.broadcast %cst_181 : f32 to vector<1x512xf32>
    %259 = arith.maximumf %257, %258 : vector<1x512xf32>
    %c0_182 = arith.constant 0 : index
    %c0_183 = arith.constant 0 : index
    %c0_184 = arith.constant 0 : index
    %260 = vector.load %arg14[%c0_182, %c0_183, %c0_184] : memref<1x16x512xf32, #tpu.memory_space<vmem>>, vector<1x16x512xf32>
    %261 = vector.shape_cast %260 : vector<1x16x512xf32> to vector<16x512xf32>
    %262 = vector.shape_cast %85 : vector<16x512xf32> to vector<1x16x512xf32>
    tpu.vector_store %arg14[%c0_182, %c0_183, %c0_184], %262 {strides = array<i32>} : memref<1x16x512xf32, #tpu.memory_space<vmem>>, vector<1x16x512xf32>,
    %c0_185 = arith.constant 0 : index
    %c0_186 = arith.constant 0 : index
    %c0_187 = arith.constant 0 : index
    %263 = vector.load %arg13[%c0_185, %c0_186, %c0_187] : memref<1x16x512xf32, #tpu.memory_space<vmem>>, vector<1x16x512xf32>
    %264 = vector.shape_cast %263 : vector<1x16x512xf32> to vector<16x512xf32>
    %265 = vector.shape_cast %143 : vector<16x512xf32> to vector<1x16x512xf32>
    tpu.vector_store %arg13[%c0_185, %c0_186, %c0_187], %265 {strides = array<i32>} : memref<1x16x512xf32, #tpu.memory_space<vmem>>, vector<1x16x512xf32>,
    %c0_188 = arith.constant 0 : index
    %c0_189 = arith.constant 0 : index
    %c0_190 = arith.constant 0 : index
    %266 = vector.load %arg12[%c0_188, %c0_189, %c0_190] : memref<1x16x512xf32, #tpu.memory_space<vmem>>, vector<1x16x512xf32>
    %267 = vector.shape_cast %266 : vector<1x16x512xf32> to vector<16x512xf32>
    %268 = vector.shape_cast %201 : vector<16x512xf32> to vector<1x16x512xf32>
    tpu.vector_store %arg12[%c0_188, %c0_189, %c0_190], %268 {strides = array<i32>} : memref<1x16x512xf32, #tpu.memory_space<vmem>>, vector<1x16x512xf32>,
    %c0_191 = arith.constant 0 : index
    %c0_192 = arith.constant 0 : index
    %c0_193 = arith.constant 0 : index
    %269 = vector.load %arg11[%c0_191, %c0_192, %c0_193] : memref<1x1x512xf32, #tpu.memory_space<vmem>>, vector<1x1x512xf32>
    %270 = vector.shape_cast %269 : vector<1x1x512xf32> to vector<1x512xf32>
    %271 = vector.shape_cast %259 : vector<1x512xf32> to vector<1x1x512xf32>
    tpu.vector_store %arg11[%c0_191, %c0_192, %c0_193], %271 {strides = array<i32>} : memref<1x1x512xf32, #tpu.memory_space<vmem>>, vector<1x1x512xf32>,
    return
  }
  func.func @transform_0(%arg0: i32) -> (i32, i32, i32) {
    %c0_i32 = arith.constant 0 : i32
    %c0_i32_0 = arith.constant 0 : i32
    %c0_i32_1 = arith.constant 0 : i32
    return %arg0, %c0_i32, %c0_i32_0 : i32, i32, i32
  }
  func.func @transform_1(%arg0: i32) -> (i32, i32) {
    %c0_i32 = arith.constant 0 : i32
    %c0_i32_0 = arith.constant 0 : i32
    %c0_i32_1 = arith.constant 0 : i32
    return %c0_i32, %c0_i32_0 : i32, i32
  }
  func.func @transform_2(%arg0: i32) -> (i32, i32, i32) {
    %c0_i32 = arith.constant 0 : i32
    %c0_i32_0 = arith.constant 0 : i32
    %c0_i32_1 = arith.constant 0 : i32
    %c0_i32_2 = arith.constant 0 : i32
    return %c0_i32, %c0_i32_0, %c0_i32_1 : i32, i32, i32
  }
  func.func @transform_3(%arg0: i32) -> (i32, i32) {
    %c0_i32 = arith.constant 0 : i32
    %c0_i32_0 = arith.constant 0 : i32
    %c0_i32_1 = arith.constant 0 : i32
    return %c0_i32, %c0_i32_0 : i32, i32
  }
  func.func @transform_4(%arg0: i32) -> (i32, i32) {
    %c0_i32 = arith.constant 0 : i32
    %c0_i32_0 = arith.constant 0 : i32
    %c0_i32_1 = arith.constant 0 : i32
    return %c0_i32, %c0_i32_0 : i32, i32
  }
  func.func @transform_5(%arg0: i32) -> (i32, i32) {
    %c0_i32 = arith.constant 0 : i32
    %c0_i32_0 = arith.constant 0 : i32
    %c0_i32_1 = arith.constant 0 : i32
    return %c0_i32, %c0_i32_0 : i32, i32
  }
  func.func @transform_6(%arg0: i32) -> (i32, i32) {
    %c0_i32 = arith.constant 0 : i32
    %c0_i32_0 = arith.constant 0 : i32
    %c0_i32_1 = arith.constant 0 : i32
    return %c0_i32, %c0_i32_0 : i32, i32
  }
  func.func @transform_7(%arg0: i32) -> (i32, i32) {
    %c0_i32 = arith.constant 0 : i32
    %c0_i32_0 = arith.constant 0 : i32
    %c0_i32_1 = arith.constant 0 : i32
    return %c0_i32, %c0_i32_0 : i32, i32
  }
  func.func @transform_8(%arg0: i32) -> (i32, i32) {
    %c0_i32 = arith.constant 0 : i32
    %c0_i32_0 = arith.constant 0 : i32
    %c0_i32_1 = arith.constant 0 : i32
    return %c0_i32, %c0_i32_0 : i32, i32
  }
  func.func @transform_9(%arg0: i32) -> (i32, i32) {
    %c0_i32 = arith.constant 0 : i32
    %c0_i32_0 = arith.constant 0 : i32
    %c0_i32_1 = arith.constant 0 : i32
    return %c0_i32, %c0_i32_0 : i32, i32
  }
  func.func @transform_10(%arg0: i32) -> (i32, i32, i32) {
    %c0_i32 = arith.constant 0 : i32
    %c0_i32_0 = arith.constant 0 : i32
    %c0_i32_1 = arith.constant 0 : i32
    return %arg0, %c0_i32, %c0_i32_0 : i32, i32, i32
  }
  func.func @transform_11(%arg0: i32) -> (i32, i32, i32) {
    %c0_i32 = arith.constant 0 : i32
    %c0_i32_0 = arith.constant 0 : i32
    %c0_i32_1 = arith.constant 0 : i32
    return %arg0, %c0_i32, %c0_i32_0 : i32, i32, i32
  }
  func.func @transform_12(%arg0: i32) -> (i32, i32, i32) {
    %c0_i32 = arith.constant 0 : i32
    %c0_i32_0 = arith.constant 0 : i32
    %c0_i32_1 = arith.constant 0 : i32
    return %arg0, %c0_i32, %c0_i32_0 : i32, i32, i32
  }
  func.func @transform_13(%arg0: i32) -> (i32, i32, i32) {
    %c0_i32 = arith.constant 0 : i32
    %c0_i32_0 = arith.constant 0 : i32
    %c0_i32_1 = arith.constant 0 : i32
    return %arg0, %c0_i32, %c0_i32_0 : i32, i32, i32
  }
}

</mosaic_0001>

<llo_original>
// kernel: cyclenet_pallas.1
$region0: #{cyclenet_pallas.1}
  #allocation0 [shape = 'u32[]', space=smem, size = 0x4, offset = 0x4, fixed_abs, tag = 'smem constant byte address 0x4 - core index']
  #allocation1 [shape = 'u32[144,128]{1,0:T(1,128)}', space=vmem, size = 0x12000, scoped, tag = 'internal scratch']
  #allocation2 [shape = 'bf16[144,512]{1,0:T(8,128)(2,1)}', space=vmem, size = 0x24000, scoped, tag = 'scratch operand']
  #allocation3 [shape = 'f32[1,1]{1,0:T(1,128)S(1)}', space=vmem, size = 0x200, scoped, tag = 'scoped memory for cyclenet_pallas.1']
  %s0 = inlined_call_operand.vmem [shape: f32[1,1,512], index: 0, kind: input, shape index: {}]
  %s1 = inlined_call_operand.vmem [shape: f32[9,512], index: 1, kind: input, shape index: {}]
  %s2 = inlined_call_operand.vmem [shape: f32[9,16,1], index: 2, kind: input, shape index: {}]
  %s3 = inlined_call_operand.vmem [shape: f32[16,1], index: 3, kind: input, shape index: {}]
  %s4 = inlined_call_operand.vmem [shape: bf16[16,144], index: 4, kind: input, shape index: {}]
  %s5 = inlined_call_operand.vmem [shape: f32[16,1], index: 5, kind: input, shape index: {}]
  %s6 = inlined_call_operand.vmem [shape: bf16[16,144], index: 6, kind: input, shape index: {}]
  %s7 = inlined_call_operand.vmem [shape: f32[16,1], index: 7, kind: input, shape index: {}]
  %s8 = inlined_call_operand.vmem [shape: bf16[1,144], index: 8, kind: input, shape index: {}]
  %s9 = inlined_call_operand.<no memory space> [shape: f32[1,1], index: 9, kind: input, shape index: {}]
  %s10 = inlined_call_operand.vmem [shape: f32[1,1,512], index: 10, kind: output, shape index: {0}]
  %s11 = inlined_call_operand.vmem [shape: f32[1,16,512], index: 11, kind: output, shape index: {1}]
  %s12 = inlined_call_operand.vmem [shape: f32[1,16,512], index: 12, kind: output, shape index: {2}]
  %s13 = inlined_call_operand.vmem [shape: f32[1,16,512], index: 13, kind: output, shape index: {3}]
  %14 = xla_tuple %s10, %s11, %s12, %s13
  %s15 = sld [smem:[#allocation0]]
  $region74: #{cyclenet_pallas.1} parent=0
    _
  %s17 = ssub.s32 1, %s15
  %s18 = scalar_select 0, %s17, %s15
  %v19 = vstv %s9
  %20 = vst [vmem:[#allocation3] sm:$0x1] %v19
  // Predicated region
  $region2: #{cyclenet_pallas.1} parent=0 // pred_check
    _
  $region3: #{cyclenet_pallas.1} parent=0 // pred_check_branch
    %22 = sbr.rel (0) target = $region5
  $region4: #{cyclenet_pallas.1} parent=0 // pred_region
    _
  $region5: #{cyclenet_pallas.1} parent=0 // pred_fallthru
    _
  // Predicated region
  $region6: #{cyclenet_pallas.1} parent=0 // pred_check
    _
  $region7: #{cyclenet_pallas.1} parent=0 // pred_check_branch
    %24 = sbr.rel (0) target = $region9
  $region8: #{cyclenet_pallas.1} parent=0 // pred_region
    _
  $region9: #{cyclenet_pallas.1} parent=0 // pred_fallthru
    _
  // Predicated region
  $region10: #{cyclenet_pallas.1} parent=0 // pred_check
    _
  $region11: #{cyclenet_pallas.1} parent=0 // pred_check_branch
    %26 = sbr.rel (0) target = $region13
  $region12: #{cyclenet_pallas.1} parent=0 // pred_region
    _
  $region13: #{cyclenet_pallas.1} parent=0 // pred_fallthru
    _
  // Predicated region
  $region14: #{cyclenet_pallas.1} parent=0 // pred_check
    _
  $region15: #{cyclenet_pallas.1} parent=0 // pred_check_branch
    %28 = sbr.rel (0) target = $region17
  $region16: #{cyclenet_pallas.1} parent=0 // pred_region
    _
  $region17: #{cyclenet_pallas.1} parent=0 // pred_fallthru
    _
  // Predicated region
  $region18: #{cyclenet_pallas.1} parent=0 // pred_check
    _
  $region19: #{cyclenet_pallas.1} parent=0 // pred_check_branch
    %30 = sbr.rel (0) target = $region21
  $region20: #{cyclenet_pallas.1} parent=0 // pred_region
    _
  $region21: #{cyclenet_pallas.1} parent=0 // pred_fallthru
    _
  // Predicated region
  $region22: #{cyclenet_pallas.1} parent=0 // pred_check
    _
  $region23: #{cyclenet_pallas.1} parent=0 // pred_check_branch
    %32 = sbr.rel (0) target = $region25
  $region24: #{cyclenet_pallas.1} parent=0 // pred_region
    _
  $region25: #{cyclenet_pallas.1} parent=0 // pred_fallthru
    _
  // Predicated region
  $region26: #{cyclenet_pallas.1} parent=0 // pred_check
    _
  $region27: #{cyclenet_pallas.1} parent=0 // pred_check_branch
    %34 = sbr.rel (0) target = $region29
  $region28: #{cyclenet_pallas.1} parent=0 // pred_region
    _
  $region29: #{cyclenet_pallas.1} parent=0 // pred_fallthru
    _
  // Predicated region
  $region30: #{cyclenet_pallas.1} parent=0 // pred_check
    _
  $region31: #{cyclenet_pallas.1} parent=0 // pred_check_branch
    %36 = sbr.rel (0) target = $region33
  $region32: #{cyclenet_pallas.1} parent=0 // pred_region
    _
  $region33: #{cyclenet_pallas.1} parent=0 // pred_fallthru
    _
  // Predicated region
  $region34: #{cyclenet_pallas.1} parent=0 // pred_check
    _
  $region35: #{cyclenet_pallas.1} parent=0 // pred_check_branch
    %38 = sbr.rel (0) target = $region37
  $region36: #{cyclenet_pallas.1} parent=0 // pred_region
    _
  $region37: #{cyclenet_pallas.1} parent=0 // pred_fallthru
    _
  // Predicated region
  $region38: #{cyclenet_pallas.1} parent=0 // pred_check
    _
  $region39: #{cyclenet_pallas.1} parent=0 // pred_check_branch
    %40 = sbr.rel (0) target = $region41
  $region40: #{cyclenet_pallas.1} parent=0 // pred_region
    _
  $region41: #{cyclenet_pallas.1} parent=0 // pred_fallthru
    _
  %v42 = vld [vmem:[%s0] sm:$0xf]
  %v43 = vld [vmem:[%s2] sm:$0xff]
  %v44 = vld [vmem:[%s2 + $0x8] sm:$0xff]
  %v46 = vlaneseq
  %v47 = vshrl.u32 %v46, 7
  %v48 = vsub.s32 0, %v47
  %v49 = vrot.slane %v42, %v48
  %v50 = vlaneseq
  %v51 = vshrl.u32 %v50, 7
  %v52 = vsub.s32 1, %v51
  %v53 = vrot.slane %v42, %v52
  %v54 = vlaneseq
  %v55 = vshrl.u32 %v54, 7
  %v56 = vsub.s32 2, %v55
  %v57 = vrot.slane %v42, %v56
  %v58 = vlaneseq
  %v59 = vshrl.u32 %v58, 7
  %v60 = vsub.s32 3, %v59
  %v61 = vrot.slane %v42, %v60
  %66 = vrot.lane.b32.xlu0 %v49, 17
  %v67 = vpop.permute.xlu0 %66
  %68 = vrot.lane.b32.xlu0 %v53, 17
  %v69 = vpop.permute.xlu0 %68
  %70 = vrot.lane.b32.xlu0 %v57, 17
  %v71 = vpop.permute.xlu0 %70
  %72 = vrot.lane.b32.xlu0 %v61, 17
  %v73 = vpop.permute.xlu0 %72
  %v74 = vlaneseq
  %v75 = vand.u32 %v74, 127
  %vm76 = vcmp.lt.s32.totalorder %v75, 17
  %v77 = vsel %vm76, %v71, %v73
  %v78 = vsel %vm76, %v69, %v71
  %v79 = vsel %vm76, %v67, %v69
  %v80 = vsel %vm76, %v73, %v67
  %v81 = vld [vmem:[%s1] ss:$8 sm:$0xf]
  %v83 = vlaneseq
  %v84 = vshrl.u32 %v83, 7
  %v85 = vsub.s32 0, %v84
  %v86 = vrot.slane %v81, %v85
  %v87 = vlaneseq
  %v88 = vshrl.u32 %v87, 7
  %v89 = vsub.s32 1, %v88
  %v90 = vrot.slane %v81, %v89
  %v91 = vlaneseq
  %v92 = vshrl.u32 %v91, 7
  %v93 = vsub.s32 2, %v92
  %v94 = vrot.slane %v81, %v93
  %v95 = vlaneseq
  %v96 = vshrl.u32 %v95, 7
  %v97 = vsub.s32 3, %v96
  %v98 = vrot.slane %v81, %v97
  %v103 = vmul.f32 %v80, %v86
  %v104 = vmul.f32 %v79, %v90
  %v105 = vmul.f32 %v78, %v94
  %v106 = vmul.f32 %v77, %v98
  %108 = vset.pattern.permute.xlu0 0
  %109 = vperm.xlu0 %108, %v43
  %v110 = vpop.permute.xlu0 %109
  %113 = vset.pattern.permute.xlu0 0
  %114 = vperm.xlu0 %113, %v44
  %v115 = vpop.permute.xlu0 %114
  %v117 = vlaneseq
  %v118 = vshrl.u32 %v117, 7
  %v119 = vsub.s32 0, %v118
  %v120 = vrot.slane %v103, %v119
  %v121 = vlaneseq
  %v122 = vshrl.u32 %v121, 7
  %v123 = vsub.s32 0, %v122
  %v124 = vrot.slane %v104, %v123
  %v125 = vlaneseq
  %v126 = vshrl.u32 %v125, 7
  %v127 = vsub.s32 0, %v126
  %v128 = vrot.slane %v105, %v127
  %v129 = vlaneseq
  %v130 = vshrl.u32 %v129, 7
  %v131 = vsub.s32 0, %v130
  %v132 = vrot.slane %v106, %v131
  %v133 = vmul.f32 %v110, %v120
  %v134 = vmul.f32 %v110, %v124
  %v135 = vmul.f32 %v110, %v128
  %v136 = vmul.f32 %v110, %v132
  %v137 = vmul.f32 %v115, %v120
  %v138 = vmul.f32 %v115, %v124
  %v139 = vmul.f32 %v115, %v128
  %v140 = vmul.f32 %v115, %v132
  %v141 = vadd.f32 %v133, 0.0
  %v142 = vadd.f32 %v134, 0.0
  %v143 = vadd.f32 %v135, 0.0
  %v144 = vadd.f32 %v136, 0.0
  %v145 = vadd.f32 %v137, 0.0
  %v146 = vadd.f32 %v138, 0.0
  %v147 = vadd.f32 %v139, 0.0
  %v148 = vadd.f32 %v140, 0.0
  %s149 = scalar_lea.vmem %s2, 16
  %v150 = vld [vmem:[%s149] sm:$0xff]
  %v151 = vld [vmem:[%s149 + $0x8] sm:$0xff]
  %152 = vrot.lane.b32.xlu0 %v49, 16
  %v153 = vpop.permute.xlu0 %152
  %154 = vrot.lane.b32.xlu0 %v53, 16
  %v155 = vpop.permute.xlu0 %154
  %156 = vrot.lane.b32.xlu0 %v57, 16
  %v157 = vpop.permute.xlu0 %156
  %158 = vrot.lane.b32.xlu0 %v61, 16
  %v159 = vpop.permute.xlu0 %158
  %vm160 = vcmp.lt.s32.totalorder %v75, 16
  %v161 = vsel %vm160, %v157, %v159
  %v162 = vsel %vm160, %v155, %v157
  %v163 = vsel %vm160, %v153, %v155
  %v164 = vsel %vm160, %v159, %v153
  %s165 = scalar_lea.vmem %s1, 1
  %v166 = vld [vmem:[%s165] ss:$8 sm:$0xf]
  %v168 = vlaneseq
  %v169 = vshrl.u32 %v168, 7
  %v170 = vsub.s32 0, %v169
  %v171 = vrot.slane %v166, %v170
  %v172 = vlaneseq
  %v173 = vshrl.u32 %v172, 7
  %v174 = vsub.s32 1, %v173
  %v175 = vrot.slane %v166, %v174
  %v176 = vlaneseq
  %v177 = vshrl.u32 %v176, 7
  %v178 = vsub.s32 2, %v177
  %v179 = vrot.slane %v166, %v178
  %v180 = vlaneseq
  %v181 = vshrl.u32 %v180, 7
  %v182 = vsub.s32 3, %v181
  %v183 = vrot.slane %v166, %v182
  %v188 = vmul.f32 %v164, %v171
  %v189 = vmul.f32 %v163, %v175
  %v190 = vmul.f32 %v162, %v179
  %v191 = vmul.f32 %v161, %v183
  %193 = vset.pattern.permute.xlu0 0
  %194 = vperm.xlu0 %193, %v150
  %v195 = vpop.permute.xlu0 %194
  %198 = vset.pattern.permute.xlu0 0
  %199 = vperm.xlu0 %198, %v151
  %v200 = vpop.permute.xlu0 %199
  %v202 = vlaneseq
  %v203 = vshrl.u32 %v202, 7
  %v204 = vsub.s32 0, %v203
  %v205 = vrot.slane %v188, %v204
  %v206 = vlaneseq
  %v207 = vshrl.u32 %v206, 7
  %v208 = vsub.s32 0, %v207
  %v209 = vrot.slane %v189, %v208
  %v210 = vlaneseq
  %v211 = vshrl.u32 %v210, 7
  %v212 = vsub.s32 0, %v211
  %v213 = vrot.slane %v190, %v212
  %v214 = vlaneseq
  %v215 = vshrl.u32 %v214, 7
  %v216 = vsub.s32 0, %v215
  %v217 = vrot.slane %v191, %v216
  %v218 = vmul.f32 %v195, %v205
  %v219 = vmul.f32 %v195, %v209
  %v220 = vmul.f32 %v195, %v213
  %v221 = vmul.f32 %v195, %v217
  %v222 = vmul.f32 %v200, %v205
  %v223 = vmul.f32 %v200, %v209
  %v224 = vmul.f32 %v200, %v213
  %v225 = vmul.f32 %v200, %v217
  %v226 = vadd.f32 %v141, %v218
  %v227 = vadd.f32 %v142, %v219
  %v228 = vadd.f32 %v143, %v220
  %v229 = vadd.f32 %v144, %v221
  %v230 = vadd.f32 %v145, %v222
  %v231 = vadd.f32 %v146, %v223
  %v232 = vadd.f32 %v147, %v224
  %v233 = vadd.f32 %v148, %v225
  %s234 = scalar_lea.vmem %s2, 32
  %v235 = vld [vmem:[%s234] sm:$0xff]
  %v236 = vld [vmem:[%s234 + $0x8] sm:$0xff]
  %237 = vrot.lane.b32.xlu0 %v49, 15
  %v238 = vpop.permute.xlu0 %237
  %239 = vrot.lane.b32.xlu0 %v53, 15
  %v240 = vpop.permute.xlu0 %239
  %241 = vrot.lane.b32.xlu0 %v57, 15
  %v242 = vpop.permute.xlu0 %241
  %243 = vrot.lane.b32.xlu0 %v61, 15
  %v244 = vpop.permute.xlu0 %243
  %vm245 = vcmp.lt.s32.totalorder %v75, 15
  %v246 = vsel %vm245, %v242, %v244
  %v247 = vsel %vm245, %v240, %v242
  %v248 = vsel %vm245, %v238, %v240
  %v249 = vsel %vm245, %v244, %v238
  %s250 = scalar_lea.vmem %s1, 2
  %v251 = vld [vmem:[%s250] ss:$8 sm:$0xf]
  %v253 = vlaneseq
  %v254 = vshrl.u32 %v253, 7
  %v255 = vsub.s32 0, %v254
  %v256 = vrot.slane %v251, %v255
  %v257 = vlaneseq
  %v258 = vshrl.u32 %v257, 7
  %v259 = vsub.s32 1, %v258
  %v260 = vrot.slane %v251, %v259
  %v261 = vlaneseq
  %v262 = vshrl.u32 %v261, 7
  %v263 = vsub.s32 2, %v262
  %v264 = vrot.slane %v251, %v263
  %v265 = vlaneseq
  %v266 = vshrl.u32 %v265, 7
  %v267 = vsub.s32 3, %v266
  %v268 = vrot.slane %v251, %v267
  %v273 = vmul.f32 %v249, %v256
  %v274 = vmul.f32 %v248, %v260
  %v275 = vmul.f32 %v247, %v264
  %v276 = vmul.f32 %v246, %v268
  %278 = vset.pattern.permute.xlu0 0
  %279 = vperm.xlu0 %278, %v235
  %v280 = vpop.permute.xlu0 %279
  %283 = vset.pattern.permute.xlu0 0
  %284 = vperm.xlu0 %283, %v236
  %v285 = vpop.permute.xlu0 %284
  %v287 = vlaneseq
  %v288 = vshrl.u32 %v287, 7
  %v289 = vsub.s32 0, %v288
  %v290 = vrot.slane %v273, %v289
  %v291 = vlaneseq
  %v292 = vshrl.u32 %v291, 7
  %v293 = vsub.s32 0, %v292
  %v294 = vrot.slane %v274, %v293
  %v295 = vlaneseq
  %v296 = vshrl.u32 %v295, 7
  %v297 = vsub.s32 0, %v296
  %v298 = vrot.slane %v275, %v297
  %v299 = vlaneseq
  %v300 = vshrl.u32 %v299, 7
  %v301 = vsub.s32 0, %v300
  %v302 = vrot.slane %v276, %v301
  %v303 = vmul.f32 %v280, %v290
  %v304 = vmul.f32 %v280, %v294
  %v305 = vmul.f32 %v280, %v298
  %v306 = vmul.f32 %v280, %v302
  %v307 = vmul.f32 %v285, %v290
  %v308 = vmul.f32 %v285, %v294
  %v309 = vmul.f32 %v285, %v298
  %v310 = vmul.f32 %v285, %v302
  %v311 = vadd.f32 %v226, %v303
  %v312 = vadd.f32 %v227, %v304
  %v313 = vadd.f32 %v228, %v305
  %v314 = vadd.f32 %v229, %v306
  %v315 = vadd.f32 %v230, %v307
  %v316 = vadd.f32 %v231, %v308
  %v317 = vadd.f32 %v232, %v309
  %v318 = vadd.f32 %v233, %v310
  %s319 = scalar_lea.vmem %s2, 48
  %v320 = vld [vmem:[%s319] sm:$0xff]
  %v321 = vld [vmem:[%s319 + $0x8] sm:$0xff]
  %322 = vrot.lane.b32.xlu0 %v49, 1
  %v323 = vpop.permute.xlu0 %322
  %324 = vrot.lane.b32.xlu0 %v53, 1
  %v325 = vpop.permute.xlu0 %324
  %326 = vrot.lane.b32.xlu0 %v57, 1
  %v327 = vpop.permute.xlu0 %326
  %328 = vrot.lane.b32.xlu0 %v61, 1
  %v329 = vpop.permute.xlu0 %328
  %vm330 = vcmp.lt.s32.totalorder %v75, 1
  %v331 = vsel %vm330, %v327, %v329
  %v332 = vsel %vm330, %v325, %v327
  %v333 = vsel %vm330, %v323, %v325
  %v334 = vsel %vm330, %v329, %v323
  %s335 = scalar_lea.vmem %s1, 3
  %v336 = vld [vmem:[%s335] ss:$8 sm:$0xf]
  %v338 = vlaneseq
  %v339 = vshrl.u32 %v338, 7
  %v340 = vsub.s32 0, %v339
  %v341 = vrot.slane %v336, %v340
  %v342 = vlaneseq
  %v343 = vshrl.u32 %v342, 7
  %v344 = vsub.s32 1, %v343
  %v345 = vrot.slane %v336, %v344
  %v346 = vlaneseq
  %v347 = vshrl.u32 %v346, 7
  %v348 = vsub.s32 2, %v347
  %v349 = vrot.slane %v336, %v348
  %v350 = vlaneseq
  %v351 = vshrl.u32 %v350, 7
  %v352 = vsub.s32 3, %v351
  %v353 = vrot.slane %v336, %v352
  %v358 = vmul.f32 %v334, %v341
  %v359 = vmul.f32 %v333, %v345
  %v360 = vmul.f32 %v332, %v349
  %v361 = vmul.f32 %v331, %v353
  %363 = vset.pattern.permute.xlu0 0
  %364 = vperm.xlu0 %363, %v320
  %v365 = vpop.permute.xlu0 %364
  %368 = vset.pattern.permute.xlu0 0
  %369 = vperm.xlu0 %368, %v321
  %v370 = vpop.permute.xlu0 %369
  %v372 = vlaneseq
  %v373 = vshrl.u32 %v372, 7
  %v374 = vsub.s32 0, %v373
  %v375 = vrot.slane %v358, %v374
  %v376 = vlaneseq
  %v377 = vshrl.u32 %v376, 7
  %v378 = vsub.s32 0, %v377
  %v379 = vrot.slane %v359, %v378
  %v380 = vlaneseq
  %v381 = vshrl.u32 %v380, 7
  %v382 = vsub.s32 0, %v381
  %v383 = vrot.slane %v360, %v382
  %v384 = vlaneseq
  %v385 = vshrl.u32 %v384, 7
  %v386 = vsub.s32 0, %v385
  %v387 = vrot.slane %v361, %v386
  %v388 = vmul.f32 %v365, %v375
  %v389 = vmul.f32 %v365, %v379
  %v390 = vmul.f32 %v365, %v383
  %v391 = vmul.f32 %v365, %v387
  %v392 = vmul.f32 %v370, %v375
  %v393 = vmul.f32 %v370, %v379
  %v394 = vmul.f32 %v370, %v383
  %v395 = vmul.f32 %v370, %v387
  %v396 = vadd.f32 %v311, %v388
  %v397 = vadd.f32 %v312, %v389
  %v398 = vadd.f32 %v313, %v390
  %v399 = vadd.f32 %v314, %v391
  %v400 = vadd.f32 %v315, %v392
  %v401 = vadd.f32 %v316, %v393
  %v402 = vadd.f32 %v317, %v394
  %v403 = vadd.f32 %v318, %v395
  %s404 = scalar_lea.vmem %s2, 64
  %v405 = vld [vmem:[%s404] sm:$0xff]
  %v406 = vld [vmem:[%s404 + $0x8] sm:$0xff]
  %408 = vset.pattern.permute.xlu0 0
  %409 = vperm.xlu0 %408, %v405
  %v410 = vpop.permute.xlu0 %409
  %413 = vset.pattern.permute.xlu0 0
  %414 = vperm.xlu0 %413, %v406
  %v415 = vpop.permute.xlu0 %414
  %v417 = vmul.f32 %v410, %v49
  %v418 = vmul.f32 %v410, %v53
  %v419 = vmul.f32 %v410, %v57
  %v420 = vmul.f32 %v410, %v61
  %v421 = vmul.f32 %v415, %v49
  %v422 = vmul.f32 %v415, %v53
  %v423 = vmul.f32 %v415, %v57
  %v424 = vmul.f32 %v415, %v61
  %v425 = vadd.f32 %v396, %v417
  %v426 = vadd.f32 %v397, %v418
  %v427 = vadd.f32 %v398, %v419
  %v428 = vadd.f32 %v399, %v420
  %v429 = vadd.f32 %v400, %v421
  %v430 = vadd.f32 %v401, %v422
  %v431 = vadd.f32 %v402, %v423
  %v432 = vadd.f32 %v403, %v424
  %s433 = scalar_lea.vmem %s2, 80
  %v434 = vld [vmem:[%s433] sm:$0xff]
  %v435 = vld [vmem:[%s433 + $0x8] sm:$0xff]
  %436 = vrot.lane.b32.xlu0 %v49, 127
  %v437 = vpop.permute.xlu0 %436
  %438 = vrot.lane.b32.xlu0 %v53, 127
  %v439 = vpop.permute.xlu0 %438
  %440 = vrot.lane.b32.xlu0 %v57, 127
  %v441 = vpop.permute.xlu0 %440
  %442 = vrot.lane.b32.xlu0 %v61, 127
  %v443 = vpop.permute.xlu0 %442
  %vm444 = vcmp.lt.s32.totalorder %v75, 127
  %v445 = vsel %vm444, %v441, %v443
  %v446 = vsel %vm444, %v439, %v441
  %v447 = vsel %vm444, %v437, %v439
  %v448 = vsel %vm444, %v443, %v437
  %s449 = scalar_lea.vmem %s1, 5
  %v450 = vld [vmem:[%s449] ss:$8 sm:$0xf]
  %v452 = vlaneseq
  %v453 = vshrl.u32 %v452, 7
  %v454 = vsub.s32 0, %v453
  %v455 = vrot.slane %v450, %v454
  %v456 = vlaneseq
  %v457 = vshrl.u32 %v456, 7
  %v458 = vsub.s32 1, %v457
  %v459 = vrot.slane %v450, %v458
  %v460 = vlaneseq
  %v461 = vshrl.u32 %v460, 7
  %v462 = vsub.s32 2, %v461
  %v463 = vrot.slane %v450, %v462
  %v464 = vlaneseq
  %v465 = vshrl.u32 %v464, 7
  %v466 = vsub.s32 3, %v465
  %v467 = vrot.slane %v450, %v466
  %v472 = vmul.f32 %v447, %v455
  %v473 = vmul.f32 %v446, %v459
  %v474 = vmul.f32 %v445, %v463
  %v475 = vmul.f32 %v448, %v467
  %477 = vset.pattern.permute.xlu0 0
  %478 = vperm.xlu0 %477, %v434
  %v479 = vpop.permute.xlu0 %478
  %482 = vset.pattern.permute.xlu0 0
  %483 = vperm.xlu0 %482, %v435
  %v484 = vpop.permute.xlu0 %483
  %v486 = vlaneseq
  %v487 = vshrl.u32 %v486, 7
  %v488 = vsub.s32 0, %v487
  %v489 = vrot.slane %v472, %v488
  %v490 = vlaneseq
  %v491 = vshrl.u32 %v490, 7
  %v492 = vsub.s32 0, %v491
  %v493 = vrot.slane %v473, %v492
  %v494 = vlaneseq
  %v495 = vshrl.u32 %v494, 7
  %v496 = vsub.s32 0, %v495
  %v497 = vrot.slane %v474, %v496
  %v498 = vlaneseq
  %v499 = vshrl.u32 %v498, 7
  %v500 = vsub.s32 0, %v499
  %v501 = vrot.slane %v475, %v500
  %v502 = vmul.f32 %v479, %v489
  %v503 = vmul.f32 %v479, %v493
  %v504 = vmul.f32 %v479, %v497
  %v505 = vmul.f32 %v479, %v501
  %v506 = vmul.f32 %v484, %v489
  %v507 = vmul.f32 %v484, %v493
  %v508 = vmul.f32 %v484, %v497
  %v509 = vmul.f32 %v484, %v501
  %v510 = vadd.f32 %v425, %v502
  %v511 = vadd.f32 %v426, %v503
  %v512 = vadd.f32 %v427, %v504
  %v513 = vadd.f32 %v428, %v505
  %v514 = vadd.f32 %v429, %v506
  %v515 = vadd.f32 %v430, %v507
  %v516 = vadd.f32 %v431, %v508
  %v517 = vadd.f32 %v432, %v509
  %s518 = scalar_lea.vmem %s2, 96
  %v519 = vld [vmem:[%s518] sm:$0xff]
  %v520 = vld [vmem:[%s518 + $0x8] sm:$0xff]
  %521 = vrot.lane.b32.xlu0 %v49, 113
  %v522 = vpop.permute.xlu0 %521
  %523 = vrot.lane.b32.xlu0 %v53, 113
  %v524 = vpop.permute.xlu0 %523
  %525 = vrot.lane.b32.xlu0 %v57, 113
  %v526 = vpop.permute.xlu0 %525
  %527 = vrot.lane.b32.xlu0 %v61, 113
  %v528 = vpop.permute.xlu0 %527
  %vm529 = vcmp.lt.s32.totalorder %v75, 113
  %v530 = vsel %vm529, %v526, %v528
  %v531 = vsel %vm529, %v524, %v526
  %v532 = vsel %vm529, %v522, %v524
  %v533 = vsel %vm529, %v528, %v522
  %s534 = scalar_lea.vmem %s1, 6
  %v535 = vld [vmem:[%s534] ss:$8 sm:$0xf]
  %v537 = vlaneseq
  %v538 = vshrl.u32 %v537, 7
  %v539 = vsub.s32 0, %v538
  %v540 = vrot.slane %v535, %v539
  %v541 = vlaneseq
  %v542 = vshrl.u32 %v541, 7
  %v543 = vsub.s32 1, %v542
  %v544 = vrot.slane %v535, %v543
  %v545 = vlaneseq
  %v546 = vshrl.u32 %v545, 7
  %v547 = vsub.s32 2, %v546
  %v548 = vrot.slane %v535, %v547
  %v549 = vlaneseq
  %v550 = vshrl.u32 %v549, 7
  %v551 = vsub.s32 3, %v550
  %v552 = vrot.slane %v535, %v551
  %v557 = vmul.f32 %v532, %v540
  %v558 = vmul.f32 %v531, %v544
  %v559 = vmul.f32 %v530, %v548
  %v560 = vmul.f32 %v533, %v552
  %562 = vset.pattern.permute.xlu0 0
  %563 = vperm.xlu0 %562, %v519
  %v564 = vpop.permute.xlu0 %563
  %567 = vset.pattern.permute.xlu0 0
  %568 = vperm.xlu0 %567, %v520
  %v569 = vpop.permute.xlu0 %568
  %v571 = vlaneseq
  %v572 = vshrl.u32 %v571, 7
  %v573 = vsub.s32 0, %v572
  %v574 = vrot.slane %v557, %v573
  %v575 = vlaneseq
  %v576 = vshrl.u32 %v575, 7
  %v577 = vsub.s32 0, %v576
  %v578 = vrot.slane %v558, %v577
  %v579 = vlaneseq
  %v580 = vshrl.u32 %v579, 7
  %v581 = vsub.s32 0, %v580
  %v582 = vrot.slane %v559, %v581
  %v583 = vlaneseq
  %v584 = vshrl.u32 %v583, 7
  %v585 = vsub.s32 0, %v584
  %v586 = vrot.slane %v560, %v585
  %v587 = vmul.f32 %v564, %v574
  %v588 = vmul.f32 %v564, %v578
  %v589 = vmul.f32 %v564, %v582
  %v590 = vmul.f32 %v564, %v586
  %v591 = vmul.f32 %v569, %v574
  %v592 = vmul.f32 %v569, %v578
  %v593 = vmul.f32 %v569, %v582
  %v594 = vmul.f32 %v569, %v586
  %v595 = vadd.f32 %v510, %v587
  %v596 = vadd.f32 %v511, %v588
  %v597 = vadd.f32 %v512, %v589
  %v598 = vadd.f32 %v513, %v590
  %v599 = vadd.f32 %v514, %v591
  %v600 = vadd.f32 %v515, %v592
  %v601 = vadd.f32 %v516, %v593
  %v602 = vadd.f32 %v517, %v594
  %s603 = scalar_lea.vmem %s2, 112
  %v604 = vld [vmem:[%s603] sm:$0xff]
  %v605 = vld [vmem:[%s603 + $0x8] sm:$0xff]
  %606 = vrot.lane.b32.xlu0 %v49, 112
  %v607 = vpop.permute.xlu0 %606
  %608 = vrot.lane.b32.xlu0 %v53, 112
  %v609 = vpop.permute.xlu0 %608
  %610 = vrot.lane.b32.xlu0 %v57, 112
  %v611 = vpop.permute.xlu0 %610
  %612 = vrot.lane.b32.xlu0 %v61, 112
  %v613 = vpop.permute.xlu0 %612
  %vm614 = vcmp.lt.s32.totalorder %v75, 112
  %v615 = vsel %vm614, %v611, %v613
  %v616 = vsel %vm614, %v609, %v611
  %v617 = vsel %vm614, %v607, %v609
  %v618 = vsel %vm614, %v613, %v607
  %s619 = scalar_lea.vmem %s1, 7
  %v620 = vld [vmem:[%s619] ss:$8 sm:$0xf]
  %v622 = vlaneseq
  %v623 = vshrl.u32 %v622, 7
  %v624 = vsub.s32 0, %v623
  %v625 = vrot.slane %v620, %v624
  %v626 = vlaneseq
  %v627 = vshrl.u32 %v626, 7
  %v628 = vsub.s32 1, %v627
  %v629 = vrot.slane %v620, %v628
  %v630 = vlaneseq
  %v631 = vshrl.u32 %v630, 7
  %v632 = vsub.s32 2, %v631
  %v633 = vrot.slane %v620, %v632
  %v634 = vlaneseq
  %v635 = vshrl.u32 %v634, 7
  %v636 = vsub.s32 3, %v635
  %v637 = vrot.slane %v620, %v636
  %v642 = vmul.f32 %v617, %v625
  %v643 = vmul.f32 %v616, %v629
  %v644 = vmul.f32 %v615, %v633
  %v645 = vmul.f32 %v618, %v637
  %647 = vset.pattern.permute.xlu0 0
  %648 = vperm.xlu0 %647, %v604
  %v649 = vpop.permute.xlu0 %648
  %652 = vset.pattern.permute.xlu0 0
  %653 = vperm.xlu0 %652, %v605
  %v654 = vpop.permute.xlu0 %653
  %v656 = vlaneseq
  %v657 = vshrl.u32 %v656, 7
  %v658 = vsub.s32 0, %v657
  %v659 = vrot.slane %v642, %v658
  %v660 = vlaneseq
  %v661 = vshrl.u32 %v660, 7
  %v662 = vsub.s32 0, %v661
  %v663 = vrot.slane %v643, %v662
  %v664 = vlaneseq
  %v665 = vshrl.u32 %v664, 7
  %v666 = vsub.s32 0, %v665
  %v667 = vrot.slane %v644, %v666
  %v668 = vlaneseq
  %v669 = vshrl.u32 %v668, 7
  %v670 = vsub.s32 0, %v669
  %v671 = vrot.slane %v645, %v670
  %v672 = vmul.f32 %v649, %v659
  %v673 = vmul.f32 %v649, %v663
  %v674 = vmul.f32 %v649, %v667
  %v675 = vmul.f32 %v649, %v671
  %v676 = vmul.f32 %v654, %v659
  %v677 = vmul.f32 %v654, %v663
  %v678 = vmul.f32 %v654, %v667
  %v679 = vmul.f32 %v654, %v671
  %v680 = vadd.f32 %v595, %v672
  %v681 = vadd.f32 %v596, %v673
  %v682 = vadd.f32 %v597, %v674
  %v683 = vadd.f32 %v598, %v675
  %v684 = vadd.f32 %v599, %v676
  %v685 = vadd.f32 %v600, %v677
  %v686 = vadd.f32 %v601, %v678
  %v687 = vadd.f32 %v602, %v679
  %s688 = scalar_lea.vmem %s2, 128
  %v689 = vld [vmem:[%s688] sm:$0xff]
  %v690 = vld [vmem:[%s688 + $0x8] sm:$0xff]
  %691 = vrot.lane.b32.xlu0 %v49, 111
  %v692 = vpop.permute.xlu0 %691
  %693 = vrot.lane.b32.xlu0 %v53, 111
  %v694 = vpop.permute.xlu0 %693
  %695 = vrot.lane.b32.xlu0 %v57, 111
  %v696 = vpop.permute.xlu0 %695
  %697 = vrot.lane.b32.xlu0 %v61, 111
  %v698 = vpop.permute.xlu0 %697
  %vm699 = vcmp.lt.s32.totalorder %v75, 111
  %v700 = vsel %vm699, %v696, %v698
  %v701 = vsel %vm699, %v694, %v696
  %v702 = vsel %vm699, %v692, %v694
  %v703 = vsel %vm699, %v698, %v692
  %s704 = scalar_lea.vmem %s1, 32
  %v705 = vld [vmem:[%s704] ss:$8 sm:$0xf]
  %v707 = vlaneseq
  %v708 = vshrl.u32 %v707, 7
  %v709 = vsub.s32 0, %v708
  %v710 = vrot.slane %v705, %v709
  %v711 = vlaneseq
  %v712 = vshrl.u32 %v711, 7
  %v713 = vsub.s32 1, %v712
  %v714 = vrot.slane %v705, %v713
  %v715 = vlaneseq
  %v716 = vshrl.u32 %v715, 7
  %v717 = vsub.s32 2, %v716
  %v718 = vrot.slane %v705, %v717
  %v719 = vlaneseq
  %v720 = vshrl.u32 %v719, 7
  %v721 = vsub.s32 3, %v720
  %v722 = vrot.slane %v705, %v721
  %v727 = vmul.f32 %v702, %v710
  %v728 = vmul.f32 %v701, %v714
  %v729 = vmul.f32 %v700, %v718
  %v730 = vmul.f32 %v703, %v722
  %732 = vset.pattern.permute.xlu0 0
  %733 = vperm.xlu0 %732, %v689
  %v734 = vpop.permute.xlu0 %733
  %737 = vset.pattern.permute.xlu0 0
  %738 = vperm.xlu0 %737, %v690
  %v739 = vpop.permute.xlu0 %738
  %v741 = vlaneseq
  %v742 = vshrl.u32 %v741, 7
  %v743 = vsub.s32 0, %v742
  %v744 = vrot.slane %v727, %v743
  %v745 = vlaneseq
  %v746 = vshrl.u32 %v745, 7
  %v747 = vsub.s32 0, %v746
  %v748 = vrot.slane %v728, %v747
  %v749 = vlaneseq
  %v750 = vshrl.u32 %v749, 7
  %v751 = vsub.s32 0, %v750
  %v752 = vrot.slane %v729, %v751
  %v753 = vlaneseq
  %v754 = vshrl.u32 %v753, 7
  %v755 = vsub.s32 0, %v754
  %v756 = vrot.slane %v730, %v755
  %v757 = vmul.f32 %v734, %v744
  %v758 = vmul.f32 %v734, %v748
  %v759 = vmul.f32 %v734, %v752
  %v760 = vmul.f32 %v734, %v756
  %v761 = vmul.f32 %v739, %v744
  %v762 = vmul.f32 %v739, %v748
  %v763 = vmul.f32 %v739, %v752
  %v764 = vmul.f32 %v739, %v756
  %v765 = vadd.f32 %v680, %v757
  %v766 = vadd.f32 %v681, %v758
  %v767 = vadd.f32 %v682, %v759
  %v768 = vadd.f32 %v683, %v760
  %v769 = vadd.f32 %v684, %v761
  %v770 = vadd.f32 %v685, %v762
  %v771 = vadd.f32 %v686, %v763
  %v772 = vadd.f32 %v687, %v764
  %v773 = vld [vmem:[%s3] sm:$0xff]
  %v774 = vld [vmem:[%s3 + $0x8] sm:$0xff]
  %776 = vset.pattern.permute.xlu0 0
  %777 = vperm.xlu0 %776, %v773
  %v778 = vpop.permute.xlu0 %777
  %781 = vset.pattern.permute.xlu0 0
  %782 = vperm.xlu0 %781, %v774
  %v783 = vpop.permute.xlu0 %782
  %v785 = vadd.f32 %v765, %v778
  %v786 = vadd.f32 %v766, %v778
  %v787 = vadd.f32 %v767, %v778
  %v788 = vadd.f32 %v768, %v778
  %v789 = vadd.f32 %v769, %v783
  %v790 = vadd.f32 %v770, %v783
  %v791 = vadd.f32 %v771, %v783
  %v792 = vadd.f32 %v772, %v783
  %v793 = vmax.f32 %v785, 0.0
  %v794 = vmax.f32 %v786, 0.0
  %v795 = vmax.f32 %v787, 0.0
  %v796 = vmax.f32 %v788, 0.0
  %v797 = vmax.f32 %v789, 0.0
  %v798 = vmax.f32 %v790, 0.0
  %v799 = vmax.f32 %v791, 0.0
  %v800 = vmax.f32 %v792, 0.0
  %801 = vrot.lane.b32.xlu0 %v793, 17
  %v802 = vpop.permute.xlu0 %801
  %803 = vrot.lane.b32.xlu0 %v797, 17
  %v804 = vpop.permute.xlu0 %803
  %805 = vrot.lane.b32.xlu0 %v794, 17
  %v806 = vpop.permute.xlu0 %805
  %807 = vrot.lane.b32.xlu0 %v798, 17
  %v808 = vpop.permute.xlu0 %807
  %809 = vrot.lane.b32.xlu0 %v795, 17
  %v810 = vpop.permute.xlu0 %809
  %811 = vrot.lane.b32.xlu0 %v799, 17
  %v812 = vpop.permute.xlu0 %811
  %813 = vrot.lane.b32.xlu0 %v796, 17
  %v814 = vpop.permute.xlu0 %813
  %815 = vrot.lane.b32.xlu0 %v800, 17
  %v816 = vpop.permute.xlu0 %815
  %v817 = vsel %vm76, %v810, %v814
  %v818 = vsel %vm76, %v812, %v816
  %v819 = vsel %vm76, %v806, %v810
  %v820 = vsel %vm76, %v808, %v812
  %v821 = vsel %vm76, %v802, %v806
  %v822 = vsel %vm76, %v804, %v808
  %v823 = vsel %vm76, %v814, %v802
  %v824 = vsel %vm76, %v816, %v804
  %v825 = vmul.f32 %v823, %v86
  %v826 = vmul.f32 %v821, %v90
  %v827 = vmul.f32 %v819, %v94
  %v828 = vmul.f32 %v817, %v98
  %v829 = vmul.f32 %v824, %v86
  %v830 = vmul.f32 %v822, %v90
  %v831 = vmul.f32 %v820, %v94
  %v832 = vmul.f32 %v818, %v98
  %v833 = vpack.c.bf16 %v829, %v825
  %v834 = vpack.c.bf16 %v830, %v826
  %v835 = vpack.c.bf16 %v831, %v827
  %v836 = vpack.c.bf16 %v832, %v828
  %v841 = vunpack.c.l.b16 %v833
  %v842 = vunpack.c.l.b16 %v834
  %v843 = vunpack.c.l.b16 %v835
  %v844 = vunpack.c.l.b16 %v836
  %v845 = vunpack.c.h.b16 %v833
  %v846 = vunpack.c.h.b16 %v834
  %v847 = vunpack.c.h.b16 %v835
  %v848 = vunpack.c.h.b16 %v836
  %v849 = vpack.c.b16 %v842, %v841
  %v850 = vpack.c.b16 %v844, %v843
  %v851 = vpack.c.b16 %v846, %v845
  %v852 = vpack.c.b16 %v848, %v847
  %857 = vst [vmem:[#allocation2] sm:$0xff] %v849
  %858 = vst [vmem:[#allocation2 + $0x8] sm:$0xff] %v850
  %859 = vst [vmem:[#allocation2 + $0x10] sm:$0xff] %v851
  %860 = vst [vmem:[#allocation2 + $0x18] sm:$0xff] %v852
  %861 = vrot.lane.b32.xlu0 %v793, 16
  %v862 = vpop.permute.xlu0 %861
  %863 = vrot.lane.b32.xlu0 %v797, 16
  %v864 = vpop.permute.xlu0 %863
  %865 = vrot.lane.b32.xlu0 %v794, 16
  %v866 = vpop.permute.xlu0 %865
  %867 = vrot.lane.b32.xlu0 %v798, 16
  %v868 = vpop.permute.xlu0 %867
  %869 = vrot.lane.b32.xlu0 %v795, 16
  %v870 = vpop.permute.xlu0 %869
  %871 = vrot.lane.b32.xlu0 %v799, 16
  %v872 = vpop.permute.xlu0 %871
  %873 = vrot.lane.b32.xlu0 %v796, 16
  %v874 = vpop.permute.xlu0 %873
  %875 = vrot.lane.b32.xlu0 %v800, 16
  %v876 = vpop.permute.xlu0 %875
  %v877 = vsel %vm160, %v870, %v874
  %v878 = vsel %vm160, %v872, %v876
  %v879 = vsel %vm160, %v866, %v870
  %v880 = vsel %vm160, %v868, %v872
  %v881 = vsel %vm160, %v862, %v866
  %v882 = vsel %vm160, %v864, %v868
  %v883 = vsel %vm160, %v874, %v862
  %v884 = vsel %vm160, %v876, %v864
  %v885 = vld [vmem:[%s165] ss:$8 sm:$0xf]
  %v887 = vlaneseq
  %v888 = vshrl.u32 %v887, 7
  %v889 = vsub.s32 0, %v888
  %v890 = vrot.slane %v885, %v889
  %v891 = vlaneseq
  %v892 = vshrl.u32 %v891, 7
  %v893 = vsub.s32 1, %v892
  %v894 = vrot.slane %v885, %v893
  %v895 = vlaneseq
  %v896 = vshrl.u32 %v895, 7
  %v897 = vsub.s32 2, %v896
  %v898 = vrot.slane %v885, %v897
  %v899 = vlaneseq
  %v900 = vshrl.u32 %v899, 7
  %v901 = vsub.s32 3, %v900
  %v902 = vrot.slane %v885, %v901
  %v907 = vmul.f32 %v883, %v890
  %v908 = vmul.f32 %v881, %v894
  %v909 = vmul.f32 %v879, %v898
  %v910 = vmul.f32 %v877, %v902
  %v911 = vmul.f32 %v884, %v890
  %v912 = vmul.f32 %v882, %v894
  %v913 = vmul.f32 %v880, %v898
  %v914 = vmul.f32 %v878, %v902
  %v915 = vpack.c.bf16 %v911, %v907
  %v916 = vpack.c.bf16 %v912, %v908
  %v917 = vpack.c.bf16 %v913, %v909
  %v918 = vpack.c.bf16 %v914, %v910
  %v923 = vunpack.c.l.b16 %v915
  %v924 = vunpack.c.l.b16 %v916
  %v925 = vunpack.c.l.b16 %v917
  %v926 = vunpack.c.l.b16 %v918
  %v927 = vunpack.c.h.b16 %v915
  %v928 = vunpack.c.h.b16 %v916
  %v929 = vunpack.c.h.b16 %v917
  %v930 = vunpack.c.h.b16 %v918
  %v931 = vpack.c.b16 %v924, %v923
  %v932 = vpack.c.b16 %v926, %v925
  %v933 = vpack.c.b16 %v928, %v927
  %v934 = vpack.c.b16 %v930, %v929
  %939 = vst [vmem:[#allocation2 + $0x20] sm:$0xff] %v931
  %940 = vst [vmem:[#allocation2 + $0x28] sm:$0xff] %v932
  %941 = vst [vmem:[#allocation2 + $0x30] sm:$0xff] %v933
  %942 = vst [vmem:[#allocation2 + $0x38] sm:$0xff] %v934
  %943 = vrot.lane.b32.xlu0 %v793, 15
  %v944 = vpop.permute.xlu0 %943
  %945 = vrot.lane.b32.xlu0 %v797, 15
  %v946 = vpop.permute.xlu0 %945
  %947 = vrot.lane.b32.xlu0 %v794, 15
  %v948 = vpop.permute.xlu0 %947
  %949 = vrot.lane.b32.xlu0 %v798, 15
  %v950 = vpop.permute.xlu0 %949
  %951 = vrot.lane.b32.xlu0 %v795, 15
  %v952 = vpop.permute.xlu0 %951
  %953 = vrot.lane.b32.xlu0 %v799, 15
  %v954 = vpop.permute.xlu0 %953
  %955 = vrot.lane.b32.xlu0 %v796, 15
  %v956 = vpop.permute.xlu0 %955
  %957 = vrot.lane.b32.xlu0 %v800, 15
  %v958 = vpop.permute.xlu0 %957
  %v959 = vsel %vm245, %v952, %v956
  %v960 = vsel %vm245, %v954, %v958
  %v961 = vsel %vm245, %v948, %v952
  %v962 = vsel %vm245, %v950, %v954
  %v963 = vsel %vm245, %v944, %v948
  %v964 = vsel %vm245, %v946, %v950
  %v965 = vsel %vm245, %v956, %v944
  %v966 = vsel %vm245, %v958, %v946
  %v967 = vld [vmem:[%s250] ss:$8 sm:$0xf]
  %v969 = vlaneseq
  %v970 = vshrl.u32 %v969, 7
  %v971 = vsub.s32 0, %v970
  %v972 = vrot.slane %v967, %v971
  %v973 = vlaneseq
  %v974 = vshrl.u32 %v973, 7
  %v975 = vsub.s32 1, %v974
  %v976 = vrot.slane %v967, %v975
  %v977 = vlaneseq
  %v978 = vshrl.u32 %v977, 7
  %v979 = vsub.s32 2, %v978
  %v980 = vrot.slane %v967, %v979
  %v981 = vlaneseq
  %v982 = vshrl.u32 %v981, 7
  %v983 = vsub.s32 3, %v982
  %v984 = vrot.slane %v967, %v983
  %v989 = vmul.f32 %v965, %v972
  %v990 = vmul.f32 %v963, %v976
  %v991 = vmul.f32 %v961, %v980
  %v992 = vmul.f32 %v959, %v984
  %v993 = vmul.f32 %v966, %v972
  %v994 = vmul.f32 %v964, %v976
  %v995 = vmul.f32 %v962, %v980
  %v996 = vmul.f32 %v960, %v984
  %v997 = vpack.c.bf16 %v993, %v989
  %v998 = vpack.c.bf16 %v994, %v990
  %v999 = vpack.c.bf16 %v995, %v991
  %v1000 = vpack.c.bf16 %v996, %v992
  %v1005 = vunpack.c.l.b16 %v997
  %v1006 = vunpack.c.l.b16 %v998
  %v1007 = vunpack.c.l.b16 %v999
  %v1008 = vunpack.c.l.b16 %v1000
  %v1009 = vunpack.c.h.b16 %v997
  %v1010 = vunpack.c.h.b16 %v998
  %v1011 = vunpack.c.h.b16 %v999
  %v1012 = vunpack.c.h.b16 %v1000
  %v1013 = vpack.c.b16 %v1006, %v1005
  %v1014 = vpack.c.b16 %v1008, %v1007
  %v1015 = vpack.c.b16 %v1010, %v1009
  %v1016 = vpack.c.b16 %v1012, %v1011
  %1021 = vst [vmem:[#allocation2 + $0x40] sm:$0xff] %v1013
  %1022 = vst [vmem:[#allocation2 + $0x48] sm:$0xff] %v1014
  %1023 = vst [vmem:[#allocation2 + $0x50] sm:$0xff] %v1015
  %1024 = vst [vmem:[#allocation2 + $0x58] sm:$0xff] %v1016
  %1025 = vrot.lane.b32.xlu0 %v793, 1
  %v1026 = vpop.permute.xlu0 %1025
  %1027 = vrot.lane.b32.xlu0 %v797, 1
  %v1028 = vpop.permute.xlu0 %1027
  %1029 = vrot.lane.b32.xlu0 %v794, 1
  %v1030 = vpop.permute.xlu0 %1029
  %1031 = vrot.lane.b32.xlu0 %v798, 1
  %v1032 = vpop.permute.xlu0 %1031
  %1033 = vrot.lane.b32.xlu0 %v795, 1
  %v1034 = vpop.permute.xlu0 %1033
  %1035 = vrot.lane.b32.xlu0 %v799, 1
  %v1036 = vpop.permute.xlu0 %1035
  %1037 = vrot.lane.b32.xlu0 %v796, 1
  %v1038 = vpop.permute.xlu0 %1037
  %1039 = vrot.lane.b32.xlu0 %v800, 1
  %v1040 = vpop.permute.xlu0 %1039
  %v1041 = vsel %vm330, %v1034, %v1038
  %v1042 = vsel %vm330, %v1036, %v1040
  %v1043 = vsel %vm330, %v1030, %v1034
  %v1044 = vsel %vm330, %v1032, %v1036
  %v1045 = vsel %vm330, %v1026, %v1030
  %v1046 = vsel %vm330, %v1028, %v1032
  %v1047 = vsel %vm330, %v1038, %v1026
  %v1048 = vsel %vm330, %v1040, %v1028
  %v1049 = vld [vmem:[%s335] ss:$8 sm:$0xf]
  %v1051 = vlaneseq
  %v1052 = vshrl.u32 %v1051, 7
  %v1053 = vsub.s32 0, %v1052
  %v1054 = vrot.slane %v1049, %v1053
  %v1055 = vlaneseq
  %v1056 = vshrl.u32 %v1055, 7
  %v1057 = vsub.s32 1, %v1056
  %v1058 = vrot.slane %v1049, %v1057
  %v1059 = vlaneseq
  %v1060 = vshrl.u32 %v1059, 7
  %v1061 = vsub.s32 2, %v1060
  %v1062 = vrot.slane %v1049, %v1061
  %v1063 = vlaneseq
  %v1064 = vshrl.u32 %v1063, 7
  %v1065 = vsub.s32 3, %v1064
  %v1066 = vrot.slane %v1049, %v1065
  %v1071 = vmul.f32 %v1047, %v1054
  %v1072 = vmul.f32 %v1045, %v1058
  %v1073 = vmul.f32 %v1043, %v1062
  %v1074 = vmul.f32 %v1041, %v1066
  %v1075 = vmul.f32 %v1048, %v1054
  %v1076 = vmul.f32 %v1046, %v1058
  %v1077 = vmul.f32 %v1044, %v1062
  %v1078 = vmul.f32 %v1042, %v1066
  %v1079 = vpack.c.bf16 %v1075, %v1071
  %v1080 = vpack.c.bf16 %v1076, %v1072
  %v1081 = vpack.c.bf16 %v1077, %v1073
  %v1082 = vpack.c.bf16 %v1078, %v1074
  %v1087 = vunpack.c.l.b16 %v1079
  %v1088 = vunpack.c.l.b16 %v1080
  %v1089 = vunpack.c.l.b16 %v1081
  %v1090 = vunpack.c.l.b16 %v1082
  %v1091 = vunpack.c.h.b16 %v1079
  %v1092 = vunpack.c.h.b16 %v1080
  %v1093 = vunpack.c.h.b16 %v1081
  %v1094 = vunpack.c.h.b16 %v1082
  %v1095 = vpack.c.b16 %v1088, %v1087
  %v1096 = vpack.c.b16 %v1090, %v1089
  %v1097 = vpack.c.b16 %v1092, %v1091
  %v1098 = vpack.c.b16 %v1094, %v1093
  %1103 = vst [vmem:[#allocation2 + $0x60] sm:$0xff] %v1095
  %1104 = vst [vmem:[#allocation2 + $0x68] sm:$0xff] %v1096
  %1105 = vst [vmem:[#allocation2 + $0x70] sm:$0xff] %v1097
  %1106 = vst [vmem:[#allocation2 + $0x78] sm:$0xff] %v1098
  %v1107 = vpack.c.bf16 %v797, %v793
  %v1108 = vpack.c.bf16 %v798, %v794
  %v1109 = vpack.c.bf16 %v799, %v795
  %v1110 = vpack.c.bf16 %v800, %v796
  %v1115 = vunpack.c.l.b16 %v1107
  %v1116 = vunpack.c.l.b16 %v1108
  %v1117 = vunpack.c.l.b16 %v1109
  %v1118 = vunpack.c.l.b16 %v1110
  %v1119 = vunpack.c.h.b16 %v1107
  %v1120 = vunpack.c.h.b16 %v1108
  %v1121 = vunpack.c.h.b16 %v1109
  %v1122 = vunpack.c.h.b16 %v1110
  %v1123 = vpack.c.b16 %v1116, %v1115
  %v1124 = vpack.c.b16 %v1118, %v1117
  %v1125 = vpack.c.b16 %v1120, %v1119
  %v1126 = vpack.c.b16 %v1122, %v1121
  %1131 = vst [vmem:[#allocation2 + $0x80] sm:$0xff] %v1123
  %1132 = vst [vmem:[#allocation2 + $0x88] sm:$0xff] %v1124
  %1133 = vst [vmem:[#allocation2 + $0x90] sm:$0xff] %v1125
  %1134 = vst [vmem:[#allocation2 + $0x98] sm:$0xff] %v1126
  %1135 = vrot.lane.b32.xlu0 %v793, 127
  %v1136 = vpop.permute.xlu0 %1135
  %1137 = vrot.lane.b32.xlu0 %v797, 127
  %v1138 = vpop.permute.xlu0 %1137
  %1139 = vrot.lane.b32.xlu0 %v794, 127
  %v1140 = vpop.permute.xlu0 %1139
  %1141 = vrot.lane.b32.xlu0 %v798, 127
  %v1142 = vpop.permute.xlu0 %1141
  %1143 = vrot.lane.b32.xlu0 %v795, 127
  %v1144 = vpop.permute.xlu0 %1143
  %1145 = vrot.lane.b32.xlu0 %v799, 127
  %v1146 = vpop.permute.xlu0 %1145
  %1147 = vrot.lane.b32.xlu0 %v796, 127
  %v1148 = vpop.permute.xlu0 %1147
  %1149 = vrot.lane.b32.xlu0 %v800, 127
  %v1150 = vpop.permute.xlu0 %1149
  %v1151 = vsel %vm444, %v1144, %v1148
  %v1152 = vsel %vm444, %v1146, %v1150
  %v1153 = vsel %vm444, %v1140, %v1144
  %v1154 = vsel %vm444, %v1142, %v1146
  %v1155 = vsel %vm444, %v1136, %v1140
  %v1156 = vsel %vm444, %v1138, %v1142
  %v1157 = vsel %vm444, %v1148, %v1136
  %v1158 = vsel %vm444, %v1150, %v1138
  %v1159 = vld [vmem:[%s449] ss:$8 sm:$0xf]
  %v1161 = vlaneseq
  %v1162 = vshrl.u32 %v1161, 7
  %v1163 = vsub.s32 0, %v1162
  %v1164 = vrot.slane %v1159, %v1163
  %v1165 = vlaneseq
  %v1166 = vshrl.u32 %v1165, 7
  %v1167 = vsub.s32 1, %v1166
  %v1168 = vrot.slane %v1159, %v1167
  %v1169 = vlaneseq
  %v1170 = vshrl.u32 %v1169, 7
  %v1171 = vsub.s32 2, %v1170
  %v1172 = vrot.slane %v1159, %v1171
  %v1173 = vlaneseq
  %v1174 = vshrl.u32 %v1173, 7
  %v1175 = vsub.s32 3, %v1174
  %v1176 = vrot.slane %v1159, %v1175
  %v1181 = vmul.f32 %v1155, %v1164
  %v1182 = vmul.f32 %v1153, %v1168
  %v1183 = vmul.f32 %v1151, %v1172
  %v1184 = vmul.f32 %v1157, %v1176
  %v1185 = vmul.f32 %v1156, %v1164
  %v1186 = vmul.f32 %v1154, %v1168
  %v1187 = vmul.f32 %v1152, %v1172
  %v1188 = vmul.f32 %v1158, %v1176
  %v1189 = vpack.c.bf16 %v1185, %v1181
  %v1190 = vpack.c.bf16 %v1186, %v1182
  %v1191 = vpack.c.bf16 %v1187, %v1183
  %v1192 = vpack.c.bf16 %v1188, %v1184
  %v1197 = vunpack.c.l.b16 %v1189
  %v1198 = vunpack.c.l.b16 %v1190
  %v1199 = vunpack.c.l.b16 %v1191
  %v1200 = vunpack.c.l.b16 %v1192
  %v1201 = vunpack.c.h.b16 %v1189
  %v1202 = vunpack.c.h.b16 %v1190
  %v1203 = vunpack.c.h.b16 %v1191
  %v1204 = vunpack.c.h.b16 %v1192
  %v1205 = vpack.c.b16 %v1198, %v1197
  %v1206 = vpack.c.b16 %v1200, %v1199
  %v1207 = vpack.c.b16 %v1202, %v1201
  %v1208 = vpack.c.b16 %v1204, %v1203
  %1213 = vst [vmem:[#allocation2 + $0xa0] sm:$0xff] %v1205
  %1214 = vst [vmem:[#allocation2 + $0xa8] sm:$0xff] %v1206
  %1215 = vst [vmem:[#allocation2 + $0xb0] sm:$0xff] %v1207
  %1216 = vst [vmem:[#allocation2 + $0xb8] sm:$0xff] %v1208
  %1217 = vrot.lane.b32.xlu0 %v793, 113
  %v1218 = vpop.permute.xlu0 %1217
  %1219 = vrot.lane.b32.xlu0 %v797, 113
  %v1220 = vpop.permute.xlu0 %1219
  %1221 = vrot.lane.b32.xlu0 %v794, 113
  %v1222 = vpop.permute.xlu0 %1221
  %1223 = vrot.lane.b32.xlu0 %v798, 113
  %v1224 = vpop.permute.xlu0 %1223
  %1225 = vrot.lane.b32.xlu0 %v795, 113
  %v1226 = vpop.permute.xlu0 %1225
  %1227 = vrot.lane.b32.xlu0 %v799, 113
  %v1228 = vpop.permute.xlu0 %1227
  %1229 = vrot.lane.b32.xlu0 %v796, 113
  %v1230 = vpop.permute.xlu0 %1229
  %1231 = vrot.lane.b32.xlu0 %v800, 113
  %v1232 = vpop.permute.xlu0 %1231
  %v1233 = vsel %vm529, %v1226, %v1230
  %v1234 = vsel %vm529, %v1228, %v1232
  %v1235 = vsel %vm529, %v1222, %v1226
  %v1236 = vsel %vm529, %v1224, %v1228
  %v1237 = vsel %vm529, %v1218, %v1222
  %v1238 = vsel %vm529, %v1220, %v1224
  %v1239 = vsel %vm529, %v1230, %v1218
  %v1240 = vsel %vm529, %v1232, %v1220
  %v1241 = vld [vmem:[%s534] ss:$8 sm:$0xf]
  %v1243 = vlaneseq
  %v1244 = vshrl.u32 %v1243, 7
  %v1245 = vsub.s32 0, %v1244
  %v1246 = vrot.slane %v1241, %v1245
  %v1247 = vlaneseq
  %v1248 = vshrl.u32 %v1247, 7
  %v1249 = vsub.s32 1, %v1248
  %v1250 = vrot.slane %v1241, %v1249
  %v1251 = vlaneseq
  %v1252 = vshrl.u32 %v1251, 7
  %v1253 = vsub.s32 2, %v1252
  %v1254 = vrot.slane %v1241, %v1253
  %v1255 = vlaneseq
  %v1256 = vshrl.u32 %v1255, 7
  %v1257 = vsub.s32 3, %v1256
  %v1258 = vrot.slane %v1241, %v1257
  %v1263 = vmul.f32 %v1237, %v1246
  %v1264 = vmul.f32 %v1235, %v1250
  %v1265 = vmul.f32 %v1233, %v1254
  %v1266 = vmul.f32 %v1239, %v1258
  %v1267 = vmul.f32 %v1238, %v1246
  %v1268 = vmul.f32 %v1236, %v1250
  %v1269 = vmul.f32 %v1234, %v1254
  %v1270 = vmul.f32 %v1240, %v1258
  %v1271 = vpack.c.bf16 %v1267, %v1263
  %v1272 = vpack.c.bf16 %v1268, %v1264
  %v1273 = vpack.c.bf16 %v1269, %v1265
  %v1274 = vpack.c.bf16 %v1270, %v1266
  %v1279 = vunpack.c.l.b16 %v1271
  %v1280 = vunpack.c.l.b16 %v1272
  %v1281 = vunpack.c.l.b16 %v1273
  %v1282 = vunpack.c.l.b16 %v1274
  %v1283 = vunpack.c.h.b16 %v1271
  %v1284 = vunpack.c.h.b16 %v1272
  %v1285 = vunpack.c.h.b16 %v1273
  %v1286 = vunpack.c.h.b16 %v1274
  %v1287 = vpack.c.b16 %v1280, %v1279
  %v1288 = vpack.c.b16 %v1282, %v1281
  %v1289 = vpack.c.b16 %v1284, %v1283
  %v1290 = vpack.c.b16 %v1286, %v1285
  %1295 = vst [vmem:[#allocation2 + $0xc0] sm:$0xff] %v1287
  %1296 = vst [vmem:[#allocation2 + $0xc8] sm:$0xff] %v1288
  %1297 = vst [vmem:[#allocation2 + $0xd0] sm:$0xff] %v1289
  %1298 = vst [vmem:[#allocation2 + $0xd8] sm:$0xff] %v1290
  %1299 = vrot.lane.b32.xlu0 %v793, 112
  %v1300 = vpop.permute.xlu0 %1299
  %1301 = vrot.lane.b32.xlu0 %v797, 112
  %v1302 = vpop.permute.xlu0 %1301
  %1303 = vrot.lane.b32.xlu0 %v794, 112
  %v1304 = vpop.permute.xlu0 %1303
  %1305 = vrot.lane.b32.xlu0 %v798, 112
  %v1306 = vpop.permute.xlu0 %1305
  %1307 = vrot.lane.b32.xlu0 %v795, 112
  %v1308 = vpop.permute.xlu0 %1307
  %1309 = vrot.lane.b32.xlu0 %v799, 112
  %v1310 = vpop.permute.xlu0 %1309
  %1311 = vrot.lane.b32.xlu0 %v796, 112
  %v1312 = vpop.permute.xlu0 %1311
  %1313 = vrot.lane.b32.xlu0 %v800, 112
  %v1314 = vpop.permute.xlu0 %1313
  %v1315 = vsel %vm614, %v1308, %v1312
  %v1316 = vsel %vm614, %v1310, %v1314
  %v1317 = vsel %vm614, %v1304, %v1308
  %v1318 = vsel %vm614, %v1306, %v1310
  %v1319 = vsel %vm614, %v1300, %v1304
  %v1320 = vsel %vm614, %v1302, %v1306
  %v1321 = vsel %vm614, %v1312, %v1300
  %v1322 = vsel %vm614, %v1314, %v1302
  %v1323 = vld [vmem:[%s619] ss:$8 sm:$0xf]
  %v1325 = vlaneseq
  %v1326 = vshrl.u32 %v1325, 7
  %v1327 = vsub.s32 0, %v1326
  %v1328 = vrot.slane %v1323, %v1327
  %v1329 = vlaneseq
  %v1330 = vshrl.u32 %v1329, 7
  %v1331 = vsub.s32 1, %v1330
  %v1332 = vrot.slane %v1323, %v1331
  %v1333 = vlaneseq
  %v1334 = vshrl.u32 %v1333, 7
  %v1335 = vsub.s32 2, %v1334
  %v1336 = vrot.slane %v1323, %v1335
  %v1337 = vlaneseq
  %v1338 = vshrl.u32 %v1337, 7
  %v1339 = vsub.s32 3, %v1338
  %v1340 = vrot.slane %v1323, %v1339
  %v1345 = vmul.f32 %v1319, %v1328
  %v1346 = vmul.f32 %v1317, %v1332
  %v1347 = vmul.f32 %v1315, %v1336
  %v1348 = vmul.f32 %v1321, %v1340
  %v1349 = vmul.f32 %v1320, %v1328
  %v1350 = vmul.f32 %v1318, %v1332
  %v1351 = vmul.f32 %v1316, %v1336
  %v1352 = vmul.f32 %v1322, %v1340
  %v1353 = vpack.c.bf16 %v1349, %v1345
  %v1354 = vpack.c.bf16 %v1350, %v1346
  %v1355 = vpack.c.bf16 %v1351, %v1347
  %v1356 = vpack.c.bf16 %v1352, %v1348
  %v1361 = vunpack.c.l.b16 %v1353
  %v1362 = vunpack.c.l.b16 %v1354
  %v1363 = vunpack.c.l.b16 %v1355
  %v1364 = vunpack.c.l.b16 %v1356
  %v1365 = vunpack.c.h.b16 %v1353
  %v1366 = vunpack.c.h.b16 %v1354
  %v1367 = vunpack.c.h.b16 %v1355
  %v1368 = vunpack.c.h.b16 %v1356
  %v1369 = vpack.c.b16 %v1362, %v1361
  %v1370 = vpack.c.b16 %v1364, %v1363
  %v1371 = vpack.c.b16 %v1366, %v1365
  %v1372 = vpack.c.b16 %v1368, %v1367
  %1377 = vst [vmem:[#allocation2 + $0xe0] sm:$0xff] %v1369
  %1378 = vst [vmem:[#allocation2 + $0xe8] sm:$0xff] %v1370
  %1379 = vst [vmem:[#allocation2 + $0xf0] sm:$0xff] %v1371
  %1380 = vst [vmem:[#allocation2 + $0xf8] sm:$0xff] %v1372
  %1381 = vrot.lane.b32.xlu0 %v793, 111
  %v1382 = vpop.permute.xlu0 %1381
  %1383 = vrot.lane.b32.xlu0 %v797, 111
  %v1384 = vpop.permute.xlu0 %1383
  %1385 = vrot.lane.b32.xlu0 %v794, 111
  %v1386 = vpop.permute.xlu0 %1385
  %1387 = vrot.lane.b32.xlu0 %v798, 111
  %v1388 = vpop.permute.xlu0 %1387
  %1389 = vrot.lane.b32.xlu0 %v795, 111
  %v1390 = vpop.permute.xlu0 %1389
  %1391 = vrot.lane.b32.xlu0 %v799, 111
  %v1392 = vpop.permute.xlu0 %1391
  %1393 = vrot.lane.b32.xlu0 %v796, 111
  %v1394 = vpop.permute.xlu0 %1393
  %1395 = vrot.lane.b32.xlu0 %v800, 111
  %v1396 = vpop.permute.xlu0 %1395
  %v1397 = vsel %vm699, %v1390, %v1394
  %v1398 = vsel %vm699, %v1392, %v1396
  %v1399 = vsel %vm699, %v1386, %v1390
  %v1400 = vsel %vm699, %v1388, %v1392
  %v1401 = vsel %vm699, %v1382, %v1386
  %v1402 = vsel %vm699, %v1384, %v1388
  %v1403 = vsel %vm699, %v1394, %v1382
  %v1404 = vsel %vm699, %v1396, %v1384
  %v1405 = vld [vmem:[%s704] ss:$8 sm:$0xf]
  %v1407 = vlaneseq
  %v1408 = vshrl.u32 %v1407, 7
  %v1409 = vsub.s32 0, %v1408
  %v1410 = vrot.slane %v1405, %v1409
  %v1411 = vlaneseq
  %v1412 = vshrl.u32 %v1411, 7
  %v1413 = vsub.s32 1, %v1412
  %v1414 = vrot.slane %v1405, %v1413
  %v1415 = vlaneseq
  %v1416 = vshrl.u32 %v1415, 7
  %v1417 = vsub.s32 2, %v1416
  %v1418 = vrot.slane %v1405, %v1417
  %v1419 = vlaneseq
  %v1420 = vshrl.u32 %v1419, 7
  %v1421 = vsub.s32 3, %v1420
  %v1422 = vrot.slane %v1405, %v1421
  %v1427 = vmul.f32 %v1401, %v1410
  %v1428 = vmul.f32 %v1399, %v1414
  %v1429 = vmul.f32 %v1397, %v1418
  %v1430 = vmul.f32 %v1403, %v1422
  %v1431 = vmul.f32 %v1402, %v1410
  %v1432 = vmul.f32 %v1400, %v1414
  %v1433 = vmul.f32 %v1398, %v1418
  %v1434 = vmul.f32 %v1404, %v1422
  %v1435 = vpack.c.bf16 %v1431, %v1427
  %v1436 = vpack.c.bf16 %v1432, %v1428
  %v1437 = vpack.c.bf16 %v1433, %v1429
  %v1438 = vpack.c.bf16 %v1434, %v1430
  %v1443 = vunpack.c.l.b16 %v1435
  %v1444 = vunpack.c.l.b16 %v1436
  %v1445 = vunpack.c.l.b16 %v1437
  %v1446 = vunpack.c.l.b16 %v1438
  %v1447 = vunpack.c.h.b16 %v1435
  %v1448 = vunpack.c.h.b16 %v1436
  %v1449 = vunpack.c.h.b16 %v1437
  %v1450 = vunpack.c.h.b16 %v1438
  %v1451 = vpack.c.b16 %v1444, %v1443
  %v1452 = vpack.c.b16 %v1446, %v1445
  %v1453 = vpack.c.b16 %v1448, %v1447
  %v1454 = vpack.c.b16 %v1450, %v1449
  %1459 = vst [vmem:[#allocation2 + $0x100] sm:$0xff] %v1451
  %1460 = vst [vmem:[#allocation2 + $0x108] sm:$0xff] %v1452
  %1461 = vst [vmem:[#allocation2 + $0x110] sm:$0xff] %v1453
  %1462 = vst [vmem:[#allocation2 + $0x118] sm:$0xff] %v1454
  %v1463 = vld [vmem:[%s4] sm:$0xff]
  %v1464 = vld [vmem:[%s4 + $0x8] sm:$0xff]
  %v1465 = vld [vmem:[#allocation2] sm:$0xff]
  %v1466 = vld [vmem:[#allocation2 + $0x8] sm:$0xff]
  %v1467 = vld [vmem:[#allocation2 + $0x10] sm:$0xff]
  %v1468 = vld [vmem:[#allocation2 + $0x18] sm:$0xff]
  %v1469 = vld [vmem:[#allocation2 + $0x20] sm:$0xff]
  %v1470 = vld [vmem:[#allocation2 + $0x28] sm:$0xff]
  %v1471 = vld [vmem:[#allocation2 + $0x30] sm:$0xff]
  %v1472 = vld [vmem:[#allocation2 + $0x38] sm:$0xff]
  %v1473 = vld [vmem:[#allocation2 + $0x40] sm:$0xff]
  %v1474 = vld [vmem:[#allocation2 + $0x48] sm:$0xff]
  %v1475 = vld [vmem:[#allocation2 + $0x50] sm:$0xff]
  %v1476 = vld [vmem:[#allocation2 + $0x58] sm:$0xff]
  %v1477 = vld [vmem:[#allocation2 + $0x60] sm:$0xff]
  %v1478 = vld [vmem:[#allocation2 + $0x68] sm:$0xff]
  %v1479 = vld [vmem:[#allocation2 + $0x70] sm:$0xff]
  %v1480 = vld [vmem:[#allocation2 + $0x78] sm:$0xff]
  %v1481 = vld [vmem:[#allocation2 + $0x80] sm:$0xff]
  %v1482 = vld [vmem:[#allocation2 + $0x88] sm:$0xff]
  %v1483 = vld [vmem:[#allocation2 + $0x90] sm:$0xff]
  %v1484 = vld [vmem:[#allocation2 + $0x98] sm:$0xff]
  %v1485 = vld [vmem:[#allocation2 + $0xa0] sm:$0xff]
  %v1486 = vld [vmem:[#allocation2 + $0xa8] sm:$0xff]
  %v1487 = vld [vmem:[#allocation2 + $0xb0] sm:$0xff]
  %v1488 = vld [vmem:[#allocation2 + $0xb8] sm:$0xff]
  %v1489 = vld [vmem:[#allocation2 + $0xc0] sm:$0xff]
  %v1490 = vld [vmem:[#allocation2 + $0xc8] sm:$0xff]
  %v1491 = vld [vmem:[#allocation2 + $0xd0] sm:$0xff]
  %v1492 = vld [vmem:[#allocation2 + $0xd8] sm:$0xff]
  %v1493 = vld [vmem:[#allocation2 + $0xe0] sm:$0xff]
  %v1494 = vld [vmem:[#allocation2 + $0xe8] sm:$0xff]
  %v1495 = vld [vmem:[#allocation2 + $0xf0] sm:$0xff]
  %v1496 = vld [vmem:[#allocation2 + $0xf8] sm:$0xff]
  %v1497 = vld [vmem:[#allocation2 + $0x100] sm:$0xff]
  %v1498 = vld [vmem:[#allocation2 + $0x108] sm:$0xff]
  %v1499 = vld [vmem:[#allocation2 + $0x110] sm:$0xff]
  %v1500 = vld [vmem:[#allocation2 + $0x118] sm:$0xff]
  %v1501 = vld [vmem:[%s5] sm:$0xff]
  %v1502 = vld [vmem:[%s5 + $0x8] sm:$0xff]
  %1504 = vset.pattern.permute.xlu0 0
  %1505 = vperm.xlu0 %1504, %v1501
  %v1506 = vpop.permute.xlu0 %1505
  %1509 = vset.pattern.permute.xlu0 0
  %1510 = vperm.xlu0 %1509, %v1502
  %v1511 = vpop.permute.xlu0 %1510
  %v1515 = vunpack.c.l.b16 %v1463
  %v1516 = vunpack.c.h.b16 %v1463
  %v1517 = vunpack.c.l.b16 %v1464
  %v1518 = vunpack.c.h.b16 %v1464
  %v1519 = vpack.c.b16 %v1517, %v1515
  %v1520 = vpack.c.b16 %v1518, %v1516
  %v1558 = vunpack.c.l.b16 %v1465
  %v1559 = vunpack.c.h.b16 %v1465
  %v1560 = vunpack.c.l.b16 %v1466
  %v1561 = vunpack.c.h.b16 %v1466
  %v1562 = vunpack.c.l.b16 %v1467
  %v1563 = vunpack.c.h.b16 %v1467
  %v1564 = vunpack.c.l.b16 %v1468
  %v1565 = vunpack.c.h.b16 %v1468
  %v1566 = vunpack.c.l.b16 %v1469
  %v1567 = vunpack.c.h.b16 %v1469
  %v1568 = vunpack.c.l.b16 %v1470
  %v1569 = vunpack.c.h.b16 %v1470
  %v1570 = vunpack.c.l.b16 %v1471
  %v1571 = vunpack.c.h.b16 %v1471
  %v1572 = vunpack.c.l.b16 %v1472
  %v1573 = vunpack.c.h.b16 %v1472
  %v1574 = vunpack.c.l.b16 %v1473
  %v1575 = vunpack.c.h.b16 %v1473
  %v1576 = vunpack.c.l.b16 %v1474
  %v1577 = vunpack.c.h.b16 %v1474
  %v1578 = vunpack.c.l.b16 %v1475
  %v1579 = vunpack.c.h.b16 %v1475
  %v1580 = vunpack.c.l.b16 %v1476
  %v1581 = vunpack.c.h.b16 %v1476
  %v1582 = vunpack.c.l.b16 %v1477
  %v1583 = vunpack.c.h.b16 %v1477
  %v1584 = vunpack.c.l.b16 %v1478
  %v1585 = vunpack.c.h.b16 %v1478
  %v1586 = vunpack.c.l.b16 %v1479
  %v1587 = vunpack.c.h.b16 %v1479
  %v1588 = vunpack.c.l.b16 %v1480
  %v1589 = vunpack.c.h.b16 %v1480
  %v1590 = vunpack.c.l.b16 %v1481
  %v1591 = vunpack.c.h.b16 %v1481
  %v1592 = vunpack.c.l.b16 %v1482
  %v1593 = vunpack.c.h.b16 %v1482
  %v1594 = vunpack.c.l.b16 %v1483
  %v1595 = vunpack.c.h.b16 %v1483
  %v1596 = vunpack.c.l.b16 %v1484
  %v1597 = vunpack.c.h.b16 %v1484
  %v1598 = vunpack.c.l.b16 %v1485
  %v1599 = vunpack.c.h.b16 %v1485
  %v1600 = vunpack.c.l.b16 %v1486
  %v1601 = vunpack.c.h.b16 %v1486
  %v1602 = vunpack.c.l.b16 %v1487
  %v1603 = vunpack.c.h.b16 %v1487
  %v1604 = vunpack.c.l.b16 %v1488
  %v1605 = vunpack.c.h.b16 %v1488
  %v1606 = vunpack.c.l.b16 %v1489
  %v1607 = vunpack.c.h.b16 %v1489
  %v1608 = vunpack.c.l.b16 %v1490
  %v1609 = vunpack.c.h.b16 %v1490
  %v1610 = vunpack.c.l.b16 %v1491
  %v1611 = vunpack.c.h.b16 %v1491
  %v1612 = vunpack.c.l.b16 %v1492
  %v1613 = vunpack.c.h.b16 %v1492
  %v1614 = vunpack.c.l.b16 %v1493
  %v1615 = vunpack.c.h.b16 %v1493
  %v1616 = vunpack.c.l.b16 %v1494
  %v1617 = vunpack.c.h.b16 %v1494
  %v1618 = vunpack.c.l.b16 %v1495
  %v1619 = vunpack.c.h.b16 %v1495
  %v1620 = vunpack.c.l.b16 %v1496
  %v1621 = vunpack.c.h.b16 %v1496
  %v1622 = vunpack.c.l.b16 %v1497
  %v1623 = vunpack.c.h.b16 %v1497
  %v1624 = vunpack.c.l.b16 %v1498
  %v1625 = vunpack.c.h.b16 %v1498
  %v1626 = vunpack.c.l.b16 %v1499
  %v1627 = vunpack.c.h.b16 %v1499
  %v1628 = vunpack.c.l.b16 %v1500
  %v1629 = vunpack.c.h.b16 %v1500
  %v1630 = vpack.c.b16 %v1562, %v1558
  %v1631 = vpack.c.b16 %v1563, %v1559
  %v1632 = vpack.c.b16 %v1564, %v1560
  %v1633 = vpack.c.b16 %v1565, %v1561
  %v1634 = vpack.c.b16 %v1570, %v1566
  %v1635 = vpack.c.b16 %v1571, %v1567
  %v1636 = vpack.c.b16 %v1572, %v1568
  %v1637 = vpack.c.b16 %v1573, %v1569
  %v1638 = vpack.c.b16 %v1578, %v1574
  %v1639 = vpack.c.b16 %v1579, %v1575
  %v1640 = vpack.c.b16 %v1580, %v1576
  %v1641 = vpack.c.b16 %v1581, %v1577
  %v1642 = vpack.c.b16 %v1586, %v1582
  %v1643 = vpack.c.b16 %v1587, %v1583
  %v1644 = vpack.c.b16 %v1588, %v1584
  %v1645 = vpack.c.b16 %v1589, %v1585
  %v1646 = vpack.c.b16 %v1594, %v1590
  %v1647 = vpack.c.b16 %v1595, %v1591
  %v1648 = vpack.c.b16 %v1596, %v1592
  %v1649 = vpack.c.b16 %v1597, %v1593
  %v1650 = vpack.c.b16 %v1602, %v1598
  %v1651 = vpack.c.b16 %v1603, %v1599
  %v1652 = vpack.c.b16 %v1604, %v1600
  %v1653 = vpack.c.b16 %v1605, %v1601
  %v1654 = vpack.c.b16 %v1610, %v1606
  %v1655 = vpack.c.b16 %v1611, %v1607
  %v1656 = vpack.c.b16 %v1612, %v1608
  %v1657 = vpack.c.b16 %v1613, %v1609
  %v1658 = vpack.c.b16 %v1618, %v1614
  %v1659 = vpack.c.b16 %v1619, %v1615
  %v1660 = vpack.c.b16 %v1620, %v1616
  %v1661 = vpack.c.b16 %v1621, %v1617
  %v1662 = vpack.c.b16 %v1626, %v1622
  %v1663 = vpack.c.b16 %v1627, %v1623
  %v1664 = vpack.c.b16 %v1628, %v1624
  %v1665 = vpack.c.b16 %v1629, %v1625
  %vm1702 = vcmask 130048
  %v1704 = vsel %vm1702, %v1520, 0
  %1706 = vmatprep.subr.bf16.mxu0 %v1659
  %1707 = vmatpush1.bf16.msra.mxu0 %v1658
  %1708 = vmatprep.subr.bf16.mxu0 %v1655
  %1709 = vmatpush1.bf16.msra.mxu0 %v1654
  %1710 = vmatprep.subr.bf16.mxu0 %v1651
  %1711 = vmatpush1.bf16.msra.mxu0 %v1650
  %1712 = vmatprep.subr.bf16.mxu0 %v1647
  %1713 = vmatpush1.bf16.msra.mxu0 %v1646
  %1714 = vmatprep.subr.bf16.mxu0 %v1643
  %1715 = vmatpush1.bf16.msra.mxu0 %v1642
  %1716 = vmatprep.subr.bf16.mxu0 %v1639
  %1717 = vmatpush1.bf16.msra.mxu0 %v1638
  %1718 = vmatprep.subr.bf16.mxu0 %v1635
  %1719 = vmatpush1.bf16.msra.mxu0 %v1634
  %1720 = vmatprep.subr.bf16.mxu0 %v1631
  %1721 = vmatpush1.bf16.msra.mxu0 %v1630
  %1722 = vmatprep.subr.bf16.mxu0 0
  %1723 = vmatpush2.bf16.msra.mxu0 0
  %1724 = vmatprep.subr.bf16.mxu0 0
  %1725 = vmatpush2.bf16.msra.mxu0 0
  %1726 = vmatprep.subr.bf16.mxu0 0
  %1727 = vmatpush2.bf16.msra.mxu0 0
  %1728 = vmatprep.subr.bf16.mxu0 0
  %1729 = vmatpush2.bf16.msra.mxu0 0
  %1730 = vmatprep.subr.bf16.mxu0 0
  %1731 = vmatpush2.bf16.msra.mxu0 0
  %1732 = vmatprep.subr.bf16.mxu0 0
  %1733 = vmatpush2.bf16.msra.mxu0 0
  %1734 = vmatprep.subr.bf16.mxu0 0
  %1735 = vmatpush2.bf16.msra.mxu0 0
  %1736 = vmatprep.subr.bf16.mxu0 %v1663
  %1737 = vmatpush2.bf16.msra.mxu0 %v1662
  %1738 = vmatprep.mubr.bf16.mxu0 %v1704
  %1739 = vmatmul.mubr.bf16.gmra.mxu0 %v1519
  %v1740 = vpop.f32.mrf.mxu0
  %v1741 = vadd.f32 %v1506, %v1740
  %v1742 = vpop.f32.mrf.mxu0
  %v1743 = vadd.f32 %v1506, %v1742
  %v1744 = vpop.f32.mrf.mxu0
  %v1745 = vadd.f32 %v1511, %v1744
  %v1746 = vpop.f32.mrf.mxu0
  %v1747 = vadd.f32 %v1511, %v1746
  %1748 = vdwg.mxu0
  %1749 = vmatprep.subr.bf16.mxu0 %v1661
  %1750 = vmatpush1.bf16.msra.mxu0 %v1660
  %1751 = vmatprep.subr.bf16.mxu0 %v1657
  %1752 = vmatpush1.bf16.msra.mxu0 %v1656
  %1753 = vmatprep.subr.bf16.mxu0 %v1653
  %1754 = vmatpush1.bf16.msra.mxu0 %v1652
  %1755 = vmatprep.subr.bf16.mxu0 %v1649
  %1756 = vmatpush1.bf16.msra.mxu0 %v1648
  %1757 = vmatprep.subr.bf16.mxu0 %v1645
  %1758 = vmatpush1.bf16.msra.mxu0 %v1644
  %1759 = vmatprep.subr.bf16.mxu0 %v1641
  %1760 = vmatpush1.bf16.msra.mxu0 %v1640
  %1761 = vmatprep.subr.bf16.mxu0 %v1637
  %1762 = vmatpush1.bf16.msra.mxu0 %v1636
  %1763 = vmatprep.subr.bf16.mxu0 %v1633
  %1764 = vmatpush1.bf16.msra.mxu0 %v1632
  %1765 = vmatprep.subr.bf16.mxu0 0
  %1766 = vmatpush2.bf16.msra.mxu0 0
  %1767 = vmatprep.subr.bf16.mxu0 0
  %1768 = vmatpush2.bf16.msra.mxu0 0
  %1769 = vmatprep.subr.bf16.mxu0 0
  %1770 = vmatpush2.bf16.msra.mxu0 0
  %1771 = vmatprep.subr.bf16.mxu0 0
  %1772 = vmatpush2.bf16.msra.mxu0 0
  %1773 = vmatprep.subr.bf16.mxu0 0
  %1774 = vmatpush2.bf16.msra.mxu0 0
  %1775 = vmatprep.subr.bf16.mxu0 0
  %1776 = vmatpush2.bf16.msra.mxu0 0
  %1777 = vmatprep.subr.bf16.mxu0 0
  %1778 = vmatpush2.bf16.msra.mxu0 0
  %1779 = vmatprep.subr.bf16.mxu0 %v1665
  %1780 = vmatpush2.bf16.msra.mxu0 %v1664
  %1781 = vmatprep.mubr.bf16.mxu0 %v1704
  %1782 = vmatmul.mubr.bf16.gmra.mxu0 %v1519
  %v1783 = vpop.f32.mrf.mxu0
  %v1784 = vadd.f32 %v1506, %v1783
  %v1785 = vpop.f32.mrf.mxu0
  %v1786 = vadd.f32 %v1506, %v1785
  %v1787 = vpop.f32.mrf.mxu0
  %v1788 = vadd.f32 %v1511, %v1787
  %v1789 = vpop.f32.mrf.mxu0
  %v1790 = vadd.f32 %v1511, %v1789
  %1791 = vdwg.mxu0
  %v1792 = vmax.f32 %v1741, 0.0
  %v1793 = vmax.f32 %v1743, 0.0
  %v1794 = vmax.f32 %v1784, 0.0
  %v1795 = vmax.f32 %v1786, 0.0
  %v1796 = vmax.f32 %v1745, 0.0
  %v1797 = vmax.f32 %v1747, 0.0
  %v1798 = vmax.f32 %v1788, 0.0
  %v1799 = vmax.f32 %v1790, 0.0
  %1800 = vrot.lane.b32.xlu0 %v1792, 17
  %v1801 = vpop.permute.xlu0 %1800
  %1802 = vrot.lane.b32.xlu0 %v1796, 17
  %v1803 = vpop.permute.xlu0 %1802
  %1804 = vrot.lane.b32.xlu0 %v1793, 17
  %v1805 = vpop.permute.xlu0 %1804
  %1806 = vrot.lane.b32.xlu0 %v1797, 17
  %v1807 = vpop.permute.xlu0 %1806
  %1808 = vrot.lane.b32.xlu0 %v1794, 17
  %v1809 = vpop.permute.xlu0 %1808
  %1810 = vrot.lane.b32.xlu0 %v1798, 17
  %v1811 = vpop.permute.xlu0 %1810
  %1812 = vrot.lane.b32.xlu0 %v1795, 17
  %v1813 = vpop.permute.xlu0 %1812
  %1814 = vrot.lane.b32.xlu0 %v1799, 17
  %v1815 = vpop.permute.xlu0 %1814
  %v1816 = vsel %vm76, %v1809, %v1813
  %v1817 = vsel %vm76, %v1811, %v1815
  %v1818 = vsel %vm76, %v1805, %v1809
  %v1819 = vsel %vm76, %v1807, %v1811
  %v1820 = vsel %vm76, %v1801, %v1805
  %v1821 = vsel %vm76, %v1803, %v1807
  %v1822 = vsel %vm76, %v1813, %v1801
  %v1823 = vsel %vm76, %v1815, %v1803
  %v1824 = vld [vmem:[%s1] ss:$8 sm:$0xf]
  %v1826 = vlaneseq
  %v1827 = vshrl.u32 %v1826, 7
  %v1828 = vsub.s32 0, %v1827
  %v1829 = vrot.slane %v1824, %v1828
  %v1830 = vlaneseq
  %v1831 = vshrl.u32 %v1830, 7
  %v1832 = vsub.s32 1, %v1831
  %v1833 = vrot.slane %v1824, %v1832
  %v1834 = vlaneseq
  %v1835 = vshrl.u32 %v1834, 7
  %v1836 = vsub.s32 2, %v1835
  %v1837 = vrot.slane %v1824, %v1836
  %v1838 = vlaneseq
  %v1839 = vshrl.u32 %v1838, 7
  %v1840 = vsub.s32 3, %v1839
  %v1841 = vrot.slane %v1824, %v1840
  %v1846 = vmul.f32 %v1822, %v1829
  %v1847 = vmul.f32 %v1820, %v1833
  %v1848 = vmul.f32 %v1818, %v1837
  %v1849 = vmul.f32 %v1816, %v1841
  %v1850 = vmul.f32 %v1823, %v1829
  %v1851 = vmul.f32 %v1821, %v1833
  %v1852 = vmul.f32 %v1819, %v1837
  %v1853 = vmul.f32 %v1817, %v1841
  %v1854 = vpack.c.bf16 %v1850, %v1846
  %v1855 = vpack.c.bf16 %v1851, %v1847
  %v1856 = vpack.c.bf16 %v1852, %v1848
  %v1857 = vpack.c.bf16 %v1853, %v1849
  %v1862 = vunpack.c.l.b16 %v1854
  %v1863 = vunpack.c.l.b16 %v1855
  %v1864 = vunpack.c.l.b16 %v1856
  %v1865 = vunpack.c.l.b16 %v1857
  %v1866 = vunpack.c.h.b16 %v1854
  %v1867 = vunpack.c.h.b16 %v1855
  %v1868 = vunpack.c.h.b16 %v1856
  %v1869 = vunpack.c.h.b16 %v1857
  %v1870 = vpack.c.b16 %v1863, %v1862
  %v1871 = vpack.c.b16 %v1865, %v1864
  %v1872 = vpack.c.b16 %v1867, %v1866
  %v1873 = vpack.c.b16 %v1869, %v1868
  %1878 = vst [vmem:[#allocation2] sm:$0xff] %v1870
  %1879 = vst [vmem:[#allocation2 + $0x8] sm:$0xff] %v1871
  %1880 = vst [vmem:[#allocation2 + $0x10] sm:$0xff] %v1872
  %1881 = vst [vmem:[#allocation2 + $0x18] sm:$0xff] %v1873
  %1882 = vrot.lane.b32.xlu0 %v1792, 16
  %v1883 = vpop.permute.xlu0 %1882
  %1884 = vrot.lane.b32.xlu0 %v1796, 16
  %v1885 = vpop.permute.xlu0 %1884
  %1886 = vrot.lane.b32.xlu0 %v1793, 16
  %v1887 = vpop.permute.xlu0 %1886
  %1888 = vrot.lane.b32.xlu0 %v1797, 16
  %v1889 = vpop.permute.xlu0 %1888
  %1890 = vrot.lane.b32.xlu0 %v1794, 16
  %v1891 = vpop.permute.xlu0 %1890
  %1892 = vrot.lane.b32.xlu0 %v1798, 16
  %v1893 = vpop.permute.xlu0 %1892
  %1894 = vrot.lane.b32.xlu0 %v1795, 16
  %v1895 = vpop.permute.xlu0 %1894
  %1896 = vrot.lane.b32.xlu0 %v1799, 16
  %v1897 = vpop.permute.xlu0 %1896
  %v1898 = vsel %vm160, %v1891, %v1895
  %v1899 = vsel %vm160, %v1893, %v1897
  %v1900 = vsel %vm160, %v1887, %v1891
  %v1901 = vsel %vm160, %v1889, %v1893
  %v1902 = vsel %vm160, %v1883, %v1887
  %v1903 = vsel %vm160, %v1885, %v1889
  %v1904 = vsel %vm160, %v1895, %v1883
  %v1905 = vsel %vm160, %v1897, %v1885
  %v1906 = vld [vmem:[%s165] ss:$8 sm:$0xf]
  %v1908 = vlaneseq
  %v1909 = vshrl.u32 %v1908, 7
  %v1910 = vsub.s32 0, %v1909
  %v1911 = vrot.slane %v1906, %v1910
  %v1912 = vlaneseq
  %v1913 = vshrl.u32 %v1912, 7
  %v1914 = vsub.s32 1, %v1913
  %v1915 = vrot.slane %v1906, %v1914
  %v1916 = vlaneseq
  %v1917 = vshrl.u32 %v1916, 7
  %v1918 = vsub.s32 2, %v1917
  %v1919 = vrot.slane %v1906, %v1918
  %v1920 = vlaneseq
  %v1921 = vshrl.u32 %v1920, 7
  %v1922 = vsub.s32 3, %v1921
  %v1923 = vrot.slane %v1906, %v1922
  %v1928 = vmul.f32 %v1904, %v1911
  %v1929 = vmul.f32 %v1902, %v1915
  %v1930 = vmul.f32 %v1900, %v1919
  %v1931 = vmul.f32 %v1898, %v1923
  %v1932 = vmul.f32 %v1905, %v1911
  %v1933 = vmul.f32 %v1903, %v1915
  %v1934 = vmul.f32 %v1901, %v1919
  %v1935 = vmul.f32 %v1899, %v1923
  %v1936 = vpack.c.bf16 %v1932, %v1928
  %v1937 = vpack.c.bf16 %v1933, %v1929
  %v1938 = vpack.c.bf16 %v1934, %v1930
  %v1939 = vpack.c.bf16 %v1935, %v1931
  %v1944 = vunpack.c.l.b16 %v1936
  %v1945 = vunpack.c.l.b16 %v1937
  %v1946 = vunpack.c.l.b16 %v1938
  %v1947 = vunpack.c.l.b16 %v1939
  %v1948 = vunpack.c.h.b16 %v1936
  %v1949 = vunpack.c.h.b16 %v1937
  %v1950 = vunpack.c.h.b16 %v1938
  %v1951 = vunpack.c.h.b16 %v1939
  %v1952 = vpack.c.b16 %v1945, %v1944
  %v1953 = vpack.c.b16 %v1947, %v1946
  %v1954 = vpack.c.b16 %v1949, %v1948
  %v1955 = vpack.c.b16 %v1951, %v1950
  %1960 = vst [vmem:[#allocation2 + $0x20] sm:$0xff] %v1952
  %1961 = vst [vmem:[#allocation2 + $0x28] sm:$0xff] %v1953
  %1962 = vst [vmem:[#allocation2 + $0x30] sm:$0xff] %v1954
  %1963 = vst [vmem:[#allocation2 + $0x38] sm:$0xff] %v1955
  %1964 = vrot.lane.b32.xlu0 %v1792, 15
  %v1965 = vpop.permute.xlu0 %1964
  %1966 = vrot.lane.b32.xlu0 %v1796, 15
  %v1967 = vpop.permute.xlu0 %1966
  %1968 = vrot.lane.b32.xlu0 %v1793, 15
  %v1969 = vpop.permute.xlu0 %1968
  %1970 = vrot.lane.b32.xlu0 %v1797, 15
  %v1971 = vpop.permute.xlu0 %1970
  %1972 = vrot.lane.b32.xlu0 %v1794, 15
  %v1973 = vpop.permute.xlu0 %1972
  %1974 = vrot.lane.b32.xlu0 %v1798, 15
  %v1975 = vpop.permute.xlu0 %1974
  %1976 = vrot.lane.b32.xlu0 %v1795, 15
  %v1977 = vpop.permute.xlu0 %1976
  %1978 = vrot.lane.b32.xlu0 %v1799, 15
  %v1979 = vpop.permute.xlu0 %1978
  %v1980 = vsel %vm245, %v1973, %v1977
  %v1981 = vsel %vm245, %v1975, %v1979
  %v1982 = vsel %vm245, %v1969, %v1973
  %v1983 = vsel %vm245, %v1971, %v1975
  %v1984 = vsel %vm245, %v1965, %v1969
  %v1985 = vsel %vm245, %v1967, %v1971
  %v1986 = vsel %vm245, %v1977, %v1965
  %v1987 = vsel %vm245, %v1979, %v1967
  %v1988 = vld [vmem:[%s250] ss:$8 sm:$0xf]
  %v1990 = vlaneseq
  %v1991 = vshrl.u32 %v1990, 7
  %v1992 = vsub.s32 0, %v1991
  %v1993 = vrot.slane %v1988, %v1992
  %v1994 = vlaneseq
  %v1995 = vshrl.u32 %v1994, 7
  %v1996 = vsub.s32 1, %v1995
  %v1997 = vrot.slane %v1988, %v1996
  %v1998 = vlaneseq
  %v1999 = vshrl.u32 %v1998, 7
  %v2000 = vsub.s32 2, %v1999
  %v2001 = vrot.slane %v1988, %v2000
  %v2002 = vlaneseq
  %v2003 = vshrl.u32 %v2002, 7
  %v2004 = vsub.s32 3, %v2003
  %v2005 = vrot.slane %v1988, %v2004
  %v2010 = vmul.f32 %v1986, %v1993
  %v2011 = vmul.f32 %v1984, %v1997
  %v2012 = vmul.f32 %v1982, %v2001
  %v2013 = vmul.f32 %v1980, %v2005
  %v2014 = vmul.f32 %v1987, %v1993
  %v2015 = vmul.f32 %v1985, %v1997
  %v2016 = vmul.f32 %v1983, %v2001
  %v2017 = vmul.f32 %v1981, %v2005
  %v2018 = vpack.c.bf16 %v2014, %v2010
  %v2019 = vpack.c.bf16 %v2015, %v2011
  %v2020 = vpack.c.bf16 %v2016, %v2012
  %v2021 = vpack.c.bf16 %v2017, %v2013
  %v2026 = vunpack.c.l.b16 %v2018
  %v2027 = vunpack.c.l.b16 %v2019
  %v2028 = vunpack.c.l.b16 %v2020
  %v2029 = vunpack.c.l.b16 %v2021
  %v2030 = vunpack.c.h.b16 %v2018
  %v2031 = vunpack.c.h.b16 %v2019
  %v2032 = vunpack.c.h.b16 %v2020
  %v2033 = vunpack.c.h.b16 %v2021
  %v2034 = vpack.c.b16 %v2027, %v2026
  %v2035 = vpack.c.b16 %v2029, %v2028
  %v2036 = vpack.c.b16 %v2031, %v2030
  %v2037 = vpack.c.b16 %v2033, %v2032
  %2042 = vst [vmem:[#allocation2 + $0x40] sm:$0xff] %v2034
  %2043 = vst [vmem:[#allocation2 + $0x48] sm:$0xff] %v2035
  %2044 = vst [vmem:[#allocation2 + $0x50] sm:$0xff] %v2036
  %2045 = vst [vmem:[#allocation2 + $0x58] sm:$0xff] %v2037
  %2046 = vrot.lane.b32.xlu0 %v1792, 1
  %v2047 = vpop.permute.xlu0 %2046
  %2048 = vrot.lane.b32.xlu0 %v1796, 1
  %v2049 = vpop.permute.xlu0 %2048
  %2050 = vrot.lane.b32.xlu0 %v1793, 1
  %v2051 = vpop.permute.xlu0 %2050
  %2052 = vrot.lane.b32.xlu0 %v1797, 1
  %v2053 = vpop.permute.xlu0 %2052
  %2054 = vrot.lane.b32.xlu0 %v1794, 1
  %v2055 = vpop.permute.xlu0 %2054
  %2056 = vrot.lane.b32.xlu0 %v1798, 1
  %v2057 = vpop.permute.xlu0 %2056
  %2058 = vrot.lane.b32.xlu0 %v1795, 1
  %v2059 = vpop.permute.xlu0 %2058
  %2060 = vrot.lane.b32.xlu0 %v1799, 1
  %v2061 = vpop.permute.xlu0 %2060
  %v2062 = vsel %vm330, %v2055, %v2059
  %v2063 = vsel %vm330, %v2057, %v2061
  %v2064 = vsel %vm330, %v2051, %v2055
  %v2065 = vsel %vm330, %v2053, %v2057
  %v2066 = vsel %vm330, %v2047, %v2051
  %v2067 = vsel %vm330, %v2049, %v2053
  %v2068 = vsel %vm330, %v2059, %v2047
  %v2069 = vsel %vm330, %v2061, %v2049
  %v2070 = vld [vmem:[%s335] ss:$8 sm:$0xf]
  %v2072 = vlaneseq
  %v2073 = vshrl.u32 %v2072, 7
  %v2074 = vsub.s32 0, %v2073
  %v2075 = vrot.slane %v2070, %v2074
  %v2076 = vlaneseq
  %v2077 = vshrl.u32 %v2076, 7
  %v2078 = vsub.s32 1, %v2077
  %v2079 = vrot.slane %v2070, %v2078
  %v2080 = vlaneseq
  %v2081 = vshrl.u32 %v2080, 7
  %v2082 = vsub.s32 2, %v2081
  %v2083 = vrot.slane %v2070, %v2082
  %v2084 = vlaneseq
  %v2085 = vshrl.u32 %v2084, 7
  %v2086 = vsub.s32 3, %v2085
  %v2087 = vrot.slane %v2070, %v2086
  %v2092 = vmul.f32 %v2068, %v2075
  %v2093 = vmul.f32 %v2066, %v2079
  %v2094 = vmul.f32 %v2064, %v2083
  %v2095 = vmul.f32 %v2062, %v2087
  %v2096 = vmul.f32 %v2069, %v2075
  %v2097 = vmul.f32 %v2067, %v2079
  %v2098 = vmul.f32 %v2065, %v2083
  %v2099 = vmul.f32 %v2063, %v2087
  %v2100 = vpack.c.bf16 %v2096, %v2092
  %v2101 = vpack.c.bf16 %v2097, %v2093
  %v2102 = vpack.c.bf16 %v2098, %v2094
  %v2103 = vpack.c.bf16 %v2099, %v2095
  %v2108 = vunpack.c.l.b16 %v2100
  %v2109 = vunpack.c.l.b16 %v2101
  %v2110 = vunpack.c.l.b16 %v2102
  %v2111 = vunpack.c.l.b16 %v2103
  %v2112 = vunpack.c.h.b16 %v2100
  %v2113 = vunpack.c.h.b16 %v2101
  %v2114 = vunpack.c.h.b16 %v2102
  %v2115 = vunpack.c.h.b16 %v2103
  %v2116 = vpack.c.b16 %v2109, %v2108
  %v2117 = vpack.c.b16 %v2111, %v2110
  %v2118 = vpack.c.b16 %v2113, %v2112
  %v2119 = vpack.c.b16 %v2115, %v2114
  %2124 = vst [vmem:[#allocation2 + $0x60] sm:$0xff] %v2116
  %2125 = vst [vmem:[#allocation2 + $0x68] sm:$0xff] %v2117
  %2126 = vst [vmem:[#allocation2 + $0x70] sm:$0xff] %v2118
  %2127 = vst [vmem:[#allocation2 + $0x78] sm:$0xff] %v2119
  %v2128 = vpack.c.bf16 %v1796, %v1792
  %v2129 = vpack.c.bf16 %v1797, %v1793
  %v2130 = vpack.c.bf16 %v1798, %v1794
  %v2131 = vpack.c.bf16 %v1799, %v1795
  %v2136 = vunpack.c.l.b16 %v2128
  %v2137 = vunpack.c.l.b16 %v2129
  %v2138 = vunpack.c.l.b16 %v2130
  %v2139 = vunpack.c.l.b16 %v2131
  %v2140 = vunpack.c.h.b16 %v2128
  %v2141 = vunpack.c.h.b16 %v2129
  %v2142 = vunpack.c.h.b16 %v2130
  %v2143 = vunpack.c.h.b16 %v2131
  %v2144 = vpack.c.b16 %v2137, %v2136
  %v2145 = vpack.c.b16 %v2139, %v2138
  %v2146 = vpack.c.b16 %v2141, %v2140
  %v2147 = vpack.c.b16 %v2143, %v2142
  %2152 = vst [vmem:[#allocation2 + $0x80] sm:$0xff] %v2144
  %2153 = vst [vmem:[#allocation2 + $0x88] sm:$0xff] %v2145
  %2154 = vst [vmem:[#allocation2 + $0x90] sm:$0xff] %v2146
  %2155 = vst [vmem:[#allocation2 + $0x98] sm:$0xff] %v2147
  %2156 = vrot.lane.b32.xlu0 %v1792, 127
  %v2157 = vpop.permute.xlu0 %2156
  %2158 = vrot.lane.b32.xlu0 %v1796, 127
  %v2159 = vpop.permute.xlu0 %2158
  %2160 = vrot.lane.b32.xlu0 %v1793, 127
  %v2161 = vpop.permute.xlu0 %2160
  %2162 = vrot.lane.b32.xlu0 %v1797, 127
  %v2163 = vpop.permute.xlu0 %2162
  %2164 = vrot.lane.b32.xlu0 %v1794, 127
  %v2165 = vpop.permute.xlu0 %2164
  %2166 = vrot.lane.b32.xlu0 %v1798, 127
  %v2167 = vpop.permute.xlu0 %2166
  %2168 = vrot.lane.b32.xlu0 %v1795, 127
  %v2169 = vpop.permute.xlu0 %2168
  %2170 = vrot.lane.b32.xlu0 %v1799, 127
  %v2171 = vpop.permute.xlu0 %2170
  %v2172 = vsel %vm444, %v2165, %v2169
  %v2173 = vsel %vm444, %v2167, %v2171
  %v2174 = vsel %vm444, %v2161, %v2165
  %v2175 = vsel %vm444, %v2163, %v2167
  %v2176 = vsel %vm444, %v2157, %v2161
  %v2177 = vsel %vm444, %v2159, %v2163
  %v2178 = vsel %vm444, %v2169, %v2157
  %v2179 = vsel %vm444, %v2171, %v2159
  %v2180 = vld [vmem:[%s449] ss:$8 sm:$0xf]
  %v2182 = vlaneseq
  %v2183 = vshrl.u32 %v2182, 7
  %v2184 = vsub.s32 0, %v2183
  %v2185 = vrot.slane %v2180, %v2184
  %v2186 = vlaneseq
  %v2187 = vshrl.u32 %v2186, 7
  %v2188 = vsub.s32 1, %v2187
  %v2189 = vrot.slane %v2180, %v2188
  %v2190 = vlaneseq
  %v2191 = vshrl.u32 %v2190, 7
  %v2192 = vsub.s32 2, %v2191
  %v2193 = vrot.slane %v2180, %v2192
  %v2194 = vlaneseq
  %v2195 = vshrl.u32 %v2194, 7
  %v2196 = vsub.s32 3, %v2195
  %v2197 = vrot.slane %v2180, %v2196
  %v2202 = vmul.f32 %v2176, %v2185
  %v2203 = vmul.f32 %v2174, %v2189
  %v2204 = vmul.f32 %v2172, %v2193
  %v2205 = vmul.f32 %v2178, %v2197
  %v2206 = vmul.f32 %v2177, %v2185
  %v2207 = vmul.f32 %v2175, %v2189
  %v2208 = vmul.f32 %v2173, %v2193
  %v2209 = vmul.f32 %v2179, %v2197
  %v2210 = vpack.c.bf16 %v2206, %v2202
  %v2211 = vpack.c.bf16 %v2207, %v2203
  %v2212 = vpack.c.bf16 %v2208, %v2204
  %v2213 = vpack.c.bf16 %v2209, %v2205
  %v2218 = vunpack.c.l.b16 %v2210
  %v2219 = vunpack.c.l.b16 %v2211
  %v2220 = vunpack.c.l.b16 %v2212
  %v2221 = vunpack.c.l.b16 %v2213
  %v2222 = vunpack.c.h.b16 %v2210
  %v2223 = vunpack.c.h.b16 %v2211
  %v2224 = vunpack.c.h.b16 %v2212
  %v2225 = vunpack.c.h.b16 %v2213
  %v2226 = vpack.c.b16 %v2219, %v2218
  %v2227 = vpack.c.b16 %v2221, %v2220
  %v2228 = vpack.c.b16 %v2223, %v2222
  %v2229 = vpack.c.b16 %v2225, %v2224
  %2234 = vst [vmem:[#allocation2 + $0xa0] sm:$0xff] %v2226
  %2235 = vst [vmem:[#allocation2 + $0xa8] sm:$0xff] %v2227
  %2236 = vst [vmem:[#allocation2 + $0xb0] sm:$0xff] %v2228
  %2237 = vst [vmem:[#allocation2 + $0xb8] sm:$0xff] %v2229
  %2238 = vrot.lane.b32.xlu0 %v1792, 113
  %v2239 = vpop.permute.xlu0 %2238
  %2240 = vrot.lane.b32.xlu0 %v1796, 113
  %v2241 = vpop.permute.xlu0 %2240
  %2242 = vrot.lane.b32.xlu0 %v1793, 113
  %v2243 = vpop.permute.xlu0 %2242
  %2244 = vrot.lane.b32.xlu0 %v1797, 113
  %v2245 = vpop.permute.xlu0 %2244
  %2246 = vrot.lane.b32.xlu0 %v1794, 113
  %v2247 = vpop.permute.xlu0 %2246
  %2248 = vrot.lane.b32.xlu0 %v1798, 113
  %v2249 = vpop.permute.xlu0 %2248
  %2250 = vrot.lane.b32.xlu0 %v1795, 113
  %v2251 = vpop.permute.xlu0 %2250
  %2252 = vrot.lane.b32.xlu0 %v1799, 113
  %v2253 = vpop.permute.xlu0 %2252
  %v2254 = vsel %vm529, %v2247, %v2251
  %v2255 = vsel %vm529, %v2249, %v2253
  %v2256 = vsel %vm529, %v2243, %v2247
  %v2257 = vsel %vm529, %v2245, %v2249
  %v2258 = vsel %vm529, %v2239, %v2243
  %v2259 = vsel %vm529, %v2241, %v2245
  %v2260 = vsel %vm529, %v2251, %v2239
  %v2261 = vsel %vm529, %v2253, %v2241
  %v2262 = vld [vmem:[%s534] ss:$8 sm:$0xf]
  %v2264 = vlaneseq
  %v2265 = vshrl.u32 %v2264, 7
  %v2266 = vsub.s32 0, %v2265
  %v2267 = vrot.slane %v2262, %v2266
  %v2268 = vlaneseq
  %v2269 = vshrl.u32 %v2268, 7
  %v2270 = vsub.s32 1, %v2269
  %v2271 = vrot.slane %v2262, %v2270
  %v2272 = vlaneseq
  %v2273 = vshrl.u32 %v2272, 7
  %v2274 = vsub.s32 2, %v2273
  %v2275 = vrot.slane %v2262, %v2274
  %v2276 = vlaneseq
  %v2277 = vshrl.u32 %v2276, 7
  %v2278 = vsub.s32 3, %v2277
  %v2279 = vrot.slane %v2262, %v2278
  %v2284 = vmul.f32 %v2258, %v2267
  %v2285 = vmul.f32 %v2256, %v2271
  %v2286 = vmul.f32 %v2254, %v2275
  %v2287 = vmul.f32 %v2260, %v2279
  %v2288 = vmul.f32 %v2259, %v2267
  %v2289 = vmul.f32 %v2257, %v2271
  %v2290 = vmul.f32 %v2255, %v2275
  %v2291 = vmul.f32 %v2261, %v2279
  %v2292 = vpack.c.bf16 %v2288, %v2284
  %v2293 = vpack.c.bf16 %v2289, %v2285
  %v2294 = vpack.c.bf16 %v2290, %v2286
  %v2295 = vpack.c.bf16 %v2291, %v2287
  %v2300 = vunpack.c.l.b16 %v2292
  %v2301 = vunpack.c.l.b16 %v2293
  %v2302 = vunpack.c.l.b16 %v2294
  %v2303 = vunpack.c.l.b16 %v2295
  %v2304 = vunpack.c.h.b16 %v2292
  %v2305 = vunpack.c.h.b16 %v2293
  %v2306 = vunpack.c.h.b16 %v2294
  %v2307 = vunpack.c.h.b16 %v2295
  %v2308 = vpack.c.b16 %v2301, %v2300
  %v2309 = vpack.c.b16 %v2303, %v2302
  %v2310 = vpack.c.b16 %v2305, %v2304
  %v2311 = vpack.c.b16 %v2307, %v2306
  %2316 = vst [vmem:[#allocation2 + $0xc0] sm:$0xff] %v2308
  %2317 = vst [vmem:[#allocation2 + $0xc8] sm:$0xff] %v2309
  %2318 = vst [vmem:[#allocation2 + $0xd0] sm:$0xff] %v2310
  %2319 = vst [vmem:[#allocation2 + $0xd8] sm:$0xff] %v2311
  %2320 = vrot.lane.b32.xlu0 %v1792, 112
  %v2321 = vpop.permute.xlu0 %2320
  %2322 = vrot.lane.b32.xlu0 %v1796, 112
  %v2323 = vpop.permute.xlu0 %2322
  %2324 = vrot.lane.b32.xlu0 %v1793, 112
  %v2325 = vpop.permute.xlu0 %2324
  %2326 = vrot.lane.b32.xlu0 %v1797, 112
  %v2327 = vpop.permute.xlu0 %2326
  %2328 = vrot.lane.b32.xlu0 %v1794, 112
  %v2329 = vpop.permute.xlu0 %2328
  %2330 = vrot.lane.b32.xlu0 %v1798, 112
  %v2331 = vpop.permute.xlu0 %2330
  %2332 = vrot.lane.b32.xlu0 %v1795, 112
  %v2333 = vpop.permute.xlu0 %2332
  %2334 = vrot.lane.b32.xlu0 %v1799, 112
  %v2335 = vpop.permute.xlu0 %2334
  %v2336 = vsel %vm614, %v2329, %v2333
  %v2337 = vsel %vm614, %v2331, %v2335
  %v2338 = vsel %vm614, %v2325, %v2329
  %v2339 = vsel %vm614, %v2327, %v2331
  %v2340 = vsel %vm614, %v2321, %v2325
  %v2341 = vsel %vm614, %v2323, %v2327
  %v2342 = vsel %vm614, %v2333, %v2321
  %v2343 = vsel %vm614, %v2335, %v2323
  %v2344 = vld [vmem:[%s619] ss:$8 sm:$0xf]
  %v2346 = vlaneseq
  %v2347 = vshrl.u32 %v2346, 7
  %v2348 = vsub.s32 0, %v2347
  %v2349 = vrot.slane %v2344, %v2348
  %v2350 = vlaneseq
  %v2351 = vshrl.u32 %v2350, 7
  %v2352 = vsub.s32 1, %v2351
  %v2353 = vrot.slane %v2344, %v2352
  %v2354 = vlaneseq
  %v2355 = vshrl.u32 %v2354, 7
  %v2356 = vsub.s32 2, %v2355
  %v2357 = vrot.slane %v2344, %v2356
  %v2358 = vlaneseq
  %v2359 = vshrl.u32 %v2358, 7
  %v2360 = vsub.s32 3, %v2359
  %v2361 = vrot.slane %v2344, %v2360
  %v2366 = vmul.f32 %v2340, %v2349
  %v2367 = vmul.f32 %v2338, %v2353
  %v2368 = vmul.f32 %v2336, %v2357
  %v2369 = vmul.f32 %v2342, %v2361
  %v2370 = vmul.f32 %v2341, %v2349
  %v2371 = vmul.f32 %v2339, %v2353
  %v2372 = vmul.f32 %v2337, %v2357
  %v2373 = vmul.f32 %v2343, %v2361
  %v2374 = vpack.c.bf16 %v2370, %v2366
  %v2375 = vpack.c.bf16 %v2371, %v2367
  %v2376 = vpack.c.bf16 %v2372, %v2368
  %v2377 = vpack.c.bf16 %v2373, %v2369
  %v2382 = vunpack.c.l.b16 %v2374
  %v2383 = vunpack.c.l.b16 %v2375
  %v2384 = vunpack.c.l.b16 %v2376
  %v2385 = vunpack.c.l.b16 %v2377
  %v2386 = vunpack.c.h.b16 %v2374
  %v2387 = vunpack.c.h.b16 %v2375
  %v2388 = vunpack.c.h.b16 %v2376
  %v2389 = vunpack.c.h.b16 %v2377
  %v2390 = vpack.c.b16 %v2383, %v2382
  %v2391 = vpack.c.b16 %v2385, %v2384
  %v2392 = vpack.c.b16 %v2387, %v2386
  %v2393 = vpack.c.b16 %v2389, %v2388
  %2398 = vst [vmem:[#allocation2 + $0xe0] sm:$0xff] %v2390
  %2399 = vst [vmem:[#allocation2 + $0xe8] sm:$0xff] %v2391
  %2400 = vst [vmem:[#allocation2 + $0xf0] sm:$0xff] %v2392
  %2401 = vst [vmem:[#allocation2 + $0xf8] sm:$0xff] %v2393
  %2402 = vrot.lane.b32.xlu0 %v1792, 111
  %v2403 = vpop.permute.xlu0 %2402
  %2404 = vrot.lane.b32.xlu0 %v1796, 111
  %v2405 = vpop.permute.xlu0 %2404
  %2406 = vrot.lane.b32.xlu0 %v1793, 111
  %v2407 = vpop.permute.xlu0 %2406
  %2408 = vrot.lane.b32.xlu0 %v1797, 111
  %v2409 = vpop.permute.xlu0 %2408
  %2410 = vrot.lane.b32.xlu0 %v1794, 111
  %v2411 = vpop.permute.xlu0 %2410
  %2412 = vrot.lane.b32.xlu0 %v1798, 111
  %v2413 = vpop.permute.xlu0 %2412
  %2414 = vrot.lane.b32.xlu0 %v1795, 111
  %v2415 = vpop.permute.xlu0 %2414
  %2416 = vrot.lane.b32.xlu0 %v1799, 111
  %v2417 = vpop.permute.xlu0 %2416
  %v2418 = vsel %vm699, %v2411, %v2415
  %v2419 = vsel %vm699, %v2413, %v2417
  %v2420 = vsel %vm699, %v2407, %v2411
  %v2421 = vsel %vm699, %v2409, %v2413
  %v2422 = vsel %vm699, %v2403, %v2407
  %v2423 = vsel %vm699, %v2405, %v2409
  %v2424 = vsel %vm699, %v2415, %v2403
  %v2425 = vsel %vm699, %v2417, %v2405
  %v2426 = vld [vmem:[%s704] ss:$8 sm:$0xf]
  %v2428 = vlaneseq
  %v2429 = vshrl.u32 %v2428, 7
  %v2430 = vsub.s32 0, %v2429
  %v2431 = vrot.slane %v2426, %v2430
  %v2432 = vlaneseq
  %v2433 = vshrl.u32 %v2432, 7
  %v2434 = vsub.s32 1, %v2433
  %v2435 = vrot.slane %v2426, %v2434
  %v2436 = vlaneseq
  %v2437 = vshrl.u32 %v2436, 7
  %v2438 = vsub.s32 2, %v2437
  %v2439 = vrot.slane %v2426, %v2438
  %v2440 = vlaneseq
  %v2441 = vshrl.u32 %v2440, 7
  %v2442 = vsub.s32 3, %v2441
  %v2443 = vrot.slane %v2426, %v2442
  %v2448 = vmul.f32 %v2422, %v2431
  %v2449 = vmul.f32 %v2420, %v2435
  %v2450 = vmul.f32 %v2418, %v2439
  %v2451 = vmul.f32 %v2424, %v2443
  %v2452 = vmul.f32 %v2423, %v2431
  %v2453 = vmul.f32 %v2421, %v2435
  %v2454 = vmul.f32 %v2419, %v2439
  %v2455 = vmul.f32 %v2425, %v2443
  %v2456 = vpack.c.bf16 %v2452, %v2448
  %v2457 = vpack.c.bf16 %v2453, %v2449
  %v2458 = vpack.c.bf16 %v2454, %v2450
  %v2459 = vpack.c.bf16 %v2455, %v2451
  %v2464 = vunpack.c.l.b16 %v2456
  %v2465 = vunpack.c.l.b16 %v2457
  %v2466 = vunpack.c.l.b16 %v2458
  %v2467 = vunpack.c.l.b16 %v2459
  %v2468 = vunpack.c.h.b16 %v2456
  %v2469 = vunpack.c.h.b16 %v2457
  %v2470 = vunpack.c.h.b16 %v2458
  %v2471 = vunpack.c.h.b16 %v2459
  %v2472 = vpack.c.b16 %v2465, %v2464
  %v2473 = vpack.c.b16 %v2467, %v2466
  %v2474 = vpack.c.b16 %v2469, %v2468
  %v2475 = vpack.c.b16 %v2471, %v2470
  %2480 = vst [vmem:[#allocation2 + $0x100] sm:$0xff] %v2472
  %2481 = vst [vmem:[#allocation2 + $0x108] sm:$0xff] %v2473
  %2482 = vst [vmem:[#allocation2 + $0x110] sm:$0xff] %v2474
  %2483 = vst [vmem:[#allocation2 + $0x118] sm:$0xff] %v2475
  %v2484 = vld [vmem:[%s6] sm:$0xff]
  %v2485 = vld [vmem:[%s6 + $0x8] sm:$0xff]
  %v2486 = vld [vmem:[#allocation2] sm:$0xff]
  %v2487 = vld [vmem:[#allocation2 + $0x8] sm:$0xff]
  %v2488 = vld [vmem:[#allocation2 + $0x10] sm:$0xff]
  %v2489 = vld [vmem:[#allocation2 + $0x18] sm:$0xff]
  %v2490 = vld [vmem:[#allocation2 + $0x20] sm:$0xff]
  %v2491 = vld [vmem:[#allocation2 + $0x28] sm:$0xff]
  %v2492 = vld [vmem:[#allocation2 + $0x30] sm:$0xff]
  %v2493 = vld [vmem:[#allocation2 + $0x38] sm:$0xff]
  %v2494 = vld [vmem:[#allocation2 + $0x40] sm:$0xff]
  %v2495 = vld [vmem:[#allocation2 + $0x48] sm:$0xff]
  %v2496 = vld [vmem:[#allocation2 + $0x50] sm:$0xff]
  %v2497 = vld [vmem:[#allocation2 + $0x58] sm:$0xff]
  %v2498 = vld [vmem:[#allocation2 + $0x60] sm:$0xff]
  %v2499 = vld [vmem:[#allocation2 + $0x68] sm:$0xff]
  %v2500 = vld [vmem:[#allocation2 + $0x70] sm:$0xff]
  %v2501 = vld [vmem:[#allocation2 + $0x78] sm:$0xff]
  %v2502 = vld [vmem:[#allocation2 + $0x80] sm:$0xff]
  %v2503 = vld [vmem:[#allocation2 + $0x88] sm:$0xff]
  %v2504 = vld [vmem:[#allocation2 + $0x90] sm:$0xff]
  %v2505 = vld [vmem:[#allocation2 + $0x98] sm:$0xff]
  %v2506 = vld [vmem:[#allocation2 + $0xa0] sm:$0xff]
  %v2507 = vld [vmem:[#allocation2 + $0xa8] sm:$0xff]
  %v2508 = vld [vmem:[#allocation2 + $0xb0] sm:$0xff]
  %v2509 = vld [vmem:[#allocation2 + $0xb8] sm:$0xff]
  %v2510 = vld [vmem:[#allocation2 + $0xc0] sm:$0xff]
  %v2511 = vld [vmem:[#allocation2 + $0xc8] sm:$0xff]
  %v2512 = vld [vmem:[#allocation2 + $0xd0] sm:$0xff]
  %v2513 = vld [vmem:[#allocation2 + $0xd8] sm:$0xff]
  %v2514 = vld [vmem:[#allocation2 + $0xe0] sm:$0xff]
  %v2515 = vld [vmem:[#allocation2 + $0xe8] sm:$0xff]
  %v2516 = vld [vmem:[#allocation2 + $0xf0] sm:$0xff]
  %v2517 = vld [vmem:[#allocation2 + $0xf8] sm:$0xff]
  %v2518 = vld [vmem:[#allocation2 + $0x100] sm:$0xff]
  %v2519 = vld [vmem:[#allocation2 + $0x108] sm:$0xff]
  %v2520 = vld [vmem:[#allocation2 + $0x110] sm:$0xff]
  %v2521 = vld [vmem:[#allocation2 + $0x118] sm:$0xff]
  %v2522 = vld [vmem:[%s7] sm:$0xff]
  %v2523 = vld [vmem:[%s7 + $0x8] sm:$0xff]
  %2525 = vset.pattern.permute.xlu0 0
  %2526 = vperm.xlu0 %2525, %v2522
  %v2527 = vpop.permute.xlu0 %2526
  %2530 = vset.pattern.permute.xlu0 0
  %2531 = vperm.xlu0 %2530, %v2523
  %v2532 = vpop.permute.xlu0 %2531
  %v2536 = vunpack.c.l.b16 %v2484
  %v2537 = vunpack.c.h.b16 %v2484
  %v2538 = vunpack.c.l.b16 %v2485
  %v2539 = vunpack.c.h.b16 %v2485
  %v2540 = vpack.c.b16 %v2538, %v2536
  %v2541 = vpack.c.b16 %v2539, %v2537
  %v2579 = vunpack.c.l.b16 %v2486
  %v2580 = vunpack.c.h.b16 %v2486
  %v2581 = vunpack.c.l.b16 %v2487
  %v2582 = vunpack.c.h.b16 %v2487
  %v2583 = vunpack.c.l.b16 %v2488
  %v2584 = vunpack.c.h.b16 %v2488
  %v2585 = vunpack.c.l.b16 %v2489
  %v2586 = vunpack.c.h.b16 %v2489
  %v2587 = vunpack.c.l.b16 %v2490
  %v2588 = vunpack.c.h.b16 %v2490
  %v2589 = vunpack.c.l.b16 %v2491
  %v2590 = vunpack.c.h.b16 %v2491
  %v2591 = vunpack.c.l.b16 %v2492
  %v2592 = vunpack.c.h.b16 %v2492
  %v2593 = vunpack.c.l.b16 %v2493
  %v2594 = vunpack.c.h.b16 %v2493
  %v2595 = vunpack.c.l.b16 %v2494
  %v2596 = vunpack.c.h.b16 %v2494
  %v2597 = vunpack.c.l.b16 %v2495
  %v2598 = vunpack.c.h.b16 %v2495
  %v2599 = vunpack.c.l.b16 %v2496
  %v2600 = vunpack.c.h.b16 %v2496
  %v2601 = vunpack.c.l.b16 %v2497
  %v2602 = vunpack.c.h.b16 %v2497
  %v2603 = vunpack.c.l.b16 %v2498
  %v2604 = vunpack.c.h.b16 %v2498
  %v2605 = vunpack.c.l.b16 %v2499
  %v2606 = vunpack.c.h.b16 %v2499
  %v2607 = vunpack.c.l.b16 %v2500
  %v2608 = vunpack.c.h.b16 %v2500
  %v2609 = vunpack.c.l.b16 %v2501
  %v2610 = vunpack.c.h.b16 %v2501
  %v2611 = vunpack.c.l.b16 %v2502
  %v2612 = vunpack.c.h.b16 %v2502
  %v2613 = vunpack.c.l.b16 %v2503
  %v2614 = vunpack.c.h.b16 %v2503
  %v2615 = vunpack.c.l.b16 %v2504
  %v2616 = vunpack.c.h.b16 %v2504
  %v2617 = vunpack.c.l.b16 %v2505
  %v2618 = vunpack.c.h.b16 %v2505
  %v2619 = vunpack.c.l.b16 %v2506
  %v2620 = vunpack.c.h.b16 %v2506
  %v2621 = vunpack.c.l.b16 %v2507
  %v2622 = vunpack.c.h.b16 %v2507
  %v2623 = vunpack.c.l.b16 %v2508
  %v2624 = vunpack.c.h.b16 %v2508
  %v2625 = vunpack.c.l.b16 %v2509
  %v2626 = vunpack.c.h.b16 %v2509
  %v2627 = vunpack.c.l.b16 %v2510
  %v2628 = vunpack.c.h.b16 %v2510
  %v2629 = vunpack.c.l.b16 %v2511
  %v2630 = vunpack.c.h.b16 %v2511
  %v2631 = vunpack.c.l.b16 %v2512
  %v2632 = vunpack.c.h.b16 %v2512
  %v2633 = vunpack.c.l.b16 %v2513
  %v2634 = vunpack.c.h.b16 %v2513
  %v2635 = vunpack.c.l.b16 %v2514
  %v2636 = vunpack.c.h.b16 %v2514
  %v2637 = vunpack.c.l.b16 %v2515
  %v2638 = vunpack.c.h.b16 %v2515
  %v2639 = vunpack.c.l.b16 %v2516
  %v2640 = vunpack.c.h.b16 %v2516
  %v2641 = vunpack.c.l.b16 %v2517
  %v2642 = vunpack.c.h.b16 %v2517
  %v2643 = vunpack.c.l.b16 %v2518
  %v2644 = vunpack.c.h.b16 %v2518
  %v2645 = vunpack.c.l.b16 %v2519
  %v2646 = vunpack.c.h.b16 %v2519
  %v2647 = vunpack.c.l.b16 %v2520
  %v2648 = vunpack.c.h.b16 %v2520
  %v2649 = vunpack.c.l.b16 %v2521
  %v2650 = vunpack.c.h.b16 %v2521
  %v2651 = vpack.c.b16 %v2583, %v2579
  %v2652 = vpack.c.b16 %v2584, %v2580
  %v2653 = vpack.c.b16 %v2585, %v2581
  %v2654 = vpack.c.b16 %v2586, %v2582
  %v2655 = vpack.c.b16 %v2591, %v2587
  %v2656 = vpack.c.b16 %v2592, %v2588
  %v2657 = vpack.c.b16 %v2593, %v2589
  %v2658 = vpack.c.b16 %v2594, %v2590
  %v2659 = vpack.c.b16 %v2599, %v2595
  %v2660 = vpack.c.b16 %v2600, %v2596
  %v2661 = vpack.c.b16 %v2601, %v2597
  %v2662 = vpack.c.b16 %v2602, %v2598
  %v2663 = vpack.c.b16 %v2607, %v2603
  %v2664 = vpack.c.b16 %v2608, %v2604
  %v2665 = vpack.c.b16 %v2609, %v2605
  %v2666 = vpack.c.b16 %v2610, %v2606
  %v2667 = vpack.c.b16 %v2615, %v2611
  %v2668 = vpack.c.b16 %v2616, %v2612
  %v2669 = vpack.c.b16 %v2617, %v2613
  %v2670 = vpack.c.b16 %v2618, %v2614
  %v2671 = vpack.c.b16 %v2623, %v2619
  %v2672 = vpack.c.b16 %v2624, %v2620
  %v2673 = vpack.c.b16 %v2625, %v2621
  %v2674 = vpack.c.b16 %v2626, %v2622
  %v2675 = vpack.c.b16 %v2631, %v2627
  %v2676 = vpack.c.b16 %v2632, %v2628
  %v2677 = vpack.c.b16 %v2633, %v2629
  %v2678 = vpack.c.b16 %v2634, %v2630
  %v2679 = vpack.c.b16 %v2639, %v2635
  %v2680 = vpack.c.b16 %v2640, %v2636
  %v2681 = vpack.c.b16 %v2641, %v2637
  %v2682 = vpack.c.b16 %v2642, %v2638
  %v2683 = vpack.c.b16 %v2647, %v2643
  %v2684 = vpack.c.b16 %v2648, %v2644
  %v2685 = vpack.c.b16 %v2649, %v2645
  %v2686 = vpack.c.b16 %v2650, %v2646
  %v2724 = vsel %vm1702, %v2541, 0
  %2726 = vmatprep.subr.bf16.mxu0 %v2680
  %2727 = vmatpush1.bf16.msra.mxu0 %v2679
  %2728 = vmatprep.subr.bf16.mxu0 %v2676
  %2729 = vmatpush1.bf16.msra.mxu0 %v2675
  %2730 = vmatprep.subr.bf16.mxu0 %v2672
  %2731 = vmatpush1.bf16.msra.mxu0 %v2671
  %2732 = vmatprep.subr.bf16.mxu0 %v2668
  %2733 = vmatpush1.bf16.msra.mxu0 %v2667
  %2734 = vmatprep.subr.bf16.mxu0 %v2664
  %2735 = vmatpush1.bf16.msra.mxu0 %v2663
  %2736 = vmatprep.subr.bf16.mxu0 %v2660
  %2737 = vmatpush1.bf16.msra.mxu0 %v2659
  %2738 = vmatprep.subr.bf16.mxu0 %v2656
  %2739 = vmatpush1.bf16.msra.mxu0 %v2655
  %2740 = vmatprep.subr.bf16.mxu0 %v2652
  %2741 = vmatpush1.bf16.msra.mxu0 %v2651
  %2742 = vmatprep.subr.bf16.mxu0 0
  %2743 = vmatpush2.bf16.msra.mxu0 0
  %2744 = vmatprep.subr.bf16.mxu0 0
  %2745 = vmatpush2.bf16.msra.mxu0 0
  %2746 = vmatprep.subr.bf16.mxu0 0
  %2747 = vmatpush2.bf16.msra.mxu0 0
  %2748 = vmatprep.subr.bf16.mxu0 0
  %2749 = vmatpush2.bf16.msra.mxu0 0
  %2750 = vmatprep.subr.bf16.mxu0 0
  %2751 = vmatpush2.bf16.msra.mxu0 0
  %2752 = vmatprep.subr.bf16.mxu0 0
  %2753 = vmatpush2.bf16.msra.mxu0 0
  %2754 = vmatprep.subr.bf16.mxu0 0
  %2755 = vmatpush2.bf16.msra.mxu0 0
  %2756 = vmatprep.subr.bf16.mxu0 %v2684
  %2757 = vmatpush2.bf16.msra.mxu0 %v2683
  %2758 = vmatprep.mubr.bf16.mxu0 %v2724
  %2759 = vmatmul.mubr.bf16.gmra.mxu0 %v2540
  %v2760 = vpop.f32.mrf.mxu0
  %v2761 = vadd.f32 %v2527, %v2760
  %v2762 = vpop.f32.mrf.mxu0
  %v2763 = vadd.f32 %v2527, %v2762
  %v2764 = vpop.f32.mrf.mxu0
  %v2765 = vadd.f32 %v2532, %v2764
  %v2766 = vpop.f32.mrf.mxu0
  %v2767 = vadd.f32 %v2532, %v2766
  %2768 = vdwg.mxu0
  %2769 = vmatprep.subr.bf16.mxu0 %v2682
  %2770 = vmatpush1.bf16.msra.mxu0 %v2681
  %2771 = vmatprep.subr.bf16.mxu0 %v2678
  %2772 = vmatpush1.bf16.msra.mxu0 %v2677
  %2773 = vmatprep.subr.bf16.mxu0 %v2674
  %2774 = vmatpush1.bf16.msra.mxu0 %v2673
  %2775 = vmatprep.subr.bf16.mxu0 %v2670
  %2776 = vmatpush1.bf16.msra.mxu0 %v2669
  %2777 = vmatprep.subr.bf16.mxu0 %v2666
  %2778 = vmatpush1.bf16.msra.mxu0 %v2665
  %2779 = vmatprep.subr.bf16.mxu0 %v2662
  %2780 = vmatpush1.bf16.msra.mxu0 %v2661
  %2781 = vmatprep.subr.bf16.mxu0 %v2658
  %2782 = vmatpush1.bf16.msra.mxu0 %v2657
  %2783 = vmatprep.subr.bf16.mxu0 %v2654
  %2784 = vmatpush1.bf16.msra.mxu0 %v2653
  %2785 = vmatprep.subr.bf16.mxu0 0
  %2786 = vmatpush2.bf16.msra.mxu0 0
  %2787 = vmatprep.subr.bf16.mxu0 0
  %2788 = vmatpush2.bf16.msra.mxu0 0
  %2789 = vmatprep.subr.bf16.mxu0 0
  %2790 = vmatpush2.bf16.msra.mxu0 0
  %2791 = vmatprep.subr.bf16.mxu0 0
  %2792 = vmatpush2.bf16.msra.mxu0 0
  %2793 = vmatprep.subr.bf16.mxu0 0
  %2794 = vmatpush2.bf16.msra.mxu0 0
  %2795 = vmatprep.subr.bf16.mxu0 0
  %2796 = vmatpush2.bf16.msra.mxu0 0
  %2797 = vmatprep.subr.bf16.mxu0 0
  %2798 = vmatpush2.bf16.msra.mxu0 0
  %2799 = vmatprep.subr.bf16.mxu0 %v2686
  %2800 = vmatpush2.bf16.msra.mxu0 %v2685
  %2801 = vmatprep.mubr.bf16.mxu0 %v2724
  %2802 = vmatmul.mubr.bf16.gmra.mxu0 %v2540
  %v2803 = vpop.f32.mrf.mxu0
  %v2804 = vadd.f32 %v2527, %v2803
  %v2805 = vpop.f32.mrf.mxu0
  %v2806 = vadd.f32 %v2527, %v2805
  %v2807 = vpop.f32.mrf.mxu0
  %v2808 = vadd.f32 %v2532, %v2807
  %v2809 = vpop.f32.mrf.mxu0
  %v2810 = vadd.f32 %v2532, %v2809
  %2811 = vdwg.mxu0
  %v2812 = vmax.f32 %v2761, 0.0
  %v2813 = vmax.f32 %v2763, 0.0
  %v2814 = vmax.f32 %v2804, 0.0
  %v2815 = vmax.f32 %v2806, 0.0
  %v2816 = vmax.f32 %v2765, 0.0
  %v2817 = vmax.f32 %v2767, 0.0
  %v2818 = vmax.f32 %v2808, 0.0
  %v2819 = vmax.f32 %v2810, 0.0
  %2820 = vrot.lane.b32.xlu0 %v2812, 17
  %v2821 = vpop.permute.xlu0 %2820
  %2822 = vrot.lane.b32.xlu0 %v2816, 17
  %v2823 = vpop.permute.xlu0 %2822
  %2824 = vrot.lane.b32.xlu0 %v2813, 17
  %v2825 = vpop.permute.xlu0 %2824
  %2826 = vrot.lane.b32.xlu0 %v2817, 17
  %v2827 = vpop.permute.xlu0 %2826
  %2828 = vrot.lane.b32.xlu0 %v2814, 17
  %v2829 = vpop.permute.xlu0 %2828
  %2830 = vrot.lane.b32.xlu0 %v2818, 17
  %v2831 = vpop.permute.xlu0 %2830
  %2832 = vrot.lane.b32.xlu0 %v2815, 17
  %v2833 = vpop.permute.xlu0 %2832
  %2834 = vrot.lane.b32.xlu0 %v2819, 17
  %v2835 = vpop.permute.xlu0 %2834
  %v2836 = vsel %vm76, %v2829, %v2833
  %v2837 = vsel %vm76, %v2831, %v2835
  %v2838 = vsel %vm76, %v2825, %v2829
  %v2839 = vsel %vm76, %v2827, %v2831
  %v2840 = vsel %vm76, %v2821, %v2825
  %v2841 = vsel %vm76, %v2823, %v2827
  %v2842 = vsel %vm76, %v2833, %v2821
  %v2843 = vsel %vm76, %v2835, %v2823
  %v2844 = vld [vmem:[%s1] ss:$8 sm:$0xf]
  %v2846 = vlaneseq
  %v2847 = vshrl.u32 %v2846, 7
  %v2848 = vsub.s32 0, %v2847
  %v2849 = vrot.slane %v2844, %v2848
  %v2850 = vlaneseq
  %v2851 = vshrl.u32 %v2850, 7
  %v2852 = vsub.s32 1, %v2851
  %v2853 = vrot.slane %v2844, %v2852
  %v2854 = vlaneseq
  %v2855 = vshrl.u32 %v2854, 7
  %v2856 = vsub.s32 2, %v2855
  %v2857 = vrot.slane %v2844, %v2856
  %v2858 = vlaneseq
  %v2859 = vshrl.u32 %v2858, 7
  %v2860 = vsub.s32 3, %v2859
  %v2861 = vrot.slane %v2844, %v2860
  %v2866 = vmul.f32 %v2842, %v2849
  %v2867 = vmul.f32 %v2840, %v2853
  %v2868 = vmul.f32 %v2838, %v2857
  %v2869 = vmul.f32 %v2836, %v2861
  %v2870 = vmul.f32 %v2843, %v2849
  %v2871 = vmul.f32 %v2841, %v2853
  %v2872 = vmul.f32 %v2839, %v2857
  %v2873 = vmul.f32 %v2837, %v2861
  %v2874 = vpack.c.bf16 %v2870, %v2866
  %v2875 = vpack.c.bf16 %v2871, %v2867
  %v2876 = vpack.c.bf16 %v2872, %v2868
  %v2877 = vpack.c.bf16 %v2873, %v2869
  %v2882 = vunpack.c.l.b16 %v2874
  %v2883 = vunpack.c.l.b16 %v2875
  %v2884 = vunpack.c.l.b16 %v2876
  %v2885 = vunpack.c.l.b16 %v2877
  %v2886 = vunpack.c.h.b16 %v2874
  %v2887 = vunpack.c.h.b16 %v2875
  %v2888 = vunpack.c.h.b16 %v2876
  %v2889 = vunpack.c.h.b16 %v2877
  %v2890 = vpack.c.b16 %v2883, %v2882
  %v2891 = vpack.c.b16 %v2885, %v2884
  %v2892 = vpack.c.b16 %v2887, %v2886
  %v2893 = vpack.c.b16 %v2889, %v2888
  %2898 = vst [vmem:[#allocation2] sm:$0xff] %v2890
  %2899 = vst [vmem:[#allocation2 + $0x8] sm:$0xff] %v2891
  %2900 = vst [vmem:[#allocation2 + $0x10] sm:$0xff] %v2892
  %2901 = vst [vmem:[#allocation2 + $0x18] sm:$0xff] %v2893
  %2902 = vrot.lane.b32.xlu0 %v2812, 16
  %v2903 = vpop.permute.xlu0 %2902
  %2904 = vrot.lane.b32.xlu0 %v2816, 16
  %v2905 = vpop.permute.xlu0 %2904
  %2906 = vrot.lane.b32.xlu0 %v2813, 16
  %v2907 = vpop.permute.xlu0 %2906
  %2908 = vrot.lane.b32.xlu0 %v2817, 16
  %v2909 = vpop.permute.xlu0 %2908
  %2910 = vrot.lane.b32.xlu0 %v2814, 16
  %v2911 = vpop.permute.xlu0 %2910
  %2912 = vrot.lane.b32.xlu0 %v2818, 16
  %v2913 = vpop.permute.xlu0 %2912
  %2914 = vrot.lane.b32.xlu0 %v2815, 16
  %v2915 = vpop.permute.xlu0 %2914
  %2916 = vrot.lane.b32.xlu0 %v2819, 16
  %v2917 = vpop.permute.xlu0 %2916
  %v2918 = vsel %vm160, %v2911, %v2915
  %v2919 = vsel %vm160, %v2913, %v2917
  %v2920 = vsel %vm160, %v2907, %v2911
  %v2921 = vsel %vm160, %v2909, %v2913
  %v2922 = vsel %vm160, %v2903, %v2907
  %v2923 = vsel %vm160, %v2905, %v2909
  %v2924 = vsel %vm160, %v2915, %v2903
  %v2925 = vsel %vm160, %v2917, %v2905
  %v2926 = vld [vmem:[%s165] ss:$8 sm:$0xf]
  %v2928 = vlaneseq
  %v2929 = vshrl.u32 %v2928, 7
  %v2930 = vsub.s32 0, %v2929
  %v2931 = vrot.slane %v2926, %v2930
  %v2932 = vlaneseq
  %v2933 = vshrl.u32 %v2932, 7
  %v2934 = vsub.s32 1, %v2933
  %v2935 = vrot.slane %v2926, %v2934
  %v2936 = vlaneseq
  %v2937 = vshrl.u32 %v2936, 7
  %v2938 = vsub.s32 2, %v2937
  %v2939 = vrot.slane %v2926, %v2938
  %v2940 = vlaneseq
  %v2941 = vshrl.u32 %v2940, 7
  %v2942 = vsub.s32 3, %v2941
  %v2943 = vrot.slane %v2926, %v2942
  %v2948 = vmul.f32 %v2924, %v2931
  %v2949 = vmul.f32 %v2922, %v2935
  %v2950 = vmul.f32 %v2920, %v2939
  %v2951 = vmul.f32 %v2918, %v2943
  %v2952 = vmul.f32 %v2925, %v2931
  %v2953 = vmul.f32 %v2923, %v2935
  %v2954 = vmul.f32 %v2921, %v2939
  %v2955 = vmul.f32 %v2919, %v2943
  %v2956 = vpack.c.bf16 %v2952, %v2948
  %v2957 = vpack.c.bf16 %v2953, %v2949
  %v2958 = vpack.c.bf16 %v2954, %v2950
  %v2959 = vpack.c.bf16 %v2955, %v2951
  %v2964 = vunpack.c.l.b16 %v2956
  %v2965 = vunpack.c.l.b16 %v2957
  %v2966 = vunpack.c.l.b16 %v2958
  %v2967 = vunpack.c.l.b16 %v2959
  %v2968 = vunpack.c.h.b16 %v2956
  %v2969 = vunpack.c.h.b16 %v2957
  %v2970 = vunpack.c.h.b16 %v2958
  %v2971 = vunpack.c.h.b16 %v2959
  %v2972 = vpack.c.b16 %v2965, %v2964
  %v2973 = vpack.c.b16 %v2967, %v2966
  %v2974 = vpack.c.b16 %v2969, %v2968
  %v2975 = vpack.c.b16 %v2971, %v2970
  %2980 = vst [vmem:[#allocation2 + $0x20] sm:$0xff] %v2972
  %2981 = vst [vmem:[#allocation2 + $0x28] sm:$0xff] %v2973
  %2982 = vst [vmem:[#allocation2 + $0x30] sm:$0xff] %v2974
  %2983 = vst [vmem:[#allocation2 + $0x38] sm:$0xff] %v2975
  %2984 = vrot.lane.b32.xlu0 %v2812, 15
  %v2985 = vpop.permute.xlu0 %2984
  %2986 = vrot.lane.b32.xlu0 %v2816, 15
  %v2987 = vpop.permute.xlu0 %2986
  %2988 = vrot.lane.b32.xlu0 %v2813, 15
  %v2989 = vpop.permute.xlu0 %2988
  %2990 = vrot.lane.b32.xlu0 %v2817, 15
  %v2991 = vpop.permute.xlu0 %2990
  %2992 = vrot.lane.b32.xlu0 %v2814, 15
  %v2993 = vpop.permute.xlu0 %2992
  %2994 = vrot.lane.b32.xlu0 %v2818, 15
  %v2995 = vpop.permute.xlu0 %2994
  %2996 = vrot.lane.b32.xlu0 %v2815, 15
  %v2997 = vpop.permute.xlu0 %2996
  %2998 = vrot.lane.b32.xlu0 %v2819, 15
  %v2999 = vpop.permute.xlu0 %2998
  %v3000 = vsel %vm245, %v2993, %v2997
  %v3001 = vsel %vm245, %v2995, %v2999
  %v3002 = vsel %vm245, %v2989, %v2993
  %v3003 = vsel %vm245, %v2991, %v2995
  %v3004 = vsel %vm245, %v2985, %v2989
  %v3005 = vsel %vm245, %v2987, %v2991
  %v3006 = vsel %vm245, %v2997, %v2985
  %v3007 = vsel %vm245, %v2999, %v2987
  %v3008 = vld [vmem:[%s250] ss:$8 sm:$0xf]
  %v3010 = vlaneseq
  %v3011 = vshrl.u32 %v3010, 7
  %v3012 = vsub.s32 0, %v3011
  %v3013 = vrot.slane %v3008, %v3012
  %v3014 = vlaneseq
  %v3015 = vshrl.u32 %v3014, 7
  %v3016 = vsub.s32 1, %v3015
  %v3017 = vrot.slane %v3008, %v3016
  %v3018 = vlaneseq
  %v3019 = vshrl.u32 %v3018, 7
  %v3020 = vsub.s32 2, %v3019
  %v3021 = vrot.slane %v3008, %v3020
  %v3022 = vlaneseq
  %v3023 = vshrl.u32 %v3022, 7
  %v3024 = vsub.s32 3, %v3023
  %v3025 = vrot.slane %v3008, %v3024
  %v3030 = vmul.f32 %v3006, %v3013
  %v3031 = vmul.f32 %v3004, %v3017
  %v3032 = vmul.f32 %v3002, %v3021
  %v3033 = vmul.f32 %v3000, %v3025
  %v3034 = vmul.f32 %v3007, %v3013
  %v3035 = vmul.f32 %v3005, %v3017
  %v3036 = vmul.f32 %v3003, %v3021
  %v3037 = vmul.f32 %v3001, %v3025
  %v3038 = vpack.c.bf16 %v3034, %v3030
  %v3039 = vpack.c.bf16 %v3035, %v3031
  %v3040 = vpack.c.bf16 %v3036, %v3032
  %v3041 = vpack.c.bf16 %v3037, %v3033
  %v3046 = vunpack.c.l.b16 %v3038
  %v3047 = vunpack.c.l.b16 %v3039
  %v3048 = vunpack.c.l.b16 %v3040
  %v3049 = vunpack.c.l.b16 %v3041
  %v3050 = vunpack.c.h.b16 %v3038
  %v3051 = vunpack.c.h.b16 %v3039
  %v3052 = vunpack.c.h.b16 %v3040
  %v3053 = vunpack.c.h.b16 %v3041
  %v3054 = vpack.c.b16 %v3047, %v3046
  %v3055 = vpack.c.b16 %v3049, %v3048
  %v3056 = vpack.c.b16 %v3051, %v3050
  %v3057 = vpack.c.b16 %v3053, %v3052
  %3062 = vst [vmem:[#allocation2 + $0x40] sm:$0xff] %v3054
  %3063 = vst [vmem:[#allocation2 + $0x48] sm:$0xff] %v3055
  %3064 = vst [vmem:[#allocation2 + $0x50] sm:$0xff] %v3056
  %3065 = vst [vmem:[#allocation2 + $0x58] sm:$0xff] %v3057
  %3066 = vrot.lane.b32.xlu0 %v2812, 1
  %v3067 = vpop.permute.xlu0 %3066
  %3068 = vrot.lane.b32.xlu0 %v2816, 1
  %v3069 = vpop.permute.xlu0 %3068
  %3070 = vrot.lane.b32.xlu0 %v2813, 1
  %v3071 = vpop.permute.xlu0 %3070
  %3072 = vrot.lane.b32.xlu0 %v2817, 1
  %v3073 = vpop.permute.xlu0 %3072
  %3074 = vrot.lane.b32.xlu0 %v2814, 1
  %v3075 = vpop.permute.xlu0 %3074
  %3076 = vrot.lane.b32.xlu0 %v2818, 1
  %v3077 = vpop.permute.xlu0 %3076
  %3078 = vrot.lane.b32.xlu0 %v2815, 1
  %v3079 = vpop.permute.xlu0 %3078
  %3080 = vrot.lane.b32.xlu0 %v2819, 1
  %v3081 = vpop.permute.xlu0 %3080
  %v3082 = vsel %vm330, %v3075, %v3079
  %v3083 = vsel %vm330, %v3077, %v3081
  %v3084 = vsel %vm330, %v3071, %v3075
  %v3085 = vsel %vm330, %v3073, %v3077
  %v3086 = vsel %vm330, %v3067, %v3071
  %v3087 = vsel %vm330, %v3069, %v3073
  %v3088 = vsel %vm330, %v3079, %v3067
  %v3089 = vsel %vm330, %v3081, %v3069
  %v3090 = vld [vmem:[%s335] ss:$8 sm:$0xf]
  %v3092 = vlaneseq
  %v3093 = vshrl.u32 %v3092, 7
  %v3094 = vsub.s32 0, %v3093
  %v3095 = vrot.slane %v3090, %v3094
  %v3096 = vlaneseq
  %v3097 = vshrl.u32 %v3096, 7
  %v3098 = vsub.s32 1, %v3097
  %v3099 = vrot.slane %v3090, %v3098
  %v3100 = vlaneseq
  %v3101 = vshrl.u32 %v3100, 7
  %v3102 = vsub.s32 2, %v3101
  %v3103 = vrot.slane %v3090, %v3102
  %v3104 = vlaneseq
  %v3105 = vshrl.u32 %v3104, 7
  %v3106 = vsub.s32 3, %v3105
  %v3107 = vrot.slane %v3090, %v3106
  %v3112 = vmul.f32 %v3088, %v3095
  %v3113 = vmul.f32 %v3086, %v3099
  %v3114 = vmul.f32 %v3084, %v3103
  %v3115 = vmul.f32 %v3082, %v3107
  %v3116 = vmul.f32 %v3089, %v3095
  %v3117 = vmul.f32 %v3087, %v3099
  %v3118 = vmul.f32 %v3085, %v3103
  %v3119 = vmul.f32 %v3083, %v3107
  %v3120 = vpack.c.bf16 %v3116, %v3112
  %v3121 = vpack.c.bf16 %v3117, %v3113
  %v3122 = vpack.c.bf16 %v3118, %v3114
  %v3123 = vpack.c.bf16 %v3119, %v3115
  %v3128 = vunpack.c.l.b16 %v3120
  %v3129 = vunpack.c.l.b16 %v3121
  %v3130 = vunpack.c.l.b16 %v3122
  %v3131 = vunpack.c.l.b16 %v3123
  %v3132 = vunpack.c.h.b16 %v3120
  %v3133 = vunpack.c.h.b16 %v3121
  %v3134 = vunpack.c.h.b16 %v3122
  %v3135 = vunpack.c.h.b16 %v3123
  %v3136 = vpack.c.b16 %v3129, %v3128
  %v3137 = vpack.c.b16 %v3131, %v3130
  %v3138 = vpack.c.b16 %v3133, %v3132
  %v3139 = vpack.c.b16 %v3135, %v3134
  %3144 = vst [vmem:[#allocation2 + $0x60] sm:$0xff] %v3136
  %3145 = vst [vmem:[#allocation2 + $0x68] sm:$0xff] %v3137
  %3146 = vst [vmem:[#allocation2 + $0x70] sm:$0xff] %v3138
  %3147 = vst [vmem:[#allocation2 + $0x78] sm:$0xff] %v3139
  %v3148 = vpack.c.bf16 %v2816, %v2812
  %v3149 = vpack.c.bf16 %v2817, %v2813
  %v3150 = vpack.c.bf16 %v2818, %v2814
  %v3151 = vpack.c.bf16 %v2819, %v2815
  %v3156 = vunpack.c.l.b16 %v3148
  %v3157 = vunpack.c.l.b16 %v3149
  %v3158 = vunpack.c.l.b16 %v3150
  %v3159 = vunpack.c.l.b16 %v3151
  %v3160 = vunpack.c.h.b16 %v3148
  %v3161 = vunpack.c.h.b16 %v3149
  %v3162 = vunpack.c.h.b16 %v3150
  %v3163 = vunpack.c.h.b16 %v3151
  %v3164 = vpack.c.b16 %v3157, %v3156
  %v3165 = vpack.c.b16 %v3159, %v3158
  %v3166 = vpack.c.b16 %v3161, %v3160
  %v3167 = vpack.c.b16 %v3163, %v3162
  %3172 = vst [vmem:[#allocation2 + $0x80] sm:$0xff] %v3164
  %3173 = vst [vmem:[#allocation2 + $0x88] sm:$0xff] %v3165
  %3174 = vst [vmem:[#allocation2 + $0x90] sm:$0xff] %v3166
  %3175 = vst [vmem:[#allocation2 + $0x98] sm:$0xff] %v3167
  %3176 = vrot.lane.b32.xlu0 %v2812, 127
  %v3177 = vpop.permute.xlu0 %3176
  %3178 = vrot.lane.b32.xlu0 %v2816, 127
  %v3179 = vpop.permute.xlu0 %3178
  %3180 = vrot.lane.b32.xlu0 %v2813, 127
  %v3181 = vpop.permute.xlu0 %3180
  %3182 = vrot.lane.b32.xlu0 %v2817, 127
  %v3183 = vpop.permute.xlu0 %3182
  %3184 = vrot.lane.b32.xlu0 %v2814, 127
  %v3185 = vpop.permute.xlu0 %3184
  %3186 = vrot.lane.b32.xlu0 %v2818, 127
  %v3187 = vpop.permute.xlu0 %3186
  %3188 = vrot.lane.b32.xlu0 %v2815, 127
  %v3189 = vpop.permute.xlu0 %3188
  %3190 = vrot.lane.b32.xlu0 %v2819, 127
  %v3191 = vpop.permute.xlu0 %3190
  %v3192 = vsel %vm444, %v3185, %v3189
  %v3193 = vsel %vm444, %v3187, %v3191
  %v3194 = vsel %vm444, %v3181, %v3185
  %v3195 = vsel %vm444, %v3183, %v3187
  %v3196 = vsel %vm444, %v3177, %v3181
  %v3197 = vsel %vm444, %v3179, %v3183
  %v3198 = vsel %vm444, %v3189, %v3177
  %v3199 = vsel %vm444, %v3191, %v3179
  %v3200 = vld [vmem:[%s449] ss:$8 sm:$0xf]
  %v3202 = vlaneseq
  %v3203 = vshrl.u32 %v3202, 7
  %v3204 = vsub.s32 0, %v3203
  %v3205 = vrot.slane %v3200, %v3204
  %v3206 = vlaneseq
  %v3207 = vshrl.u32 %v3206, 7
  %v3208 = vsub.s32 1, %v3207
  %v3209 = vrot.slane %v3200, %v3208
  %v3210 = vlaneseq
  %v3211 = vshrl.u32 %v3210, 7
  %v3212 = vsub.s32 2, %v3211
  %v3213 = vrot.slane %v3200, %v3212
  %v3214 = vlaneseq
  %v3215 = vshrl.u32 %v3214, 7
  %v3216 = vsub.s32 3, %v3215
  %v3217 = vrot.slane %v3200, %v3216
  %v3222 = vmul.f32 %v3196, %v3205
  %v3223 = vmul.f32 %v3194, %v3209
  %v3224 = vmul.f32 %v3192, %v3213
  %v3225 = vmul.f32 %v3198, %v3217
  %v3226 = vmul.f32 %v3197, %v3205
  %v3227 = vmul.f32 %v3195, %v3209
  %v3228 = vmul.f32 %v3193, %v3213
  %v3229 = vmul.f32 %v3199, %v3217
  %v3230 = vpack.c.bf16 %v3226, %v3222
  %v3231 = vpack.c.bf16 %v3227, %v3223
  %v3232 = vpack.c.bf16 %v3228, %v3224
  %v3233 = vpack.c.bf16 %v3229, %v3225
  %v3238 = vunpack.c.l.b16 %v3230
  %v3239 = vunpack.c.l.b16 %v3231
  %v3240 = vunpack.c.l.b16 %v3232
  %v3241 = vunpack.c.l.b16 %v3233
  %v3242 = vunpack.c.h.b16 %v3230
  %v3243 = vunpack.c.h.b16 %v3231
  %v3244 = vunpack.c.h.b16 %v3232
  %v3245 = vunpack.c.h.b16 %v3233
  %v3246 = vpack.c.b16 %v3239, %v3238
  %v3247 = vpack.c.b16 %v3241, %v3240
  %v3248 = vpack.c.b16 %v3243, %v3242
  %v3249 = vpack.c.b16 %v3245, %v3244
  %3254 = vst [vmem:[#allocation2 + $0xa0] sm:$0xff] %v3246
  %3255 = vst [vmem:[#allocation2 + $0xa8] sm:$0xff] %v3247
  %3256 = vst [vmem:[#allocation2 + $0xb0] sm:$0xff] %v3248
  %3257 = vst [vmem:[#allocation2 + $0xb8] sm:$0xff] %v3249
  %3258 = vrot.lane.b32.xlu0 %v2812, 113
  %v3259 = vpop.permute.xlu0 %3258
  %3260 = vrot.lane.b32.xlu0 %v2816, 113
  %v3261 = vpop.permute.xlu0 %3260
  %3262 = vrot.lane.b32.xlu0 %v2813, 113
  %v3263 = vpop.permute.xlu0 %3262
  %3264 = vrot.lane.b32.xlu0 %v2817, 113
  %v3265 = vpop.permute.xlu0 %3264
  %3266 = vrot.lane.b32.xlu0 %v2814, 113
  %v3267 = vpop.permute.xlu0 %3266
  %3268 = vrot.lane.b32.xlu0 %v2818, 113
  %v3269 = vpop.permute.xlu0 %3268
  %3270 = vrot.lane.b32.xlu0 %v2815, 113
  %v3271 = vpop.permute.xlu0 %3270
  %3272 = vrot.lane.b32.xlu0 %v2819, 113
  %v3273 = vpop.permute.xlu0 %3272
  %v3274 = vsel %vm529, %v3267, %v3271
  %v3275 = vsel %vm529, %v3269, %v3273
  %v3276 = vsel %vm529, %v3263, %v3267
  %v3277 = vsel %vm529, %v3265, %v3269
  %v3278 = vsel %vm529, %v3259, %v3263
  %v3279 = vsel %vm529, %v3261, %v3265
  %v3280 = vsel %vm529, %v3271, %v3259
  %v3281 = vsel %vm529, %v3273, %v3261
  %v3282 = vld [vmem:[%s534] ss:$8 sm:$0xf]
  %v3284 = vlaneseq
  %v3285 = vshrl.u32 %v3284, 7
  %v3286 = vsub.s32 0, %v3285
  %v3287 = vrot.slane %v3282, %v3286
  %v3288 = vlaneseq
  %v3289 = vshrl.u32 %v3288, 7
  %v3290 = vsub.s32 1, %v3289
  %v3291 = vrot.slane %v3282, %v3290
  %v3292 = vlaneseq
  %v3293 = vshrl.u32 %v3292, 7
  %v3294 = vsub.s32 2, %v3293
  %v3295 = vrot.slane %v3282, %v3294
  %v3296 = vlaneseq
  %v3297 = vshrl.u32 %v3296, 7
  %v3298 = vsub.s32 3, %v3297
  %v3299 = vrot.slane %v3282, %v3298
  %v3304 = vmul.f32 %v3278, %v3287
  %v3305 = vmul.f32 %v3276, %v3291
  %v3306 = vmul.f32 %v3274, %v3295
  %v3307 = vmul.f32 %v3280, %v3299
  %v3308 = vmul.f32 %v3279, %v3287
  %v3309 = vmul.f32 %v3277, %v3291
  %v3310 = vmul.f32 %v3275, %v3295
  %v3311 = vmul.f32 %v3281, %v3299
  %v3312 = vpack.c.bf16 %v3308, %v3304
  %v3313 = vpack.c.bf16 %v3309, %v3305
  %v3314 = vpack.c.bf16 %v3310, %v3306
  %v3315 = vpack.c.bf16 %v3311, %v3307
  %v3320 = vunpack.c.l.b16 %v3312
  %v3321 = vunpack.c.l.b16 %v3313
  %v3322 = vunpack.c.l.b16 %v3314
  %v3323 = vunpack.c.l.b16 %v3315
  %v3324 = vunpack.c.h.b16 %v3312
  %v3325 = vunpack.c.h.b16 %v3313
  %v3326 = vunpack.c.h.b16 %v3314
  %v3327 = vunpack.c.h.b16 %v3315
  %v3328 = vpack.c.b16 %v3321, %v3320
  %v3329 = vpack.c.b16 %v3323, %v3322
  %v3330 = vpack.c.b16 %v3325, %v3324
  %v3331 = vpack.c.b16 %v3327, %v3326
  %3336 = vst [vmem:[#allocation2 + $0xc0] sm:$0xff] %v3328
  %3337 = vst [vmem:[#allocation2 + $0xc8] sm:$0xff] %v3329
  %3338 = vst [vmem:[#allocation2 + $0xd0] sm:$0xff] %v3330
  %3339 = vst [vmem:[#allocation2 + $0xd8] sm:$0xff] %v3331
  %3340 = vrot.lane.b32.xlu0 %v2812, 112
  %v3341 = vpop.permute.xlu0 %3340
  %3342 = vrot.lane.b32.xlu0 %v2816, 112
  %v3343 = vpop.permute.xlu0 %3342
  %3344 = vrot.lane.b32.xlu0 %v2813, 112
  %v3345 = vpop.permute.xlu0 %3344
  %3346 = vrot.lane.b32.xlu0 %v2817, 112
  %v3347 = vpop.permute.xlu0 %3346
  %3348 = vrot.lane.b32.xlu0 %v2814, 112
  %v3349 = vpop.permute.xlu0 %3348
  %3350 = vrot.lane.b32.xlu0 %v2818, 112
  %v3351 = vpop.permute.xlu0 %3350
  %3352 = vrot.lane.b32.xlu0 %v2815, 112
  %v3353 = vpop.permute.xlu0 %3352
  %3354 = vrot.lane.b32.xlu0 %v2819, 112
  %v3355 = vpop.permute.xlu0 %3354
  %v3356 = vsel %vm614, %v3349, %v3353
  %v3357 = vsel %vm614, %v3351, %v3355
  %v3358 = vsel %vm614, %v3345, %v3349
  %v3359 = vsel %vm614, %v3347, %v3351
  %v3360 = vsel %vm614, %v3341, %v3345
  %v3361 = vsel %vm614, %v3343, %v3347
  %v3362 = vsel %vm614, %v3353, %v3341
  %v3363 = vsel %vm614, %v3355, %v3343
  %v3364 = vld [vmem:[%s619] ss:$8 sm:$0xf]
  %v3366 = vlaneseq
  %v3367 = vshrl.u32 %v3366, 7
  %v3368 = vsub.s32 0, %v3367
  %v3369 = vrot.slane %v3364, %v3368
  %v3370 = vlaneseq
  %v3371 = vshrl.u32 %v3370, 7
  %v3372 = vsub.s32 1, %v3371
  %v3373 = vrot.slane %v3364, %v3372
  %v3374 = vlaneseq
  %v3375 = vshrl.u32 %v3374, 7
  %v3376 = vsub.s32 2, %v3375
  %v3377 = vrot.slane %v3364, %v3376
  %v3378 = vlaneseq
  %v3379 = vshrl.u32 %v3378, 7
  %v3380 = vsub.s32 3, %v3379
  %v3381 = vrot.slane %v3364, %v3380
  %v3386 = vmul.f32 %v3360, %v3369
  %v3387 = vmul.f32 %v3358, %v3373
  %v3388 = vmul.f32 %v3356, %v3377
  %v3389 = vmul.f32 %v3362, %v3381
  %v3390 = vmul.f32 %v3361, %v3369
  %v3391 = vmul.f32 %v3359, %v3373
  %v3392 = vmul.f32 %v3357, %v3377
  %v3393 = vmul.f32 %v3363, %v3381
  %v3394 = vpack.c.bf16 %v3390, %v3386
  %v3395 = vpack.c.bf16 %v3391, %v3387
  %v3396 = vpack.c.bf16 %v3392, %v3388
  %v3397 = vpack.c.bf16 %v3393, %v3389
  %v3402 = vunpack.c.l.b16 %v3394
  %v3403 = vunpack.c.l.b16 %v3395
  %v3404 = vunpack.c.l.b16 %v3396
  %v3405 = vunpack.c.l.b16 %v3397
  %v3406 = vunpack.c.h.b16 %v3394
  %v3407 = vunpack.c.h.b16 %v3395
  %v3408 = vunpack.c.h.b16 %v3396
  %v3409 = vunpack.c.h.b16 %v3397
  %v3410 = vpack.c.b16 %v3403, %v3402
  %v3411 = vpack.c.b16 %v3405, %v3404
  %v3412 = vpack.c.b16 %v3407, %v3406
  %v3413 = vpack.c.b16 %v3409, %v3408
  %3418 = vst [vmem:[#allocation2 + $0xe0] sm:$0xff] %v3410
  %3419 = vst [vmem:[#allocation2 + $0xe8] sm:$0xff] %v3411
  %3420 = vst [vmem:[#allocation2 + $0xf0] sm:$0xff] %v3412
  %3421 = vst [vmem:[#allocation2 + $0xf8] sm:$0xff] %v3413
  %3422 = vrot.lane.b32.xlu0 %v2812, 111
  %v3423 = vpop.permute.xlu0 %3422
  %3424 = vrot.lane.b32.xlu0 %v2816, 111
  %v3425 = vpop.permute.xlu0 %3424
  %3426 = vrot.lane.b32.xlu0 %v2813, 111
  %v3427 = vpop.permute.xlu0 %3426
  %3428 = vrot.lane.b32.xlu0 %v2817, 111
  %v3429 = vpop.permute.xlu0 %3428
  %3430 = vrot.lane.b32.xlu0 %v2814, 111
  %v3431 = vpop.permute.xlu0 %3430
  %3432 = vrot.lane.b32.xlu0 %v2818, 111
  %v3433 = vpop.permute.xlu0 %3432
  %3434 = vrot.lane.b32.xlu0 %v2815, 111
  %v3435 = vpop.permute.xlu0 %3434
  %3436 = vrot.lane.b32.xlu0 %v2819, 111
  %v3437 = vpop.permute.xlu0 %3436
  %v3438 = vsel %vm699, %v3431, %v3435
  %v3439 = vsel %vm699, %v3433, %v3437
  %v3440 = vsel %vm699, %v3427, %v3431
  %v3441 = vsel %vm699, %v3429, %v3433
  %v3442 = vsel %vm699, %v3423, %v3427
  %v3443 = vsel %vm699, %v3425, %v3429
  %v3444 = vsel %vm699, %v3435, %v3423
  %v3445 = vsel %vm699, %v3437, %v3425
  %v3446 = vld [vmem:[%s704] ss:$8 sm:$0xf]
  %v3448 = vlaneseq
  %v3449 = vshrl.u32 %v3448, 7
  %v3450 = vsub.s32 0, %v3449
  %v3451 = vrot.slane %v3446, %v3450
  %v3452 = vlaneseq
  %v3453 = vshrl.u32 %v3452, 7
  %v3454 = vsub.s32 1, %v3453
  %v3455 = vrot.slane %v3446, %v3454
  %v3456 = vlaneseq
  %v3457 = vshrl.u32 %v3456, 7
  %v3458 = vsub.s32 2, %v3457
  %v3459 = vrot.slane %v3446, %v3458
  %v3460 = vlaneseq
  %v3461 = vshrl.u32 %v3460, 7
  %v3462 = vsub.s32 3, %v3461
  %v3463 = vrot.slane %v3446, %v3462
  %v3468 = vmul.f32 %v3442, %v3451
  %v3469 = vmul.f32 %v3440, %v3455
  %v3470 = vmul.f32 %v3438, %v3459
  %v3471 = vmul.f32 %v3444, %v3463
  %v3472 = vmul.f32 %v3443, %v3451
  %v3473 = vmul.f32 %v3441, %v3455
  %v3474 = vmul.f32 %v3439, %v3459
  %v3475 = vmul.f32 %v3445, %v3463
  %v3476 = vpack.c.bf16 %v3472, %v3468
  %v3477 = vpack.c.bf16 %v3473, %v3469
  %v3478 = vpack.c.bf16 %v3474, %v3470
  %v3479 = vpack.c.bf16 %v3475, %v3471
  %v3484 = vunpack.c.l.b16 %v3476
  %v3485 = vunpack.c.l.b16 %v3477
  %v3486 = vunpack.c.l.b16 %v3478
  %v3487 = vunpack.c.l.b16 %v3479
  %v3488 = vunpack.c.h.b16 %v3476
  %v3489 = vunpack.c.h.b16 %v3477
  %v3490 = vunpack.c.h.b16 %v3478
  %v3491 = vunpack.c.h.b16 %v3479
  %v3492 = vpack.c.b16 %v3485, %v3484
  %v3493 = vpack.c.b16 %v3487, %v3486
  %v3494 = vpack.c.b16 %v3489, %v3488
  %v3495 = vpack.c.b16 %v3491, %v3490
  %3500 = vst [vmem:[#allocation2 + $0x100] sm:$0xff] %v3492
  %3501 = vst [vmem:[#allocation2 + $0x108] sm:$0xff] %v3493
  %3502 = vst [vmem:[#allocation2 + $0x110] sm:$0xff] %v3494
  %3503 = vst [vmem:[#allocation2 + $0x118] sm:$0xff] %v3495
  %v3504 = vld [vmem:[%s8] sm:$0x3]
  %v3505 = vld [vmem:[#allocation2] sm:$0xff]
  %v3506 = vld [vmem:[#allocation2 + $0x8] sm:$0xff]
  %v3507 = vld [vmem:[#allocation2 + $0x10] sm:$0xff]
  %v3508 = vld [vmem:[#allocation2 + $0x18] sm:$0xff]
  %v3509 = vld [vmem:[#allocation2 + $0x20] sm:$0xff]
  %v3510 = vld [vmem:[#allocation2 + $0x28] sm:$0xff]
  %v3511 = vld [vmem:[#allocation2 + $0x30] sm:$0xff]
  %v3512 = vld [vmem:[#allocation2 + $0x38] sm:$0xff]
  %v3513 = vld [vmem:[#allocation2 + $0x40] sm:$0xff]
  %v3514 = vld [vmem:[#allocation2 + $0x48] sm:$0xff]
  %v3515 = vld [vmem:[#allocation2 + $0x50] sm:$0xff]
  %v3516 = vld [vmem:[#allocation2 + $0x58] sm:$0xff]
  %v3517 = vld [vmem:[#allocation2 + $0x60] sm:$0xff]
  %v3518 = vld [vmem:[#allocation2 + $0x68] sm:$0xff]
  %v3519 = vld [vmem:[#allocation2 + $0x70] sm:$0xff]
  %v3520 = vld [vmem:[#allocation2 + $0x78] sm:$0xff]
  %v3521 = vld [vmem:[#allocation2 + $0x80] sm:$0xff]
  %v3522 = vld [vmem:[#allocation2 + $0x88] sm:$0xff]
  %v3523 = vld [vmem:[#allocation2 + $0x90] sm:$0xff]
  %v3524 = vld [vmem:[#allocation2 + $0x98] sm:$0xff]
  %v3525 = vld [vmem:[#allocation2 + $0xa0] sm:$0xff]
  %v3526 = vld [vmem:[#allocation2 + $0xa8] sm:$0xff]
  %v3527 = vld [vmem:[#allocation2 + $0xb0] sm:$0xff]
  %v3528 = vld [vmem:[#allocation2 + $0xb8] sm:$0xff]
  %v3529 = vld [vmem:[#allocation2 + $0xc0] sm:$0xff]
  %v3530 = vld [vmem:[#allocation2 + $0xc8] sm:$0xff]
  %v3531 = vld [vmem:[#allocation2 + $0xd0] sm:$0xff]
  %v3532 = vld [vmem:[#allocation2 + $0xd8] sm:$0xff]
  %v3533 = vld [vmem:[#allocation2 + $0xe0] sm:$0xff]
  %v3534 = vld [vmem:[#allocation2 + $0xe8] sm:$0xff]
  %v3535 = vld [vmem:[#allocation2 + $0xf0] sm:$0xff]
  %v3536 = vld [vmem:[#allocation2 + $0xf8] sm:$0xff]
  %v3537 = vld [vmem:[#allocation2 + $0x100] sm:$0xff]
  %v3538 = vld [vmem:[#allocation2 + $0x108] sm:$0xff]
  %v3539 = vld [vmem:[#allocation2 + $0x110] sm:$0xff]
  %v3540 = vld [vmem:[#allocation2 + $0x118] sm:$0xff]
  %v3541 = vld [vmem:[#allocation3] sm:$0x1]
  %3543 = vset.pattern.permute.xlu0 0
  %3544 = vperm.xlu0 %3543, %v3541
  %v3545 = vpop.permute.xlu0 %3544
  %v3547 = vlaneseq
  %v3548 = vshrl.u32 %v3547, 7
  %v3549 = vsub.s32 0, %v3548
  %v3550 = vrot.slane %v3545, %v3549
  %v3553 = vunpack.c.l.s4 1966171168
  %v3554 = vunpack.c.0.s8 %v3553
  %v3555 = vlaneseq
  %v3556 = vshrl.u32 %v3555, 7
  %v3557 = vsub.s32 %v3554, %v3556
  %v3558 = vrot.slane %v3504, %v3557
  %v3559 = vcombine.high %v3558, %v3558
  %v3561 = vunpack.c.l.s4 1966171168
  %v3562 = vunpack.c.0.s8 %v3561
  %v3563 = vlaneseq
  %v3564 = vshrl.u32 %v3563, 7
  %v3565 = vsub.s32 %v3562, %v3564
  %v3566 = vrot.slane %v3558, %v3565
  %v3568 = vunpack.c.l.s4 1966171168
  %v3569 = vunpack.c.0.s8 %v3568
  %v3570 = vlaneseq
  %v3571 = vshrl.u32 %v3570, 7
  %v3572 = vsub.s32 %v3569, %v3571
  %v3573 = vrot.slane %v3559, %v3572
  %v3611 = vunpack.c.l.b16 %v3505
  %v3612 = vunpack.c.h.b16 %v3505
  %v3613 = vunpack.c.l.b16 %v3506
  %v3614 = vunpack.c.h.b16 %v3506
  %v3615 = vunpack.c.l.b16 %v3507
  %v3616 = vunpack.c.h.b16 %v3507
  %v3617 = vunpack.c.l.b16 %v3508
  %v3618 = vunpack.c.h.b16 %v3508
  %v3619 = vunpack.c.l.b16 %v3509
  %v3620 = vunpack.c.h.b16 %v3509
  %v3621 = vunpack.c.l.b16 %v3510
  %v3622 = vunpack.c.h.b16 %v3510
  %v3623 = vunpack.c.l.b16 %v3511
  %v3624 = vunpack.c.h.b16 %v3511
  %v3625 = vunpack.c.l.b16 %v3512
  %v3626 = vunpack.c.h.b16 %v3512
  %v3627 = vunpack.c.l.b16 %v3513
  %v3628 = vunpack.c.h.b16 %v3513
  %v3629 = vunpack.c.l.b16 %v3514
  %v3630 = vunpack.c.h.b16 %v3514
  %v3631 = vunpack.c.l.b16 %v3515
  %v3632 = vunpack.c.h.b16 %v3515
  %v3633 = vunpack.c.l.b16 %v3516
  %v3634 = vunpack.c.h.b16 %v3516
  %v3635 = vunpack.c.l.b16 %v3517
  %v3636 = vunpack.c.h.b16 %v3517
  %v3637 = vunpack.c.l.b16 %v3518
  %v3638 = vunpack.c.h.b16 %v3518
  %v3639 = vunpack.c.l.b16 %v3519
  %v3640 = vunpack.c.h.b16 %v3519
  %v3641 = vunpack.c.l.b16 %v3520
  %v3642 = vunpack.c.h.b16 %v3520
  %v3643 = vunpack.c.l.b16 %v3521
  %v3644 = vunpack.c.h.b16 %v3521
  %v3645 = vunpack.c.l.b16 %v3522
  %v3646 = vunpack.c.h.b16 %v3522
  %v3647 = vunpack.c.l.b16 %v3523
  %v3648 = vunpack.c.h.b16 %v3523
  %v3649 = vunpack.c.l.b16 %v3524
  %v3650 = vunpack.c.h.b16 %v3524
  %v3651 = vunpack.c.l.b16 %v3525
  %v3652 = vunpack.c.h.b16 %v3525
  %v3653 = vunpack.c.l.b16 %v3526
  %v3654 = vunpack.c.h.b16 %v3526
  %v3655 = vunpack.c.l.b16 %v3527
  %v3656 = vunpack.c.h.b16 %v3527
  %v3657 = vunpack.c.l.b16 %v3528
  %v3658 = vunpack.c.h.b16 %v3528
  %v3659 = vunpack.c.l.b16 %v3529
  %v3660 = vunpack.c.h.b16 %v3529
  %v3661 = vunpack.c.l.b16 %v3530
  %v3662 = vunpack.c.h.b16 %v3530
  %v3663 = vunpack.c.l.b16 %v3531
  %v3664 = vunpack.c.h.b16 %v3531
  %v3665 = vunpack.c.l.b16 %v3532
  %v3666 = vunpack.c.h.b16 %v3532
  %v3667 = vunpack.c.l.b16 %v3533
  %v3668 = vunpack.c.h.b16 %v3533
  %v3669 = vunpack.c.l.b16 %v3534
  %v3670 = vunpack.c.h.b16 %v3534
  %v3671 = vunpack.c.l.b16 %v3535
  %v3672 = vunpack.c.h.b16 %v3535
  %v3673 = vunpack.c.l.b16 %v3536
  %v3674 = vunpack.c.h.b16 %v3536
  %v3675 = vunpack.c.l.b16 %v3537
  %v3676 = vunpack.c.h.b16 %v3537
  %v3677 = vunpack.c.l.b16 %v3538
  %v3678 = vunpack.c.h.b16 %v3538
  %v3679 = vunpack.c.l.b16 %v3539
  %v3680 = vunpack.c.h.b16 %v3539
  %v3681 = vunpack.c.l.b16 %v3540
  %v3682 = vunpack.c.h.b16 %v3540
  %v3683 = vpack.c.b16 %v3615, %v3611
  %v3684 = vpack.c.b16 %v3616, %v3612
  %v3685 = vpack.c.b16 %v3617, %v3613
  %v3686 = vpack.c.b16 %v3618, %v3614
  %v3687 = vpack.c.b16 %v3623, %v3619
  %v3688 = vpack.c.b16 %v3624, %v3620
  %v3689 = vpack.c.b16 %v3625, %v3621
  %v3690 = vpack.c.b16 %v3626, %v3622
  %v3691 = vpack.c.b16 %v3631, %v3627
  %v3692 = vpack.c.b16 %v3632, %v3628
  %v3693 = vpack.c.b16 %v3633, %v3629
  %v3694 = vpack.c.b16 %v3634, %v3630
  %v3695 = vpack.c.b16 %v3639, %v3635
  %v3696 = vpack.c.b16 %v3640, %v3636
  %v3697 = vpack.c.b16 %v3641, %v3637
  %v3698 = vpack.c.b16 %v3642, %v3638
  %v3699 = vpack.c.b16 %v3647, %v3643
  %v3700 = vpack.c.b16 %v3648, %v3644
  %v3701 = vpack.c.b16 %v3649, %v3645
  %v3702 = vpack.c.b16 %v3650, %v3646
  %v3703 = vpack.c.b16 %v3655, %v3651
  %v3704 = vpack.c.b16 %v3656, %v3652
  %v3705 = vpack.c.b16 %v3657, %v3653
  %v3706 = vpack.c.b16 %v3658, %v3654
  %v3707 = vpack.c.b16 %v3663, %v3659
  %v3708 = vpack.c.b16 %v3664, %v3660
  %v3709 = vpack.c.b16 %v3665, %v3661
  %v3710 = vpack.c.b16 %v3666, %v3662
  %v3711 = vpack.c.b16 %v3671, %v3667
  %v3712 = vpack.c.b16 %v3672, %v3668
  %v3713 = vpack.c.b16 %v3673, %v3669
  %v3714 = vpack.c.b16 %v3674, %v3670
  %v3715 = vpack.c.b16 %v3679, %v3675
  %v3716 = vpack.c.b16 %v3680, %v3676
  %v3717 = vpack.c.b16 %v3681, %v3677
  %v3718 = vpack.c.b16 %v3682, %v3678
  %v3756 = vsel %vm1702, %v3573, 0
  %3758 = vmatprep.subr.bf16.mxu0 %v3712
  %3759 = vmatpush1.bf16.msra.mxu0 %v3711
  %3760 = vmatprep.subr.bf16.mxu0 %v3708
  %3761 = vmatpush1.bf16.msra.mxu0 %v3707
  %3762 = vmatprep.subr.bf16.mxu0 %v3704
  %3763 = vmatpush1.bf16.msra.mxu0 %v3703
  %3764 = vmatprep.subr.bf16.mxu0 %v3700
  %3765 = vmatpush1.bf16.msra.mxu0 %v3699
  %3766 = vmatprep.subr.bf16.mxu0 %v3696
  %3767 = vmatpush1.bf16.msra.mxu0 %v3695
  %3768 = vmatprep.subr.bf16.mxu0 %v3692
  %3769 = vmatpush1.bf16.msra.mxu0 %v3691
  %3770 = vmatprep.subr.bf16.mxu0 %v3688
  %3771 = vmatpush1.bf16.msra.mxu0 %v3687
  %3772 = vmatprep.subr.bf16.mxu0 %v3684
  %3773 = vmatpush1.bf16.msra.mxu0 %v3683
  %3774 = vmatprep.subr.bf16.mxu0 0
  %3775 = vmatpush2.bf16.msra.mxu0 0
  %3776 = vmatprep.subr.bf16.mxu0 0
  %3777 = vmatpush2.bf16.msra.mxu0 0
  %3778 = vmatprep.subr.bf16.mxu0 0
  %3779 = vmatpush2.bf16.msra.mxu0 0
  %3780 = vmatprep.subr.bf16.mxu0 0
  %3781 = vmatpush2.bf16.msra.mxu0 0
  %3782 = vmatprep.subr.bf16.mxu0 0
  %3783 = vmatpush2.bf16.msra.mxu0 0
  %3784 = vmatprep.subr.bf16.mxu0 0
  %3785 = vmatpush2.bf16.msra.mxu0 0
  %3786 = vmatprep.subr.bf16.mxu0 0
  %3787 = vmatpush2.bf16.msra.mxu0 0
  %3788 = vmatprep.subr.bf16.mxu0 %v3716
  %3789 = vmatpush2.bf16.msra.mxu0 %v3715
  %3790 = vmatprep.mubr.bf16.mxu0 %v3756
  %3791 = vmatmul.mubr.bf16.gmra.mxu0 %v3566
  %v3792 = vpop.f32.mrf.mxu0
  %v3793 = vadd.f32 %v3550, %v3792
  %v3794 = vpop.f32.mrf.mxu0
  %v3795 = vadd.f32 %v3550, %v3794
  %v3796 = vpop.f32.mrf.mxu0
  %v3797 = vpop.f32.mrf.mxu0
  %3798 = vdwg.mxu0
  %3799 = vmatprep.subr.bf16.mxu0 %v3714
  %3800 = vmatpush1.bf16.msra.mxu0 %v3713
  %3801 = vmatprep.subr.bf16.mxu0 %v3710
  %3802 = vmatpush1.bf16.msra.mxu0 %v3709
  %3803 = vmatprep.subr.bf16.mxu0 %v3706
  %3804 = vmatpush1.bf16.msra.mxu0 %v3705
  %3805 = vmatprep.subr.bf16.mxu0 %v3702
  %3806 = vmatpush1.bf16.msra.mxu0 %v3701
  %3807 = vmatprep.subr.bf16.mxu0 %v3698
  %3808 = vmatpush1.bf16.msra.mxu0 %v3697
  %3809 = vmatprep.subr.bf16.mxu0 %v3694
  %3810 = vmatpush1.bf16.msra.mxu0 %v3693
  %3811 = vmatprep.subr.bf16.mxu0 %v3690
  %3812 = vmatpush1.bf16.msra.mxu0 %v3689
  %3813 = vmatprep.subr.bf16.mxu0 %v3686
  %3814 = vmatpush1.bf16.msra.mxu0 %v3685
  %3815 = vmatprep.subr.bf16.mxu0 0
  %3816 = vmatpush2.bf16.msra.mxu0 0
  %3817 = vmatprep.subr.bf16.mxu0 0
  %3818 = vmatpush2.bf16.msra.mxu0 0
  %3819 = vmatprep.subr.bf16.mxu0 0
  %3820 = vmatpush2.bf16.msra.mxu0 0
  %3821 = vmatprep.subr.bf16.mxu0 0
  %3822 = vmatpush2.bf16.msra.mxu0 0
  %3823 = vmatprep.subr.bf16.mxu0 0
  %3824 = vmatpush2.bf16.msra.mxu0 0
  %3825 = vmatprep.subr.bf16.mxu0 0
  %3826 = vmatpush2.bf16.msra.mxu0 0
  %3827 = vmatprep.subr.bf16.mxu0 0
  %3828 = vmatpush2.bf16.msra.mxu0 0
  %3829 = vmatprep.subr.bf16.mxu0 %v3718
  %3830 = vmatpush2.bf16.msra.mxu0 %v3717
  %3831 = vmatprep.mubr.bf16.mxu0 %v3756
  %3832 = vmatmul.mubr.bf16.gmra.mxu0 %v3566
  %v3833 = vpop.f32.mrf.mxu0
  %v3834 = vadd.f32 %v3550, %v3833
  %v3835 = vpop.f32.mrf.mxu0
  %v3836 = vadd.f32 %v3550, %v3835
  %v3837 = vpop.f32.mrf.mxu0
  %v3838 = vpop.f32.mrf.mxu0
  %3839 = vdwg.mxu0
  %v3840 = vmax.f32 %v3793, 0.0
  %v3841 = vmax.f32 %v3795, 0.0
  %v3842 = vmax.f32 %v3834, 0.0
  %v3843 = vmax.f32 %v3836, 0.0
  %3844 = vst [vmem:[%s13] sm:$0xff] %v793
  %3845 = vst [vmem:[%s13 + $0x8] sm:$0xff] %v794
  %3846 = vst [vmem:[%s13 + $0x10] sm:$0xff] %v795
  %3847 = vst [vmem:[%s13 + $0x18] sm:$0xff] %v796
  %3848 = vst [vmem:[%s13 + $0x20] sm:$0xff] %v797
  %3849 = vst [vmem:[%s13 + $0x28] sm:$0xff] %v798
  %3850 = vst [vmem:[%s13 + $0x30] sm:$0xff] %v799
  %3851 = vst [vmem:[%s13 + $0x38] sm:$0xff] %v800
  %3852 = vst [vmem:[%s12] sm:$0xff] %v1792
  %3853 = vst [vmem:[%s12 + $0x8] sm:$0xff] %v1793
  %3854 = vst [vmem:[%s12 + $0x10] sm:$0xff] %v1794
  %3855 = vst [vmem:[%s12 + $0x18] sm:$0xff] %v1795
  %3856 = vst [vmem:[%s12 + $0x20] sm:$0xff] %v1796
  %3857 = vst [vmem:[%s12 + $0x28] sm:$0xff] %v1797
  %3858 = vst [vmem:[%s12 + $0x30] sm:$0xff] %v1798
  %3859 = vst [vmem:[%s12 + $0x38] sm:$0xff] %v1799
  %3860 = vst [vmem:[%s11] sm:$0xff] %v2812
  %3861 = vst [vmem:[%s11 + $0x8] sm:$0xff] %v2813
  %3862 = vst [vmem:[%s11 + $0x10] sm:$0xff] %v2814
  %3863 = vst [vmem:[%s11 + $0x18] sm:$0xff] %v2815
  %3864 = vst [vmem:[%s11 + $0x20] sm:$0xff] %v2816
  %3865 = vst [vmem:[%s11 + $0x28] sm:$0xff] %v2817
  %3866 = vst [vmem:[%s11 + $0x30] sm:$0xff] %v2818
  %3867 = vst [vmem:[%s11 + $0x38] sm:$0xff] %v2819
  %v3872 = vcombine.low %v3840, %v3841
  %v3873 = vcombine.low %v3842, %v3843
  %v3875 = vunpack.c.l.s4 1966171168
  %v3876 = vunpack.c.0.s8 %v3875
  %v3877 = vlaneseq
  %v3878 = vshrl.u32 %v3877, 7
  %v3879 = vsub.s32 %v3876, %v3878
  %v3880 = vrot.slane %v3872, %v3879
  %v3882 = vunpack.c.l.s4 1966171168
  %v3883 = vunpack.c.0.s8 %v3882
  %v3884 = vlaneseq
  %v3885 = vshrl.u32 %v3884, 7
  %v3886 = vsub.s32 %v3883, %v3885
  %v3887 = vrot.slane %v3873, %v3886
  %v3888 = vcombine.low %v3880, %v3887
  %v3890 = vunpack.c.l.s4 1966171168
  %v3891 = vunpack.c.0.s8 %v3890
  %v3892 = vlaneseq
  %v3893 = vshrl.u32 %v3892, 7
  %v3894 = vsub.s32 %v3891, %v3893
  %v3895 = vrot.slane %v3888, %v3894
  %v3897 = vlaneseq
  %vm3898 = vcmp.ge.s32.totalorder %v3897, 0
  %vm3899 = vcmp.lt.s32.totalorder %v3897, 512
  %vm3900 = vmand %vm3898, %vm3899
  %3901 = vst.msk [vmem:[%s10] sm:$0xf] %vm3900, %v3895
  // Predicated region
  $region42: #{cyclenet_pallas.1} parent=0 // pred_check
    _
  $region43: #{cyclenet_pallas.1} parent=0 // pred_check_branch
    %3903 = sbr.rel (0) target = $region45
  $region44: #{cyclenet_pallas.1} parent=0 // pred_region
    _
  $region45: #{cyclenet_pallas.1} parent=0 // pred_fallthru
    _
  // Predicated region
  $region46: #{cyclenet_pallas.1} parent=0 // pred_check
    _
  $region47: #{cyclenet_pallas.1} parent=0 // pred_check_branch
    %3905 = sbr.rel (0) target = $region49
  $region48: #{cyclenet_pallas.1} parent=0 // pred_region
    _
  $region49: #{cyclenet_pallas.1} parent=0 // pred_fallthru
    _
  // Predicated region
  $region50: #{cyclenet_pallas.1} parent=0 // pred_check
    _
  $region51: #{cyclenet_pallas.1} parent=0 // pred_check_branch
    %3907 = sbr.rel (0) target = $region53
  $region52: #{cyclenet_pallas.1} parent=0 // pred_region
    _
  $region53: #{cyclenet_pallas.1} parent=0 // pred_fallthru
    _
  // Predicated region
  $region54: #{cyclenet_pallas.1} parent=0 // pred_check
    _
  $region55: #{cyclenet_pallas.1} parent=0 // pred_check_branch
    %3909 = sbr.rel (0) target = $region57
  $region56: #{cyclenet_pallas.1} parent=0 // pred_region
    _
  $region57: #{cyclenet_pallas.1} parent=0 // pred_fallthru
    _
  // Predicated region
  $region58: #{cyclenet_pallas.1} parent=0 // pred_check
    _
  $region59: #{cyclenet_pallas.1} parent=0 // pred_check_branch
    %3911 = sbr.rel (0) target = $region61
  $region60: #{cyclenet_pallas.1} parent=0 // pred_region
    _
  $region61: #{cyclenet_pallas.1} parent=0 // pred_fallthru
    _
  // Predicated region
  $region62: #{cyclenet_pallas.1} parent=0 // pred_check
    _
  $region63: #{cyclenet_pallas.1} parent=0 // pred_check_branch
    %3913 = sbr.rel (0) target = $region65
  $region64: #{cyclenet_pallas.1} parent=0 // pred_region
    _
  $region65: #{cyclenet_pallas.1} parent=0 // pred_fallthru
    _
  // Predicated region
  $region66: #{cyclenet_pallas.1} parent=0 // pred_check
    _
  $region67: #{cyclenet_pallas.1} parent=0 // pred_check_branch
    %3915 = sbr.rel (0) target = $region69
  $region68: #{cyclenet_pallas.1} parent=0 // pred_region
    _
  $region69: #{cyclenet_pallas.1} parent=0 // pred_fallthru
    _
  // Predicated region
  $region70: #{cyclenet_pallas.1} parent=0 // pred_check
    _
  $region71: #{cyclenet_pallas.1} parent=0 // pred_check_branch
    %3917 = sbr.rel (0) target = $region73
  $region72: #{cyclenet_pallas.1} parent=0 // pred_region
    _
  $region73: #{cyclenet_pallas.1} parent=0 // pred_fallthru
    _

</llo_original>
